<compile_context>
chip_gen: v5e
topology: v5e:2x2
jax: 0.10.0
libtpu: 0.0.40
codegen_flags: <defaults>
</compile_context>

<pallas_src>
import functools

import jax
import jax.numpy as jnp
from jax.experimental import pallas as pl
from jax.experimental.pallas import tpu as pltpu

# ----------------------------------------------------------------------------
# Small config consistent with the module's construction
# (real model: img 224, patch 16, embed 768, depth 12, heads 12 — scaled down,
#  but with lane-dense dims: embed 128, head_dim 64).
# ----------------------------------------------------------------------------
IMG_SIZE = 32
PATCH = 16
NUM_FRAMES = 2          # args.num_frames
IN_CHANS = 3
EMBED_DIM = 128
DEPTH = 2
NUM_HEADS = 2
HEAD_DIM = EMBED_DIM // NUM_HEADS      # 64 (same as the real model)
MLP_RATIO = 4
NUM_PROMPTS = 1         # "timeP_1" -> one residual prompt token
NUM_CLASSES = 10        # args.num_classes (actual classification head)
LN_EPS = 1e-6

LANE = 128
SUBLANE = 8
KV_TILE = 256           # flash-attention kv tile (>=256 fills v6e/v7x MXU depth)
NEG_BIG = -1e30         # finite "-inf" so online-softmax rescales never NaN


# --- generation-aware tile / VMEM budgets ------------------------------------
def _vmem_capacity_bytes():
    try:
        info = pltpu.get_tpu_info()
        for attr in ("vmem_capacity_bytes", "vmem_bytes", "vmem_size_bytes"):
            v = getattr(info, attr, None)
            if v:
                return int(v)
    except Exception:
        pass
    return 64 * 1024 * 1024          # conservative (v7x-sized) default


_VMEM_CAP = _vmem_capacity_bytes()
if _VMEM_CAP >= 96 * 1024 * 1024:    # v5e / v6e (128 MiB physical VMEM)
    TM_CAP, TN_CAP, TK_CAP = 512, 1024, 512
    VMEM_LIMIT = 64 * 1024 * 1024
else:                                # v7x (64 MiB) or unknown
    TM_CAP, TN_CAP, TK_CAP = 256, 512, 512
    VMEM_LIMIT = 40 * 1024 * 1024

# heads per attention block: keep the block's last dim lane-dense (>=128)
HEAD_BLK = max(1, min(NUM_HEADS, LANE // HEAD_DIM))
while NUM_HEADS % HEAD_BLK != 0:
    HEAD_BLK -= 1


def _round_up(v, m):
    return (v + m - 1) // m * m


# ----------------------------------------------------------------------------
# Fused linear kernel:  out = [residual +] act( LN(x) @ W + b )
# Tiled over (M, N, K) with an f32 accumulator; LN/bias/GELU/residual fused.
# When LN is fused it is computed once per row tile (j == 0) into a bf16
# scratch and reused for every output-column tile.
# ----------------------------------------------------------------------------
def _linear_kernel(*refs, act, fuse_ln, fuse_res):
    it = iter(refs)
    x_ref = next(it)
    w_ref = next(it)
    b_ref = next(it)
    g_ref = bb_ref = r_ref = None
    if fuse_ln:
        g_ref = next(it)
        bb_ref = next(it)
    if fuse_res:
        r_ref = next(it)
    o_ref = next(it)
    acc_ref = next(it)
    xn_ref = next(it) if fuse_ln else None

    j = pl.program_id(1)
    k = pl.program_id(2)

    @pl.when(k == 0)
    def _init():
        acc_ref[...] = jnp.zeros_like(acc_ref)

    if fuse_ln:
        # full contraction row is resident when LN is fused (tk == K)
        @pl.when(j == 0)
        def _ln():
            x = x_ref[...].astype(jnp.float32)
            mu = jnp.mean(x, axis=-1, keepdims=True)
            var = jnp.mean(jnp.square(x - mu), axis=-1, keepdims=True)
            xn = (x - mu) * jax.lax.rsqrt(var + LN_EPS)
            xn = xn * g_ref[...].astype(jnp.float32) \
                 + bb_ref[...].astype(jnp.float32)
            xn_ref[...] = xn.astype(jnp.bfloat16)
        xb = xn_ref[...]
    else:
        xb = x_ref[...].astype(jnp.bfloat16)

    acc_ref[...] += jnp.dot(
        xb, w_ref[...].astype(jnp.bfloat16),
        preferred_element_type=jnp.float32,
    )

    @pl.when(k == pl.num_programs(2) - 1)
    def _finalize():
        y = acc_ref[...] + b_ref[...].astype(jnp.float32)
        if act == "gelu":
            # TODO(synk): timm's nn.GELU is exact-erf GELU; tanh-approx GELU is
            # used inside the kernel (erf lowering support varies by version).
            y = jax.nn.gelu(y, approximate=True)
        if fuse_res:
            y = y + r_ref[...].astype(jnp.float32)
        o_ref[...] = y.astype(o_ref.dtype)


def pallas_linear(x, w, b, *, act="none", ln=None, residual=None,
                  out_dtype=jnp.bfloat16):
    """y = [residual +] act( LN(x) @ w + b ).  x: (..., K), w: (K, N), b: (N,)."""
    K, N = w.shape
    lead = x.shape[:-1]
    x2 = x.reshape(-1, K)
    M = x2.shape[0]

    fuse_ln = ln is not None
    fuse_res = residual is not None

    # --- tile / pad selection (lane-dense N, sublane-aligned M) ---
    Mp = _round_up(M, SUBLANE)
    if Mp <= TM_CAP:
        tm = Mp
    else:
        tm = TM_CAP
        Mp = _round_up(M, tm)

    Np = _round_up(N, LANE)
    if Np <= TN_CAP:
        tn = Np
    else:
        tn = 512 if TN_CAP >= 512 else 256
        Np = _round_up(Np, tn)

    if fuse_ln or K <= TK_CAP:
        tk, Kp = K, K                      # LN needs the full row in one step
    else:
        tk = 256
        Kp = _round_up(K, tk)

    # --- zero-pad operands (padding keeps the matmul exact) ---
    if Mp != M or Kp != K:
        x2 = jnp.pad(x2, ((0, Mp - M), (0, Kp - K)))
    wp = jnp.pad(w, ((0, Kp - K), (0, Np - N))) if (Kp != K or Np != N) else w
    bp = jnp.pad(b, (0, Np - N)) if Np != N else b

    grid = (Mp // tm, Np // tn, Kp // tk)

    in_specs = [
        pl.BlockSpec((tm, tk), lambda i, j, k: (i, k)),
        pl.BlockSpec((tk, tn), lambda i, j, k: (k, j)),
        pl.BlockSpec((1, tn), lambda i, j, k: (0, j)),
    ]
    args = [x2, wp, bp.reshape(1, Np)]
    if fuse_ln:
        g, bb = ln
        in_specs += [pl.BlockSpec((1, tk), lambda i, j, k: (0, k))] * 2
        args += [g.reshape(1, K), bb.reshape(1, K)]
    if fuse_res:
        r2 = residual.reshape(-1, N)
        if Mp != M or Np != N:
            r2 = jnp.pad(r2, ((0, Mp - M), (0, Np - N)))
        in_specs += [pl.BlockSpec((tm, tn), lambda i, j, k: (i, j))]
        args += [r2]

    scratch = [pltpu.VMEM((tm, tn), jnp.float32)]
    if fuse_ln:
        scratch.append(pltpu.VMEM((tm, K), jnp.bfloat16))   # LN cache across j

    # j must be "arbitrary" when LN is cached across output-column tiles so the
    # cache is never split across megacore TensorCores.
    dims = ("parallel", "arbitrary" if fuse_ln else "parallel", "arbitrary")

    out = pl.pallas_call(
        functools.partial(_linear_kernel, act=act, fuse_ln=fuse_ln,
                          fuse_res=fuse_res),
        out_shape=jax.ShapeDtypeStruct((Mp, Np), out_dtype),
        grid=grid,
        in_specs=in_specs,
        out_specs=pl.BlockSpec((tm, tn), lambda i, j, k: (i, j)),
        scratch_shapes=scratch,
        compiler_params=pltpu.CompilerParams(
            dimension_semantics=dims,
            vmem_limit_bytes=VMEM_LIMIT,
        ),
    )(*args)

    if Mp != M or Np != N:
        out = out[:M, :N]
    return out.reshape(lead + (N,))


# ----------------------------------------------------------------------------
# Standalone LayerNorm (only used for the final norm)
# ----------------------------------------------------------------------------
def _layernorm_kernel(x_ref, g_ref, b_ref, o_ref):
    x = x_ref[...].astype(jnp.float32)
    mu = jnp.mean(x, axis=-1, keepdims=True)
    var = jnp.mean(jnp.square(x - mu), axis=-1, keepdims=True)
    y = (x - mu) * jax.lax.rsqrt(var + LN_EPS)
    o_ref[...] = (y * g_ref[...].astype(jnp.float32)
                  + b_ref[...].astype(jnp.float32)).astype(o_ref.dtype)


def pallas_layernorm(x, g, b):
    D = x.shape[-1]
    lead = x.shape[:-1]
    x2 = x.reshape(-1, D)
    M = x2.shape[0]
    Mp = _round_up(M, SUBLANE)
    if Mp <= TM_CAP:
        tm = Mp
    else:
        tm = TM_CAP
        Mp = _round_up(M, tm)
    if Mp != M:
        x2 = jnp.pad(x2, ((0, Mp - M), (0, 0)))
    out = pl.pallas_call(
        _layernorm_kernel,
        out_shape=jax.ShapeDtypeStruct((Mp, D), x.dtype),
        grid=(Mp // tm,),
        in_specs=[
            pl.BlockSpec((tm, D), lambda i: (i, 0)),
            pl.BlockSpec((1, D), lambda i: (0, 0)),
            pl.BlockSpec((1, D), lambda i: (0, 0)),
        ],
        out_specs=pl.BlockSpec((tm, D), lambda i: (i, 0)),
        compiler_params=pltpu.CompilerParams(
            dimension_semantics=("parallel",),
            vmem_limit_bytes=VMEM_LIMIT,
        ),
    )(x2, g.reshape(1, D), b.reshape(1, D))
    if Mp != M:
        out = out[:M]
    return out.reshape(lead + (D,))


# ----------------------------------------------------------------------------
# Flash-style multi-head self-attention.
#   * q/k/v sliced straight out of the packed bf16 (B, S, 3D) qkv activation
#     via BlockSpec index_maps (no reshape/transpose, no f32 copies).
#   * kv axis is a tiled "arbitrary" grid dimension with online-softmax
#     (per-head m/l stats + f32 acc scratch, pl.when init/finalize).
#   * 1/sqrt(Dh) scale is folded offline into qkv_w / qkv_b.
#   * Output written in (B, S, heads*Dh) layout (directly feeds the proj) with
#     a single unmasked 128-lane store per grid step.
# ----------------------------------------------------------------------------
def _flash_attn_kernel(q_ref, k_ref, v_ref, o_ref, m_sc, l_sc, acc_sc,
                       *, hblk, dh, s_valid):
    kv = pl.program_id(2)
    tkv = k_ref.shape[1]

    @pl.when(kv == 0)
    def _init():
        m_sc[...] = jnp.full_like(m_sc, NEG_BIG)
        l_sc[...] = jnp.zeros_like(l_sc)
        acc_sc[...] = jnp.zeros_like(acc_sc)

    if s_valid is not None:   # mask padded key positions (finite -inf)
        kv_pos = kv * tkv + jax.lax.broadcasted_iota(jnp.int32, (1, tkv), 1)

    for h in range(hblk):                       # unrolled lane-dense head loop
        hsl = slice(h * dh, (h + 1) * dh)
        qh = q_ref[0, :, hsl]                   # bf16, scale folded into weights
        kh = k_ref[0, :, hsl]
        vh = v_ref[0, :, hsl]

        s = jax.lax.dot_general(qh, kh, (((1,), (1,)), ((), ())),
                                preferred_element_type=jnp.float32)
        if s_valid is not None:
            s = jnp.where(kv_pos < s_valid, s, NEG_BIG)

        m_prev = m_sc[h]                        # (Sq, 1) f32
        m_new = jnp.maximum(m_prev, jnp.max(s, axis=-1, keepdims=True))
        alpha = jnp.exp(m_prev - m_new)
        p = jnp.exp(s - m_new)
        l_sc[h] = alpha * l_sc[h] + jnp.sum(p, axis=-1, keepdims=True)
        acc_sc[:, hsl] = alpha * acc_sc[:, hsl] + jnp.dot(
            p.astype(jnp.bfloat16), vh, preferred_element_type=jnp.float32)
        m_sc[h] = m_new

    @pl.when(kv == pl.num_programs(2) - 1)
    def _finalize():
        for h in range(hblk):
            hsl = slice(h * dh, (h + 1) * dh)
            inv = pl.reciprocal(l_sc[h], approx=True)
            acc_sc[:, hsl] = acc_sc[:, hsl] * inv
        o_ref[0] = acc_sc[...].astype(o_ref.dtype)


def pallas_attention(qkv):
    """qkv: (B, S, 3*D) packed [q | k | v], heads contiguous within each D.
    Returns (B, S, D) in head-major layout (same as timm's post-transpose)."""
    B, S, threeD = qkv.shape
    D = threeD // 3
    hblk = HEAD_BLK
    gpb = NUM_HEADS // hblk                 # head-groups per (batch) step
    blkd = hblk * HEAD_DIM                  # lane-dense block width (>=128)

    # pad S so the kv axis tiles evenly; padded keys are masked in-kernel
    Sp = _round_up(S, SUBLANE)
    if Sp <= KV_TILE:
        tkv = Sp
    else:
        tkv = KV_TILE
        Sp = _round_up(S, tkv)
    if Sp != S:
        qkv = jnp.pad(qkv, ((0, 0), (0, Sp - S), (0, 0)))
    n_kv = Sp // tkv
    s_valid = S if Sp != S else None

    # Note (v7x): keep B*gpb >= 2 so both TensorCores get work; if B == 1 at
    # real scale, put the head-group axis first.
    out = pl.pallas_call(
        functools.partial(_flash_attn_kernel, hblk=hblk, dh=HEAD_DIM,
                          s_valid=s_valid),
        out_shape=jax.ShapeDtypeStruct((B, Sp, D), qkv.dtype),
        grid=(B, gpb, n_kv),
        in_specs=[
            pl.BlockSpec((1, Sp, blkd), lambda b, g, kv: (b, 0, g)),
            pl.BlockSpec((1, tkv, blkd), lambda b, g, kv: (b, kv, gpb + g)),
            pl.BlockSpec((1, tkv, blkd), lambda b, g, kv: (b, kv, 2 * gpb + g)),
        ],
        out_specs=pl.BlockSpec((1, Sp, blkd), lambda b, g, kv: (b, 0, g)),
        scratch_shapes=[
            pltpu.VMEM((hblk, Sp, 1), jnp.float32),   # running max m
            pltpu.VMEM((hblk, Sp, 1), jnp.float32),   # running denom l
            pltpu.VMEM((Sp, blkd), jnp.float32),      # output accumulator
        ],
        compiler_params=pltpu.CompilerParams(
            dimension_semantics=("parallel", "parallel", "arbitrary"),
            vmem_limit_bytes=VMEM_LIMIT,
        ),
    )(qkv, qkv, qkv)
    if Sp != S:
        out = out[:, :S, :]
    return out


# ----------------------------------------------------------------------------
# Model pieces (glue in plain JAX, compute in Pallas)
# ----------------------------------------------------------------------------
def transformer_block(x, p):
    # attention branch (pre-LN): LN1 fused into the qkv matmul,
    # residual fused into the proj epilogue.
    qkv = pallas_linear(x, p["qkv_w"], p["qkv_b"], ln=(p["ln1_g"], p["ln1_b"]))
    attn_out = pallas_attention(qkv)
    x = pallas_linear(attn_out, p["proj_w"], p["proj_b"], residual=x)
    # MLP branch (pre-LN): LN2 fused into fc1 (+GELU), residual fused into fc2.
    h = pallas_linear(x, p["fc1_w"], p["fc1_b"],
                      ln=(p["ln2_g"], p["ln2_b"]), act="gelu")
    x = pallas_linear(h, p["fc2_w"], p["fc2_b"], residual=x)
    return x


def forward(params, x):
    """x: (B, C, T, H, W) float32 -> (x_resPrompt, x_features)."""
    B, C, T, H, W = x.shape
    Hp, Wp = H // PATCH, W // PATCH
    N = Hp * Wp

    # --- patch embedding: Conv2d(k=16, s=16) over NCHW == im2col + matmul ---
    # TODO(synk): at real 224x224 scale this im2col should be folded into the
    # patch matmul's BlockSpec index_map (or use lax.conv) to avoid the HBM
    # round-trip of the relayout.
    xt = jnp.transpose(x, (0, 2, 1, 3, 4)).reshape(B * T, C, H, W)
    patches = xt.reshape(B * T, C, Hp, PATCH, Wp, PATCH)
    patches = jnp.transpose(patches, (0, 2, 4, 1, 3, 5))        # (BT,Hp,Wp,C,p,p)
    patches = patches.reshape(B * T, N, C * PATCH * PATCH).astype(jnp.bfloat16)
    tok = pallas_linear(patches, params["patch_w"], params["patch_b"])  # (BT,N,D)

    # --- cls token + spatial positional embedding ---
    cls = jnp.broadcast_to(params["cls_token"], (B * T, 1, EMBED_DIM))
    tok = jnp.concatenate([cls, tok], axis=1) + params["pos_embed"]     # (BT,1+N,D)

    # --- temporal embedding, joint space-time token layout ---
    tok = tok.reshape(B, T, 1 + N, EMBED_DIM)
    cls_tok = tok[:, 0, 0:1, :]                                          # (B,1,D)
    spat = tok[:, :, 1:, :] + params["time_embed"][:, :, None, :]        # (B,T,N,D)
    spat = jnp.transpose(spat, (0, 2, 1, 3)).reshape(B, N * T, EMBED_DIM)  # '(n t)'

    # --- prepend residual prompt token(s) ---
    prompts = jnp.broadcast_to(params["resPrompt"], (B, NUM_PROMPTS, EMBED_DIM))
    h = jnp.concatenate([prompts, cls_tok, spat], axis=1)                # (B,S,D)

    # --- transformer blocks (joint space-time self-attention) ---
    # TODO(synk): exact resPromptVisionTransformer source is not available; this
    # follows the standard timm/TimeSformer block with prompts prepended.
    for blk in params["blocks"]:
        h = transformer_block(h, blk)

    h = pallas_layernorm(h, params["norm_g"], params["norm_b"])

    prompt_out = jnp.mean(h[:, :NUM_PROMPTS, :], axis=1)                 # (B, D)
    x_resPrompt = pallas_linear(prompt_out, params["head_w"], params["head_b"],
                                out_dtype=jnp.float32)
    x_features = h[:, NUM_PROMPTS, :].astype(jnp.float32)                # cls token
    return x_resPrompt, x_features


# ----------------------------------------------------------------------------
# Parameter initialization (f32) + inference-time preparation (bf16 storage,
# attention scale folded into the q part of the qkv projection).
# ----------------------------------------------------------------------------
def init_params(key):
    keys = iter(jax.random.split(key, 64))

    def nrm(shape, std=0.02):
        return jax.random.normal(next(keys), shape, jnp.float32) * std

    zeros = lambda *s: jnp.zeros(s, jnp.float32)
    ones = lambda *s: jnp.ones(s, jnp.float32)

    params = {
        # PyTorch conv weight (D, C, p, p) flattened to (C*p*p, D)
        "patch_w": nrm((IN_CHANS * PATCH * PATCH, EMBED_DIM)),
        "patch_b": zeros(EMBED_DIM),
        "cls_token": nrm((1, 1, EMBED_DIM)),
        "pos_embed": nrm((1, 1 + (IMG_SIZE // PATCH) ** 2, EMBED_DIM)),
        "time_embed": nrm((1, NUM_FRAMES, EMBED_DIM)),
        "resPrompt": nrm((1, NUM_PROMPTS, EMBED_DIM)),
        "norm_g": ones(EMBED_DIM),
        "norm_b": zeros(EMBED_DIM),
        "head_w": nrm((EMBED_DIM, NUM_CLASSES)),
        "head_b": zeros(NUM_CLASSES),
        "blocks": [],
    }
    for _ in range(DEPTH):
        params["blocks"].append({
            "ln1_g": ones(EMBED_DIM), "ln1_b": zeros(EMBED_DIM),
            "qkv_w": nrm((EMBED_DIM, 3 * EMBED_DIM)), "qkv_b": zeros(3 * EMBED_DIM),
            "proj_w": nrm((EMBED_DIM, EMBED_DIM)), "proj_b": zeros(EMBED_DIM),
            "ln2_g": ones(EMBED_DIM), "ln2_b": zeros(EMBED_DIM),
            "fc1_w": nrm((EMBED_DIM, MLP_RATIO * EMBED_DIM)),
            "fc1_b": zeros(MLP_RATIO * EMBED_DIM),
            "fc2_w": nrm((MLP_RATIO * EMBED_DIM, EMBED_DIM)),
            "fc2_b": zeros(EMBED_DIM),
        })
    return params


def prepare_params(p32):
    """Cast to bf16 HBM storage and fold 1/sqrt(Dh) into the q projection."""
    scale = HEAD_DIM ** -0.5
    bf = lambda t: t.astype(jnp.bfloat16)

    out = {k: bf(v) for k, v in p32.items() if k != "blocks"}
    out["blocks"] = []
    for blk in p32["blocks"]:
        qkv_w = blk["qkv_w"].at[:, :EMBED_DIM].multiply(scale)   # fold in f32
        qkv_b = blk["qkv_b"].at[:EMBED_DIM].multiply(scale)
        nb = {k: bf(v) for k, v in blk.items() if k not in ("qkv_w", "qkv_b")}
        nb["qkv_w"] = bf(qkv_w)
        nb["qkv_b"] = bf(qkv_b)
        out["blocks"].append(nb)
    return out


# ----------------------------------------------------------------------------
if __name__ == "__main__":
    key = jax.random.PRNGKey(0)
    pkey, xkey = jax.random.split(key)
    params = prepare_params(init_params(pkey))

    # input video: (B, C, T, H, W)
    x = jax.random.normal(xkey, (2, IN_CHANS, NUM_FRAMES, IMG_SIZE, IMG_SIZE),
                          jnp.float32)

    fwd = jax.jit(forward)
    x_resPrompt, x_features = fwd(params, x)
    jax.block_until_ready(x_resPrompt)

    assert x_resPrompt.shape == (2, NUM_CLASSES)
    assert x_features.shape == (2, EMBED_DIM)
    print("KERNEL_OK")
</pallas_src>

<mosaic_0001>
module attributes {stable_mosaic.version = 11 : i64} {
  func.func @_linear_kernel(%arg0: i32, %arg1: i32, %arg2: i32, %arg3: memref<16x256xbf16, #tpu.memory_space<vmem>>, %arg4: memref<256x128xbf16, #tpu.memory_space<vmem>>, %arg5: memref<1x128xbf16, #tpu.memory_space<vmem>>, %arg6: memref<16x128xbf16, #tpu.memory_space<vmem>>, %arg7: memref<16x128xf32, #tpu.memory_space<vmem>>) attributes {dimension_semantics = [#tpu.dimension_semantics<parallel>, #tpu.dimension_semantics<parallel>, #tpu.dimension_semantics<arbitrary>], iteration_bounds = array<i64: 1, 1, 3>, scalar_prefetch = 0 : i64, scratch_operands = 1 : i64, tpu.core_type = #tpu.core_type<tc>, window_params = [{transform_indices = @transform_0, window_bounds = array<i64: 16, 256>}, {transform_indices = @transform_1, window_bounds = array<i64: 256, 128>}, {transform_indices = @transform_2, window_bounds = array<i64: 1, 128>}, {transform_indices = @transform_3, window_bounds = array<i64: 16, 128>}]} {
    %c0_i32 = arith.constant 0 : i32
    %0 = arith.cmpi eq, %arg2, %c0_i32 : i32
    %1 = arith.extui %0 : i1 to i32
    %c0_i32_0 = arith.constant 0 : i32
    %2 = arith.cmpi ne, %1, %c0_i32_0 : i32
    scf.if %2 {
      %cst_9 = arith.constant 0.000000e+00 : f32
      %12 = vector.broadcast %cst_9 : f32 to vector<16x128xf32>
      %c0_10 = arith.constant 0 : index
      %c0_11 = arith.constant 0 : index
      %13 = vector.load %arg7[%c0_10, %c0_11] : memref<16x128xf32, #tpu.memory_space<vmem>>, vector<16x128xf32>
      tpu.vector_store %arg7[%c0_10, %c0_11], %12 {strides = array<i32>} : memref<16x128xf32, #tpu.memory_space<vmem>>, vector<16x128xf32>,
    } else {
    }
    %c0 = arith.constant 0 : index
    %c0_1 = arith.constant 0 : index
    %3 = vector.load %arg3[%c0, %c0_1] : memref<16x256xbf16, #tpu.memory_space<vmem>>, vector<16x256xbf16>
    %c0_2 = arith.constant 0 : index
    %c0_3 = arith.constant 0 : index
    %4 = vector.load %arg7[%c0_2, %c0_3] : memref<16x128xf32, #tpu.memory_space<vmem>>, vector<16x128xf32>
    %c0_4 = arith.constant 0 : index
    %c0_5 = arith.constant 0 : index
    %5 = vector.load %arg4[%c0_4, %c0_5] : memref<256x128xbf16, #tpu.memory_space<vmem>>, vector<256x128xbf16>
    %cst = arith.constant dense<0.000000e+00> : vector<16x128xf32>
    %6 = tpu.matmul %3, %5, %cst {dimension_numbers = #tpu.dot_dimension_numbers<[1], [0], [0], [1], [0, 0, 1, 1], [], []>} : vector<16x256xbf16>, vector<256x128xbf16>, vector<16x128xf32> -> vector<16x128xf32>
    %7 = arith.addf %4, %6 : vector<16x128xf32>
    %c0_6 = arith.constant 0 : index
    %c0_7 = arith.constant 0 : index
    %8 = vector.load %arg7[%c0_6, %c0_7] : memref<16x128xf32, #tpu.memory_space<vmem>>, vector<16x128xf32>
    tpu.vector_store %arg7[%c0_6, %c0_7], %7 {strides = array<i32>} : memref<16x128xf32, #tpu.memory_space<vmem>>, vector<16x128xf32>,
    %c2_i32 = arith.constant 2 : i32
    %9 = arith.cmpi eq, %arg2, %c2_i32 : i32
    %10 = arith.extui %9 : i1 to i32
    %c0_i32_8 = arith.constant 0 : i32
    %11 = arith.cmpi ne, %10, %c0_i32_8 : i32
    scf.if %11 {
      %c0_9 = arith.constant 0 : index
      %c0_10 = arith.constant 0 : index
      %12 = vector.load %arg7[%c0_9, %c0_10] : memref<16x128xf32, #tpu.memory_space<vmem>>, vector<16x128xf32>
      %c0_11 = arith.constant 0 : index
      %c0_12 = arith.constant 0 : index
      %13 = vector.load %arg5[%c0_11, %c0_12] : memref<1x128xbf16, #tpu.memory_space<vmem>>, vector<1x128xbf16>
      %14 = arith.extf %13 : vector<1x128xbf16> to vector<1x128xf32>
      %15 = vector.broadcast %14 : vector<1x128xf32> to vector<16x128xf32>
      %16 = arith.addf %12, %15 : vector<16x128xf32>
      %17 = arith.truncf %16 : vector<16x128xf32> to vector<16x128xbf16>
      %c0_13 = arith.constant 0 : index
      %c0_14 = arith.constant 0 : index
      %18 = vector.load %arg6[%c0_13, %c0_14] : memref<16x128xbf16, #tpu.memory_space<vmem>>, vector<16x128xbf16>
      tpu.vector_store %arg6[%c0_13, %c0_14], %17 {strides = array<i32>} : memref<16x128xbf16, #tpu.memory_space<vmem>>, vector<16x128xbf16>,
    } else {
    }
    return
  }
  func.func @transform_0(%arg0: i32, %arg1: i32, %arg2: i32) -> (i32, i32) {
    %c0_i32 = arith.constant 0 : i32
    return %arg0, %arg2 : i32, i32
  }
  func.func @transform_1(%arg0: i32, %arg1: i32, %arg2: i32) -> (i32, i32) {
    %c0_i32 = arith.constant 0 : i32
    return %arg2, %arg1 : i32, i32
  }
  func.func @transform_2(%arg0: i32, %arg1: i32, %arg2: i32) -> (i32, i32) {
    %c0_i32 = arith.constant 0 : i32
    %c0_i32_0 = arith.constant 0 : i32
    return %c0_i32, %arg1 : i32, i32
  }
  func.func @transform_3(%arg0: i32, %arg1: i32, %arg2: i32) -> (i32, i32) {
    %c0_i32 = arith.constant 0 : i32
    return %arg0, %arg1 : i32, i32
  }
}

module attributes {stable_mosaic.version = 11 : i64} {
  func.func @_flash_attn_kernel(%arg0: i32, %arg1: i32, %arg2: i32, %arg3: memref<1x16x128xbf16, #tpu.memory_space<vmem>>, %arg4: memref<1x16x128xbf16, #tpu.memory_space<vmem>>, %arg5: memref<1x16x128xbf16, #tpu.memory_space<vmem>>, %arg6: memref<1x16x128xbf16, #tpu.memory_space<vmem>>, %arg7: memref<2x16x1xf32, #tpu.memory_space<vmem>>, %arg8: memref<2x16x1xf32, #tpu.memory_space<vmem>>, %arg9: memref<16x128xf32, #tpu.memory_space<vmem>>) attributes {dimension_semantics = [#tpu.dimension_semantics<parallel>, #tpu.dimension_semantics<parallel>, #tpu.dimension_semantics<arbitrary>], iteration_bounds = array<i64: 2, 1, 1>, scalar_prefetch = 0 : i64, scratch_operands = 3 : i64, tpu.core_type = #tpu.core_type<tc>, window_params = [{transform_indices = @transform_0, window_bounds = array<i64: 1, 16, 128>}, {transform_indices = @transform_1, window_bounds = array<i64: 1, 16, 128>}, {transform_indices = @transform_2, window_bounds = array<i64: 1, 16, 128>}, {transform_indices = @transform_3, window_bounds = array<i64: 1, 16, 128>}]} {
    %c0_i32 = arith.constant 0 : i32
    %0 = arith.cmpi eq, %arg2, %c0_i32 : i32
    %1 = arith.extui %0 : i1 to i32
    %c0_i32_0 = arith.constant 0 : i32
    %2 = arith.cmpi ne, %1, %c0_i32_0 : i32
    scf.if %2 {
      %cst_60 = arith.constant -1.000000e+30 : f32
      %94 = vector.broadcast %cst_60 : f32 to vector<2x16x1xf32>
      %c0_61 = arith.constant 0 : index
      %c0_62 = arith.constant 0 : index
      %c0_63 = arith.constant 0 : index
      %95 = vector.load %arg7[%c0_61, %c0_62, %c0_63] : memref<2x16x1xf32, #tpu.memory_space<vmem>>, vector<2x16x1xf32>
      tpu.vector_store %arg7[%c0_61, %c0_62, %c0_63], %94 {strides = array<i32>} : memref<2x16x1xf32, #tpu.memory_space<vmem>>, vector<2x16x1xf32>,
      %cst_64 = arith.constant 0.000000e+00 : f32
      %96 = vector.broadcast %cst_64 : f32 to vector<2x16x1xf32>
      %c0_65 = arith.constant 0 : index
      %c0_66 = arith.constant 0 : index
      %c0_67 = arith.constant 0 : index
      %97 = vector.load %arg8[%c0_65, %c0_66, %c0_67] : memref<2x16x1xf32, #tpu.memory_space<vmem>>, vector<2x16x1xf32>
      tpu.vector_store %arg8[%c0_65, %c0_66, %c0_67], %96 {strides = array<i32>} : memref<2x16x1xf32, #tpu.memory_space<vmem>>, vector<2x16x1xf32>,
      %cst_68 = arith.constant 0.000000e+00 : f32
      %98 = vector.broadcast %cst_68 : f32 to vector<16x128xf32>
      %c0_69 = arith.constant 0 : index
      %c0_70 = arith.constant 0 : index
      %99 = vector.load %arg9[%c0_69, %c0_70] : memref<16x128xf32, #tpu.memory_space<vmem>>, vector<16x128xf32>
      tpu.vector_store %arg9[%c0_69, %c0_70], %98 {strides = array<i32>} : memref<16x128xf32, #tpu.memory_space<vmem>>, vector<16x128xf32>,
    } else {
    }
    %c16_i32 = arith.constant 16 : i32
    %3 = arith.muli %arg2, %c16_i32 : i32
    %4 = tpu.iota {dimensions = array<i32: 1>} : vector<1x16xi32>
    %5 = vector.broadcast %3 : i32 to vector<1x16xi32>
    %6 = arith.addi %5, %4 : vector<1x16xi32>
    %c0 = arith.constant 0 : index
    %c0_1 = arith.constant 0 : index
    %c0_2 = arith.constant 0 : index
    %7 = vector.load %arg3[%c0, %c0_1, %c0_2] : memref<1x16x128xbf16, #tpu.memory_space<vmem>>, vector<1x16x64xbf16>
    %8 = vector.shape_cast %7 : vector<1x16x64xbf16> to vector<16x64xbf16>
    %c0_3 = arith.constant 0 : index
    %c0_4 = arith.constant 0 : index
    %c0_5 = arith.constant 0 : index
    %9 = vector.load %arg4[%c0_3, %c0_4, %c0_5] : memref<1x16x128xbf16, #tpu.memory_space<vmem>>, vector<1x16x64xbf16>
    %10 = vector.shape_cast %9 : vector<1x16x64xbf16> to vector<16x64xbf16>
    %c0_6 = arith.constant 0 : index
    %c0_7 = arith.constant 0 : index
    %c0_8 = arith.constant 0 : index
    %11 = vector.load %arg5[%c0_6, %c0_7, %c0_8] : memref<1x16x128xbf16, #tpu.memory_space<vmem>>, vector<1x16x64xbf16>
    %12 = vector.shape_cast %11 : vector<1x16x64xbf16> to vector<16x64xbf16>
    %cst = arith.constant dense<0.000000e+00> : vector<16x16xf32>
    %13 = tpu.matmul %8, %10, %cst {dimension_numbers = #tpu.dot_dimension_numbers<[1], [1], [0], [0], [0, 0, 1, 0], [], []>} : vector<16x64xbf16>, vector<16x64xbf16>, vector<16x16xf32> -> vector<16x16xf32>
    %c10_i32 = arith.constant 10 : i32
    %14 = vector.broadcast %c10_i32 : i32 to vector<1x16xi32>
    %15 = arith.cmpi slt, %6, %14 : vector<1x16xi32>
    %cst_9 = arith.constant -1.000000e+30 : f32
    %16 = vector.shape_cast %15 : vector<1x16xi1> to vector<1x16xi1>
    %17 = vector.broadcast %16 : vector<1x16xi1> to vector<16x16xi1>
    %18 = vector.broadcast %cst_9 : f32 to vector<16x16xf32>
    %19 = arith.select %17, %13, %18 : vector<16x16xi1>, vector<16x16xf32>
    %c0_10 = arith.constant 0 : index
    %c0_11 = arith.constant 0 : index
    %c0_12 = arith.constant 0 : index
    %20 = vector.load %arg7[%c0_10, %c0_11, %c0_12] : memref<2x16x1xf32, #tpu.memory_space<vmem>>, vector<1x16x1xf32>
    %21 = vector.shape_cast %20 : vector<1x16x1xf32> to vector<16x1xf32>
    %cst_13 = arith.constant dense<0xFF800000> : vector<16xf32>
    %22 = vector.multi_reduction <maximumf>, %19, %cst_13 [1] : vector<16x16xf32> to vector<16xf32>
    %23 = vector.shape_cast %22 : vector<16xf32> to vector<16x1xf32>
    %24 = arith.maximumf %21, %23 : vector<16x1xf32>
    %25 = arith.subf %21, %24 : vector<16x1xf32>
    %26 = math.exp %25 : vector<16x1xf32>
    %27 = vector.broadcast %24 : vector<16x1xf32> to vector<16x16xf32>
    %28 = arith.subf %19, %27 : vector<16x16xf32>
    %29 = math.exp %28 : vector<16x16xf32>
    %c0_14 = arith.constant 0 : index
    %c0_15 = arith.constant 0 : index
    %c0_16 = arith.constant 0 : index
    %30 = vector.load %arg8[%c0_14, %c0_15, %c0_16] : memref<2x16x1xf32, #tpu.memory_space<vmem>>, vector<1x16x1xf32>
    %31 = vector.shape_cast %30 : vector<1x16x1xf32> to vector<16x1xf32>
    %32 = arith.mulf %26, %31 : vector<16x1xf32>
    %cst_17 = arith.constant dense<0.000000e+00> : vector<16xf32>
    %33 = vector.multi_reduction <add>, %29, %cst_17 [1] : vector<16x16xf32> to vector<16xf32>
    %34 = vector.shape_cast %33 : vector<16xf32> to vector<16x1xf32>
    %35 = arith.addf %32, %34 : vector<16x1xf32>
    %c0_18 = arith.constant 0 : index
    %c0_19 = arith.constant 0 : index
    %c0_20 = arith.constant 0 : index
    %36 = vector.load %arg8[%c0_18, %c0_19, %c0_20] : memref<2x16x1xf32, #tpu.memory_space<vmem>>, vector<1x16x1xf32>
    %37 = vector.shape_cast %36 : vector<1x16x1xf32> to vector<16x1xf32>
    %38 = vector.shape_cast %35 : vector<16x1xf32> to vector<1x16x1xf32>
    tpu.vector_store %arg8[%c0_18, %c0_19, %c0_20], %38 {strides = array<i32>} : memref<2x16x1xf32, #tpu.memory_space<vmem>>, vector<1x16x1xf32>,
    %c0_21 = arith.constant 0 : index
    %c0_22 = arith.constant 0 : index
    %39 = vector.load %arg9[%c0_21, %c0_22] : memref<16x128xf32, #tpu.memory_space<vmem>>, vector<16x64xf32>
    %40 = vector.broadcast %26 : vector<16x1xf32> to vector<16x64xf32>
    %41 = arith.mulf %40, %39 : vector<16x64xf32>
    %42 = arith.truncf %29 : vector<16x16xf32> to vector<16x16xbf16>
    %cst_23 = arith.constant dense<0.000000e+00> : vector<16x64xf32>
    %43 = tpu.matmul %42, %12, %cst_23 {dimension_numbers = #tpu.dot_dimension_numbers<[1], [0], [0], [1], [0, 0, 1, 1], [], []>} : vector<16x16xbf16>, vector<16x64xbf16>, vector<16x64xf32> -> vector<16x64xf32>
    %44 = arith.addf %41, %43 : vector<16x64xf32>
    %c0_24 = arith.constant 0 : index
    %c0_25 = arith.constant 0 : index
    %45 = vector.load %arg9[%c0_24, %c0_25] : memref<16x128xf32, #tpu.memory_space<vmem>>, vector<16x64xf32>
    tpu.vector_store %arg9[%c0_24, %c0_25], %44 {strides = array<i32>} : memref<16x128xf32, #tpu.memory_space<vmem>>, vector<16x64xf32>,
    %c0_26 = arith.constant 0 : index
    %c0_27 = arith.constant 0 : index
    %c0_28 = arith.constant 0 : index
    %46 = vector.load %arg7[%c0_26, %c0_27, %c0_28] : memref<2x16x1xf32, #tpu.memory_space<vmem>>, vector<1x16x1xf32>
    %47 = vector.shape_cast %46 : vector<1x16x1xf32> to vector<16x1xf32>
    %48 = vector.shape_cast %24 : vector<16x1xf32> to vector<1x16x1xf32>
    tpu.vector_store %arg7[%c0_26, %c0_27, %c0_28], %48 {strides = array<i32>} : memref<2x16x1xf32, #tpu.memory_space<vmem>>, vector<1x16x1xf32>,
    %c0_29 = arith.constant 0 : index
    %c0_30 = arith.constant 0 : index
    %c64 = arith.constant 64 : index
    %49 = vector.load %arg3[%c0_29, %c0_30, %c64] : memref<1x16x128xbf16, #tpu.memory_space<vmem>>, vector<1x16x64xbf16>
    %50 = vector.shape_cast %49 : vector<1x16x64xbf16> to vector<16x64xbf16>
    %c0_31 = arith.constant 0 : index
    %c0_32 = arith.constant 0 : index
    %c64_33 = arith.constant 64 : index
    %51 = vector.load %arg4[%c0_31, %c0_32, %c64_33] : memref<1x16x128xbf16, #tpu.memory_space<vmem>>, vector<1x16x64xbf16>
    %52 = vector.shape_cast %51 : vector<1x16x64xbf16> to vector<16x64xbf16>
    %c0_34 = arith.constant 0 : index
    %c0_35 = arith.constant 0 : index
    %c64_36 = arith.constant 64 : index
    %53 = vector.load %arg5[%c0_34, %c0_35, %c64_36] : memref<1x16x128xbf16, #tpu.memory_space<vmem>>, vector<1x16x64xbf16>
    %54 = vector.shape_cast %53 : vector<1x16x64xbf16> to vector<16x64xbf16>
    %cst_37 = arith.constant dense<0.000000e+00> : vector<16x16xf32>
    %55 = tpu.matmul %50, %52, %cst_37 {dimension_numbers = #tpu.dot_dimension_numbers<[1], [1], [0], [0], [0, 0, 1, 0], [], []>} : vector<16x64xbf16>, vector<16x64xbf16>, vector<16x16xf32> -> vector<16x16xf32>
    %c10_i32_38 = arith.constant 10 : i32
    %56 = vector.broadcast %c10_i32_38 : i32 to vector<1x16xi32>
    %57 = arith.cmpi slt, %6, %56 : vector<1x16xi32>
    %cst_39 = arith.constant -1.000000e+30 : f32
    %58 = vector.shape_cast %57 : vector<1x16xi1> to vector<1x16xi1>
    %59 = vector.broadcast %58 : vector<1x16xi1> to vector<16x16xi1>
    %60 = vector.broadcast %cst_39 : f32 to vector<16x16xf32>
    %61 = arith.select %59, %55, %60 : vector<16x16xi1>, vector<16x16xf32>
    %c1 = arith.constant 1 : index
    %c0_40 = arith.constant 0 : index
    %c0_41 = arith.constant 0 : index
    %62 = vector.load %arg7[%c1, %c0_40, %c0_41] : memref<2x16x1xf32, #tpu.memory_space<vmem>>, vector<1x16x1xf32>
    %63 = vector.shape_cast %62 : vector<1x16x1xf32> to vector<16x1xf32>
    %cst_42 = arith.constant dense<0xFF800000> : vector<16xf32>
    %64 = vector.multi_reduction <maximumf>, %61, %cst_42 [1] : vector<16x16xf32> to vector<16xf32>
    %65 = vector.shape_cast %64 : vector<16xf32> to vector<16x1xf32>
    %66 = arith.maximumf %63, %65 : vector<16x1xf32>
    %67 = arith.subf %63, %66 : vector<16x1xf32>
    %68 = math.exp %67 : vector<16x1xf32>
    %69 = vector.broadcast %66 : vector<16x1xf32> to vector<16x16xf32>
    %70 = arith.subf %61, %69 : vector<16x16xf32>
    %71 = math.exp %70 : vector<16x16xf32>
    %c1_43 = arith.constant 1 : index
    %c0_44 = arith.constant 0 : index
    %c0_45 = arith.constant 0 : index
    %72 = vector.load %arg8[%c1_43, %c0_44, %c0_45] : memref<2x16x1xf32, #tpu.memory_space<vmem>>, vector<1x16x1xf32>
    %73 = vector.shape_cast %72 : vector<1x16x1xf32> to vector<16x1xf32>
    %74 = arith.mulf %68, %73 : vector<16x1xf32>
    %cst_46 = arith.constant dense<0.000000e+00> : vector<16xf32>
    %75 = vector.multi_reduction <add>, %71, %cst_46 [1] : vector<16x16xf32> to vector<16xf32>
    %76 = vector.shape_cast %75 : vector<16xf32> to vector<16x1xf32>
    %77 = arith.addf %74, %76 : vector<16x1xf32>
    %c1_47 = arith.constant 1 : index
    %c0_48 = arith.constant 0 : index
    %c0_49 = arith.constant 0 : index
    %78 = vector.load %arg8[%c1_47, %c0_48, %c0_49] : memref<2x16x1xf32, #tpu.memory_space<vmem>>, vector<1x16x1xf32>
    %79 = vector.shape_cast %78 : vector<1x16x1xf32> to vector<16x1xf32>
    %80 = vector.shape_cast %77 : vector<16x1xf32> to vector<1x16x1xf32>
    tpu.vector_store %arg8[%c1_47, %c0_48, %c0_49], %80 {strides = array<i32>} : memref<2x16x1xf32, #tpu.memory_space<vmem>>, vector<1x16x1xf32>,
    %c0_50 = arith.constant 0 : index
    %c64_51 = arith.constant 64 : index
    %81 = vector.load %arg9[%c0_50, %c64_51] : memref<16x128xf32, #tpu.memory_space<vmem>>, vector<16x64xf32>
    %82 = vector.broadcast %68 : vector<16x1xf32> to vector<16x64xf32>
    %83 = arith.mulf %82, %81 : vector<16x64xf32>
    %84 = arith.truncf %71 : vector<16x16xf32> to vector<16x16xbf16>
    %cst_52 = arith.constant dense<0.000000e+00> : vector<16x64xf32>
    %85 = tpu.matmul %84, %54, %cst_52 {dimension_numbers = #tpu.dot_dimension_numbers<[1], [0], [0], [1], [0, 0, 1, 1], [], []>} : vector<16x16xbf16>, vector<16x64xbf16>, vector<16x64xf32> -> vector<16x64xf32>
    %86 = arith.addf %83, %85 : vector<16x64xf32>
    %c0_53 = arith.constant 0 : index
    %c64_54 = arith.constant 64 : index
    %87 = vector.load %arg9[%c0_53, %c64_54] : memref<16x128xf32, #tpu.memory_space<vmem>>, vector<16x64xf32>
    tpu.vector_store %arg9[%c0_53, %c64_54], %86 {strides = array<i32>} : memref<16x128xf32, #tpu.memory_space<vmem>>, vector<16x64xf32>,
    %c1_55 = arith.constant 1 : index
    %c0_56 = arith.constant 0 : index
    %c0_57 = arith.constant 0 : index
    %88 = vector.load %arg7[%c1_55, %c0_56, %c0_57] : memref<2x16x1xf32, #tpu.memory_space<vmem>>, vector<1x16x1xf32>
    %89 = vector.shape_cast %88 : vector<1x16x1xf32> to vector<16x1xf32>
    %90 = vector.shape_cast %66 : vector<16x1xf32> to vector<1x16x1xf32>
    tpu.vector_store %arg7[%c1_55, %c0_56, %c0_57], %90 {strides = array<i32>} : memref<2x16x1xf32, #tpu.memory_space<vmem>>, vector<1x16x1xf32>,
    %c0_i32_58 = arith.constant 0 : i32
    %91 = arith.cmpi eq, %arg2, %c0_i32_58 : i32
    %92 = arith.extui %91 : i1 to i32
    %c0_i32_59 = arith.constant 0 : i32
    %93 = arith.cmpi ne, %92, %c0_i32_59 : i32
    scf.if %93 {
      %c0_60 = arith.constant 0 : index
      %c0_61 = arith.constant 0 : index
      %c0_62 = arith.constant 0 : index
      %94 = vector.load %arg8[%c0_60, %c0_61, %c0_62] : memref<2x16x1xf32, #tpu.memory_space<vmem>>, vector<1x16x1xf32>
      %95 = vector.shape_cast %94 : vector<1x16x1xf32> to vector<16x1xf32>
      %96 = tpu.reciprocal %95 {approx = true} : vector<16x1xf32> -> vector<16x1xf32>
      %c0_63 = arith.constant 0 : index
      %c0_64 = arith.constant 0 : index
      %97 = vector.load %arg9[%c0_63, %c0_64] : memref<16x128xf32, #tpu.memory_space<vmem>>, vector<16x64xf32>
      %98 = vector.broadcast %96 : vector<16x1xf32> to vector<16x64xf32>
      %99 = arith.mulf %97, %98 : vector<16x64xf32>
      %c0_65 = arith.constant 0 : index
      %c0_66 = arith.constant 0 : index
      %100 = vector.load %arg9[%c0_65, %c0_66] : memref<16x128xf32, #tpu.memory_space<vmem>>, vector<16x64xf32>
      tpu.vector_store %arg9[%c0_65, %c0_66], %99 {strides = array<i32>} : memref<16x128xf32, #tpu.memory_space<vmem>>, vector<16x64xf32>,
      %c1_67 = arith.constant 1 : index
      %c0_68 = arith.constant 0 : index
      %c0_69 = arith.constant 0 : index
      %101 = vector.load %arg8[%c1_67, %c0_68, %c0_69] : memref<2x16x1xf32, #tpu.memory_space<vmem>>, vector<1x16x1xf32>
      %102 = vector.shape_cast %101 : vector<1x16x1xf32> to vector<16x1xf32>
      %103 = tpu.reciprocal %102 {approx = true} : vector<16x1xf32> -> vector<16x1xf32>
      %c0_70 = arith.constant 0 : index
      %c64_71 = arith.constant 64 : index
      %104 = vector.load %arg9[%c0_70, %c64_71] : memref<16x128xf32, #tpu.memory_space<vmem>>, vector<16x64xf32>
      %105 = vector.broadcast %103 : vector<16x1xf32> to vector<16x64xf32>
      %106 = arith.mulf %104, %105 : vector<16x64xf32>
      %c0_72 = arith.constant 0 : index
      %c64_73 = arith.constant 64 : index
      %107 = vector.load %arg9[%c0_72, %c64_73] : memref<16x128xf32, #tpu.memory_space<vmem>>, vector<16x64xf32>
      tpu.vector_store %arg9[%c0_72, %c64_73], %106 {strides = array<i32>} : memref<16x128xf32, #tpu.memory_space<vmem>>, vector<16x64xf32>,
      %c0_74 = arith.constant 0 : index
      %c0_75 = arith.constant 0 : index
      %108 = vector.load %arg9[%c0_74, %c0_75] : memref<16x128xf32, #tpu.memory_space<vmem>>, vector<16x128xf32>
      %109 = arith.truncf %108 : vector<16x128xf32> to vector<16x128xbf16>
      %c0_76 = arith.constant 0 : index
      %c0_77 = arith.constant 0 : index
      %c0_78 = arith.constant 0 : index
      %110 = vector.load %arg6[%c0_76, %c0_77, %c0_78] : memref<1x16x128xbf16, #tpu.memory_space<vmem>>, vector<1x16x128xbf16>
      %111 = vector.shape_cast %110 : vector<1x16x128xbf16> to vector<16x128xbf16>
      %112 = vector.shape_cast %109 : vector<16x128xbf16> to vector<1x16x128xbf16>
      tpu.vector_store %arg6[%c0_76, %c0_77, %c0_78], %112 {strides = array<i32>} : memref<1x16x128xbf16, #tpu.memory_space<vmem>>, vector<1x16x128xbf16>,
    } else {
    }
    return
  }
  func.func @transform_0(%arg0: i32, %arg1: i32, %arg2: i32) -> (i32, i32, i32) {
    %c0_i32 = arith.constant 0 : i32
    %c0_i32_0 = arith.constant 0 : i32
    return %arg0, %c0_i32, %arg1 : i32, i32, i32
  }
  func.func @transform_1(%arg0: i32, %arg1: i32, %arg2: i32) -> (i32, i32, i32) {
    %c1_i32 = arith.constant 1 : i32
    %0 = arith.addi %c1_i32, %arg1 : i32
    %c0_i32 = arith.constant 0 : i32
    return %arg0, %arg2, %0 : i32, i32, i32
  }
  func.func @transform_2(%arg0: i32, %arg1: i32, %arg2: i32) -> (i32, i32, i32) {
    %c2_i32 = arith.constant 2 : i32
    %0 = arith.addi %c2_i32, %arg1 : i32
    %c0_i32 = arith.constant 0 : i32
    return %arg0, %arg2, %0 : i32, i32, i32
  }
  func.func @transform_3(%arg0: i32, %arg1: i32, %arg2: i32) -> (i32, i32, i32) {
    %c0_i32 = arith.constant 0 : i32
    %c0_i32_0 = arith.constant 0 : i32
    return %arg0, %c0_i32, %arg1 : i32, i32, i32
  }
}

module attributes {stable_mosaic.version = 11 : i64} {
  func.func @_linear_kernel(%arg0: i32, %arg1: i32, %arg2: i32, %arg3: memref<24x128xbf16, #tpu.memory_space<vmem>>, %arg4: memref<128x384xbf16, #tpu.memory_space<vmem>>, %arg5: memref<1x384xbf16, #tpu.memory_space<vmem>>, %arg6: memref<1x128xbf16, #tpu.memory_space<vmem>>, %arg7: memref<1x128xbf16, #tpu.memory_space<vmem>>, %arg8: memref<24x384xbf16, #tpu.memory_space<vmem>>, %arg9: memref<24x384xf32, #tpu.memory_space<vmem>>, %arg10: memref<24x128xbf16, #tpu.memory_space<vmem>>) attributes {dimension_semantics = [#tpu.dimension_semantics<parallel>, #tpu.dimension_semantics<arbitrary>, #tpu.dimension_semantics<arbitrary>], iteration_bounds = array<i64: 1, 1, 1>, scalar_prefetch = 0 : i64, scratch_operands = 2 : i64, tpu.core_type = #tpu.core_type<tc>, window_params = [{transform_indices = @transform_0, window_bounds = array<i64: 24, 128>}, {transform_indices = @transform_1, window_bounds = array<i64: 128, 384>}, {transform_indices = @transform_2, window_bounds = array<i64: 1, 384>}, {transform_indices = @transform_3, window_bounds = array<i64: 1, 128>}, {transform_indices = @transform_4, window_bounds = array<i64: 1, 128>}, {transform_indices = @transform_5, window_bounds = array<i64: 24, 384>}]} {
    %c0_i32 = arith.constant 0 : i32
    %0 = arith.cmpi eq, %arg2, %c0_i32 : i32
    %1 = arith.extui %0 : i1 to i32
    %c0_i32_0 = arith.constant 0 : i32
    %2 = arith.cmpi ne, %1, %c0_i32_0 : i32
    scf.if %2 {
      %cst_12 = arith.constant 0.000000e+00 : f32
      %15 = vector.broadcast %cst_12 : f32 to vector<24x384xf32>
      %c0_13 = arith.constant 0 : index
      %c0_14 = arith.constant 0 : index
      %16 = vector.load %arg9[%c0_13, %c0_14] : memref<24x384xf32, #tpu.memory_space<vmem>>, vector<24x384xf32>
      tpu.vector_store %arg9[%c0_13, %c0_14], %15 {strides = array<i32>} : memref<24x384xf32, #tpu.memory_space<vmem>>, vector<24x384xf32>,
    } else {
    }
    %c0_i32_1 = arith.constant 0 : i32
    %3 = arith.cmpi eq, %arg1, %c0_i32_1 : i32
    %4 = arith.extui %3 : i1 to i32
    %c0_i32_2 = arith.constant 0 : i32
    %5 = arith.cmpi ne, %4, %c0_i32_2 : i32
    scf.if %5 {
      %c0_12 = arith.constant 0 : index
      %c0_13 = arith.constant 0 : index
      %15 = vector.load %arg3[%c0_12, %c0_13] : memref<24x128xbf16, #tpu.memory_space<vmem>>, vector<24x128xbf16>
      %16 = arith.extf %15 : vector<24x128xbf16> to vector<24x128xf32>
      %cst_14 = arith.constant dense<0.000000e+00> : vector<24xf32>
      %17 = vector.multi_reduction <add>, %16, %cst_14 [1] : vector<24x128xf32> to vector<24xf32>
      %18 = vector.shape_cast %17 : vector<24xf32> to vector<24x1xf32>
      %cst_15 = arith.constant 1.280000e+02 : f32
      %19 = vector.broadcast %cst_15 : f32 to vector<24x1xf32>
      %20 = arith.divf %18, %19 : vector<24x1xf32>
      %21 = vector.broadcast %20 : vector<24x1xf32> to vector<24x128xf32>
      %22 = arith.subf %16, %21 : vector<24x128xf32>
      %23 = arith.mulf %22, %22 : vector<24x128xf32>
      %cst_16 = arith.constant dense<0.000000e+00> : vector<24xf32>
      %24 = vector.multi_reduction <add>, %23, %cst_16 [1] : vector<24x128xf32> to vector<24xf32>
      %25 = vector.shape_cast %24 : vector<24xf32> to vector<24x1xf32>
      %cst_17 = arith.constant 1.280000e+02 : f32
      %26 = vector.broadcast %cst_17 : f32 to vector<24x1xf32>
      %27 = arith.divf %25, %26 : vector<24x1xf32>
      %28 = vector.broadcast %20 : vector<24x1xf32> to vector<24x128xf32>
      %29 = arith.subf %16, %28 : vector<24x128xf32>
      %cst_18 = arith.constant 9.99999997E-7 : f32
      %30 = vector.broadcast %cst_18 : f32 to vector<24x1xf32>
      %31 = arith.addf %27, %30 : vector<24x1xf32>
      %32 = math.rsqrt %31 : vector<24x1xf32>
      %33 = vector.broadcast %32 : vector<24x1xf32> to vector<24x128xf32>
      %34 = arith.mulf %29, %33 : vector<24x128xf32>
      %c0_19 = arith.constant 0 : index
      %c0_20 = arith.constant 0 : index
      %35 = vector.load %arg6[%c0_19, %c0_20] : memref<1x128xbf16, #tpu.memory_space<vmem>>, vector<1x128xbf16>
      %36 = arith.extf %35 : vector<1x128xbf16> to vector<1x128xf32>
      %37 = vector.broadcast %36 : vector<1x128xf32> to vector<24x128xf32>
      %38 = arith.mulf %34, %37 : vector<24x128xf32>
      %c0_21 = arith.constant 0 : index
      %c0_22 = arith.constant 0 : index
      %39 = vector.load %arg7[%c0_21, %c0_22] : memref<1x128xbf16, #tpu.memory_space<vmem>>, vector<1x128xbf16>
      %40 = arith.extf %39 : vector<1x128xbf16> to vector<1x128xf32>
      %41 = vector.broadcast %40 : vector<1x128xf32> to vector<24x128xf32>
      %42 = arith.addf %38, %41 : vector<24x128xf32>
      %43 = arith.truncf %42 : vector<24x128xf32> to vector<24x128xbf16>
      %c0_23 = arith.constant 0 : index
      %c0_24 = arith.constant 0 : index
      %44 = vector.load %arg10[%c0_23, %c0_24] : memref<24x128xbf16, #tpu.memory_space<vmem>>, vector<24x128xbf16>
      tpu.vector_store %arg10[%c0_23, %c0_24], %43 {strides = array<i32>} : memref<24x128xbf16, #tpu.memory_space<vmem>>, vector<24x128xbf16>,
    } else {
    }
    %c0 = arith.constant 0 : index
    %c0_3 = arith.constant 0 : index
    %6 = vector.load %arg10[%c0, %c0_3] : memref<24x128xbf16, #tpu.memory_space<vmem>>, vector<24x128xbf16>
    %c0_4 = arith.constant 0 : index
    %c0_5 = arith.constant 0 : index
    %7 = vector.load %arg9[%c0_4, %c0_5] : memref<24x384xf32, #tpu.memory_space<vmem>>, vector<24x384xf32>
    %c0_6 = arith.constant 0 : index
    %c0_7 = arith.constant 0 : index
    %8 = vector.load %arg4[%c0_6, %c0_7] : memref<128x384xbf16, #tpu.memory_space<vmem>>, vector<128x384xbf16>
    %cst = arith.constant dense<0.000000e+00> : vector<24x384xf32>
    %9 = tpu.matmul %6, %8, %cst {dimension_numbers = #tpu.dot_dimension_numbers<[1], [0], [0], [1], [0, 0, 1, 1], [], []>} : vector<24x128xbf16>, vector<128x384xbf16>, vector<24x384xf32> -> vector<24x384xf32>
    %10 = arith.addf %7, %9 : vector<24x384xf32>
    %c0_8 = arith.constant 0 : index
    %c0_9 = arith.constant 0 : index
    %11 = vector.load %arg9[%c0_8, %c0_9] : memref<24x384xf32, #tpu.memory_space<vmem>>, vector<24x384xf32>
    tpu.vector_store %arg9[%c0_8, %c0_9], %10 {strides = array<i32>} : memref<24x384xf32, #tpu.memory_space<vmem>>, vector<24x384xf32>,
    %c0_i32_10 = arith.constant 0 : i32
    %12 = arith.cmpi eq, %arg2, %c0_i32_10 : i32
    %13 = arith.extui %12 : i1 to i32
    %c0_i32_11 = arith.constant 0 : i32
    %14 = arith.cmpi ne, %13, %c0_i32_11 : i32
    scf.if %14 {
      %c0_12 = arith.constant 0 : index
      %c0_13 = arith.constant 0 : index
      %15 = vector.load %arg9[%c0_12, %c0_13] : memref<24x384xf32, #tpu.memory_space<vmem>>, vector<24x384xf32>
      %c0_14 = arith.constant 0 : index
      %c0_15 = arith.constant 0 : index
      %16 = vector.load %arg5[%c0_14, %c0_15] : memref<1x384xbf16, #tpu.memory_space<vmem>>, vector<1x384xbf16>
      %17 = arith.extf %16 : vector<1x384xbf16> to vector<1x384xf32>
      %18 = vector.broadcast %17 : vector<1x384xf32> to vector<24x384xf32>
      %19 = arith.addf %15, %18 : vector<24x384xf32>
      %20 = arith.truncf %19 : vector<24x384xf32> to vector<24x384xbf16>
      %c0_16 = arith.constant 0 : index
      %c0_17 = arith.constant 0 : index
      %21 = vector.load %arg8[%c0_16, %c0_17] : memref<24x384xbf16, #tpu.memory_space<vmem>>, vector<24x384xbf16>
      tpu.vector_store %arg8[%c0_16, %c0_17], %20 {strides = array<i32>} : memref<24x384xbf16, #tpu.memory_space<vmem>>, vector<24x384xbf16>,
    } else {
    }
    return
  }
  func.func @transform_0(%arg0: i32, %arg1: i32, %arg2: i32) -> (i32, i32) {
    %c0_i32 = arith.constant 0 : i32
    return %arg0, %arg2 : i32, i32
  }
  func.func @transform_1(%arg0: i32, %arg1: i32, %arg2: i32) -> (i32, i32) {
    %c0_i32 = arith.constant 0 : i32
    return %arg2, %arg1 : i32, i32
  }
  func.func @transform_2(%arg0: i32, %arg1: i32, %arg2: i32) -> (i32, i32) {
    %c0_i32 = arith.constant 0 : i32
    %c0_i32_0 = arith.constant 0 : i32
    return %c0_i32, %arg1 : i32, i32
  }
  func.func @transform_3(%arg0: i32, %arg1: i32, %arg2: i32) -> (i32, i32) {
    %c0_i32 = arith.constant 0 : i32
    %c0_i32_0 = arith.constant 0 : i32
    return %c0_i32, %arg2 : i32, i32
  }
  func.func @transform_4(%arg0: i32, %arg1: i32, %arg2: i32) -> (i32, i32) {
    %c0_i32 = arith.constant 0 : i32
    %c0_i32_0 = arith.constant 0 : i32
    return %c0_i32, %arg2 : i32, i32
  }
  func.func @transform_5(%arg0: i32, %arg1: i32, %arg2: i32) -> (i32, i32) {
    %c0_i32 = arith.constant 0 : i32
    return %arg0, %arg1 : i32, i32
  }
}

module attributes {stable_mosaic.version = 11 : i64} {
  func.func @_linear_kernel(%arg0: i32, %arg1: i32, %arg2: i32, %arg3: memref<24x128xbf16, #tpu.memory_space<vmem>>, %arg4: memref<128x128xbf16, #tpu.memory_space<vmem>>, %arg5: memref<1x128xbf16, #tpu.memory_space<vmem>>, %arg6: memref<24x128xbf16, #tpu.memory_space<vmem>>, %arg7: memref<24x128xbf16, #tpu.memory_space<vmem>>, %arg8: memref<24x128xf32, #tpu.memory_space<vmem>>) attributes {dimension_semantics = [#tpu.dimension_semantics<parallel>, #tpu.dimension_semantics<parallel>, #tpu.dimension_semantics<arbitrary>], iteration_bounds = array<i64: 1, 1, 1>, scalar_prefetch = 0 : i64, scratch_operands = 1 : i64, tpu.core_type = #tpu.core_type<tc>, window_params = [{transform_indices = @transform_0, window_bounds = array<i64: 24, 128>}, {transform_indices = @transform_1, window_bounds = array<i64: 128, 128>}, {transform_indices = @transform_2, window_bounds = array<i64: 1, 128>}, {transform_indices = @transform_3, window_bounds = array<i64: 24, 128>}, {transform_indices = @transform_4, window_bounds = array<i64: 24, 128>}]} {
    %c0_i32 = arith.constant 0 : i32
    %0 = arith.cmpi eq, %arg2, %c0_i32 : i32
    %1 = arith.extui %0 : i1 to i32
    %c0_i32_0 = arith.constant 0 : i32
    %2 = arith.cmpi ne, %1, %c0_i32_0 : i32
    scf.if %2 {
      %cst_10 = arith.constant 0.000000e+00 : f32
      %12 = vector.broadcast %cst_10 : f32 to vector<24x128xf32>
      %c0_11 = arith.constant 0 : index
      %c0_12 = arith.constant 0 : index
      %13 = vector.load %arg8[%c0_11, %c0_12] : memref<24x128xf32, #tpu.memory_space<vmem>>, vector<24x128xf32>
      tpu.vector_store %arg8[%c0_11, %c0_12], %12 {strides = array<i32>} : memref<24x128xf32, #tpu.memory_space<vmem>>, vector<24x128xf32>,
    } else {
    }
    %c0 = arith.constant 0 : index
    %c0_1 = arith.constant 0 : index
    %3 = vector.load %arg3[%c0, %c0_1] : memref<24x128xbf16, #tpu.memory_space<vmem>>, vector<24x128xbf16>
    %c0_2 = arith.constant 0 : index
    %c0_3 = arith.constant 0 : index
    %4 = vector.load %arg8[%c0_2, %c0_3] : memref<24x128xf32, #tpu.memory_space<vmem>>, vector<24x128xf32>
    %c0_4 = arith.constant 0 : index
    %c0_5 = arith.constant 0 : index
    %5 = vector.load %arg4[%c0_4, %c0_5] : memref<128x128xbf16, #tpu.memory_space<vmem>>, vector<128x128xbf16>
    %cst = arith.constant dense<0.000000e+00> : vector<24x128xf32>
    %6 = tpu.matmul %3, %5, %cst {dimension_numbers = #tpu.dot_dimension_numbers<[1], [0], [0], [1], [0, 0, 1, 1], [], []>} : vector<24x128xbf16>, vector<128x128xbf16>, vector<24x128xf32> -> vector<24x128xf32>
    %7 = arith.addf %4, %6 : vector<24x128xf32>
    %c0_6 = arith.constant 0 : index
    %c0_7 = arith.constant 0 : index
    %8 = vector.load %arg8[%c0_6, %c0_7] : memref<24x128xf32, #tpu.memory_space<vmem>>, vector<24x128xf32>
    tpu.vector_store %arg8[%c0_6, %c0_7], %7 {strides = array<i32>} : memref<24x128xf32, #tpu.memory_space<vmem>>, vector<24x128xf32>,
    %c0_i32_8 = arith.constant 0 : i32
    %9 = arith.cmpi eq, %arg2, %c0_i32_8 : i32
    %10 = arith.extui %9 : i1 to i32
    %c0_i32_9 = arith.constant 0 : i32
    %11 = arith.cmpi ne, %10, %c0_i32_9 : i32
    scf.if %11 {
      %c0_10 = arith.constant 0 : index
      %c0_11 = arith.constant 0 : index
      %12 = vector.load %arg8[%c0_10, %c0_11] : memref<24x128xf32, #tpu.memory_space<vmem>>, vector<24x128xf32>
      %c0_12 = arith.constant 0 : index
      %c0_13 = arith.constant 0 : index
      %13 = vector.load %arg5[%c0_12, %c0_13] : memref<1x128xbf16, #tpu.memory_space<vmem>>, vector<1x128xbf16>
      %14 = arith.extf %13 : vector<1x128xbf16> to vector<1x128xf32>
      %15 = vector.broadcast %14 : vector<1x128xf32> to vector<24x128xf32>
      %16 = arith.addf %12, %15 : vector<24x128xf32>
      %c0_14 = arith.constant 0 : index
      %c0_15 = arith.constant 0 : index
      %17 = vector.load %arg6[%c0_14, %c0_15] : memref<24x128xbf16, #tpu.memory_space<vmem>>, vector<24x128xbf16>
      %18 = arith.extf %17 : vector<24x128xbf16> to vector<24x128xf32>
      %19 = arith.addf %16, %18 : vector<24x128xf32>
      %20 = arith.truncf %19 : vector<24x128xf32> to vector<24x128xbf16>
      %c0_16 = arith.constant 0 : index
      %c0_17 = arith.constant 0 : index
      %21 = vector.load %arg7[%c0_16, %c0_17] : memref<24x128xbf16, #tpu.memory_space<vmem>>, vector<24x128xbf16>
      tpu.vector_store %arg7[%c0_16, %c0_17], %20 {strides = array<i32>} : memref<24x128xbf16, #tpu.memory_space<vmem>>, vector<24x128xbf16>,
    } else {
    }
    return
  }
  func.func @transform_0(%arg0: i32, %arg1: i32, %arg2: i32) -> (i32, i32) {
    %c0_i32 = arith.constant 0 : i32
    return %arg0, %arg2 : i32, i32
  }
  func.func @transform_1(%arg0: i32, %arg1: i32, %arg2: i32) -> (i32, i32) {
    %c0_i32 = arith.constant 0 : i32
    return %arg2, %arg1 : i32, i32
  }
  func.func @transform_2(%arg0: i32, %arg1: i32, %arg2: i32) -> (i32, i32) {
    %c0_i32 = arith.constant 0 : i32
    %c0_i32_0 = arith.constant 0 : i32
    return %c0_i32, %arg1 : i32, i32
  }
  func.func @transform_3(%arg0: i32, %arg1: i32, %arg2: i32) -> (i32, i32) {
    %c0_i32 = arith.constant 0 : i32
    return %arg0, %arg1 : i32, i32
  }
  func.func @transform_4(%arg0: i32, %arg1: i32, %arg2: i32) -> (i32, i32) {
    %c0_i32 = arith.constant 0 : i32
    return %arg0, %arg1 : i32, i32
  }
}

module attributes {stable_mosaic.version = 11 : i64} {
  func.func @_linear_kernel(%arg0: i32, %arg1: i32, %arg2: i32, %arg3: memref<24x512xbf16, #tpu.memory_space<vmem>>, %arg4: memref<512x128xbf16, #tpu.memory_space<vmem>>, %arg5: memref<1x128xbf16, #tpu.memory_space<vmem>>, %arg6: memref<24x128xbf16, #tpu.memory_space<vmem>>, %arg7: memref<24x128xbf16, #tpu.memory_space<vmem>>, %arg8: memref<24x128xf32, #tpu.memory_space<vmem>>) attributes {dimension_semantics = [#tpu.dimension_semantics<parallel>, #tpu.dimension_semantics<parallel>, #tpu.dimension_semantics<arbitrary>], iteration_bounds = array<i64: 1, 1, 1>, scalar_prefetch = 0 : i64, scratch_operands = 1 : i64, tpu.core_type = #tpu.core_type<tc>, window_params = [{transform_indices = @transform_0, window_bounds = array<i64: 24, 512>}, {transform_indices = @transform_1, window_bounds = array<i64: 512, 128>}, {transform_indices = @transform_2, window_bounds = array<i64: 1, 128>}, {transform_indices = @transform_3, window_bounds = array<i64: 24, 128>}, {transform_indices = @transform_4, window_bounds = array<i64: 24, 128>}]} {
    %c0_i32 = arith.constant 0 : i32
    %0 = arith.cmpi eq, %arg2, %c0_i32 : i32
    %1 = arith.extui %0 : i1 to i32
    %c0_i32_0 = arith.constant 0 : i32
    %2 = arith.cmpi ne, %1, %c0_i32_0 : i32
    scf.if %2 {
      %cst_10 = arith.constant 0.000000e+00 : f32
      %12 = vector.broadcast %cst_10 : f32 to vector<24x128xf32>
      %c0_11 = arith.constant 0 : index
      %c0_12 = arith.constant 0 : index
      %13 = vector.load %arg8[%c0_11, %c0_12] : memref<24x128xf32, #tpu.memory_space<vmem>>, vector<24x128xf32>
      tpu.vector_store %arg8[%c0_11, %c0_12], %12 {strides = array<i32>} : memref<24x128xf32, #tpu.memory_space<vmem>>, vector<24x128xf32>,
    } else {
    }
    %c0 = arith.constant 0 : index
    %c0_1 = arith.constant 0 : index
    %3 = vector.load %arg3[%c0, %c0_1] : memref<24x512xbf16, #tpu.memory_space<vmem>>, vector<24x512xbf16>
    %c0_2 = arith.constant 0 : index
    %c0_3 = arith.constant 0 : index
    %4 = vector.load %arg8[%c0_2, %c0_3] : memref<24x128xf32, #tpu.memory_space<vmem>>, vector<24x128xf32>
    %c0_4 = arith.constant 0 : index
    %c0_5 = arith.constant 0 : index
    %5 = vector.load %arg4[%c0_4, %c0_5] : memref<512x128xbf16, #tpu.memory_space<vmem>>, vector<512x128xbf16>
    %cst = arith.constant dense<0.000000e+00> : vector<24x128xf32>
    %6 = tpu.matmul %3, %5, %cst {dimension_numbers = #tpu.dot_dimension_numbers<[1], [0], [0], [1], [0, 0, 1, 1], [], []>} : vector<24x512xbf16>, vector<512x128xbf16>, vector<24x128xf32> -> vector<24x128xf32>
    %7 = arith.addf %4, %6 : vector<24x128xf32>
    %c0_6 = arith.constant 0 : index
    %c0_7 = arith.constant 0 : index
    %8 = vector.load %arg8[%c0_6, %c0_7] : memref<24x128xf32, #tpu.memory_space<vmem>>, vector<24x128xf32>
    tpu.vector_store %arg8[%c0_6, %c0_7], %7 {strides = array<i32>} : memref<24x128xf32, #tpu.memory_space<vmem>>, vector<24x128xf32>,
    %c0_i32_8 = arith.constant 0 : i32
    %9 = arith.cmpi eq, %arg2, %c0_i32_8 : i32
    %10 = arith.extui %9 : i1 to i32
    %c0_i32_9 = arith.constant 0 : i32
    %11 = arith.cmpi ne, %10, %c0_i32_9 : i32
    scf.if %11 {
      %c0_10 = arith.constant 0 : index
      %c0_11 = arith.constant 0 : index
      %12 = vector.load %arg8[%c0_10, %c0_11] : memref<24x128xf32, #tpu.memory_space<vmem>>, vector<24x128xf32>
      %c0_12 = arith.constant 0 : index
      %c0_13 = arith.constant 0 : index
      %13 = vector.load %arg5[%c0_12, %c0_13] : memref<1x128xbf16, #tpu.memory_space<vmem>>, vector<1x128xbf16>
      %14 = arith.extf %13 : vector<1x128xbf16> to vector<1x128xf32>
      %15 = vector.broadcast %14 : vector<1x128xf32> to vector<24x128xf32>
      %16 = arith.addf %12, %15 : vector<24x128xf32>
      %c0_14 = arith.constant 0 : index
      %c0_15 = arith.constant 0 : index
      %17 = vector.load %arg6[%c0_14, %c0_15] : memref<24x128xbf16, #tpu.memory_space<vmem>>, vector<24x128xbf16>
      %18 = arith.extf %17 : vector<24x128xbf16> to vector<24x128xf32>
      %19 = arith.addf %16, %18 : vector<24x128xf32>
      %20 = arith.truncf %19 : vector<24x128xf32> to vector<24x128xbf16>
      %c0_16 = arith.constant 0 : index
      %c0_17 = arith.constant 0 : index
      %21 = vector.load %arg7[%c0_16, %c0_17] : memref<24x128xbf16, #tpu.memory_space<vmem>>, vector<24x128xbf16>
      tpu.vector_store %arg7[%c0_16, %c0_17], %20 {strides = array<i32>} : memref<24x128xbf16, #tpu.memory_space<vmem>>, vector<24x128xbf16>,
    } else {
    }
    return
  }
  func.func @transform_0(%arg0: i32, %arg1: i32, %arg2: i32) -> (i32, i32) {
    %c0_i32 = arith.constant 0 : i32
    return %arg0, %arg2 : i32, i32
  }
  func.func @transform_1(%arg0: i32, %arg1: i32, %arg2: i32) -> (i32, i32) {
    %c0_i32 = arith.constant 0 : i32
    return %arg2, %arg1 : i32, i32
  }
  func.func @transform_2(%arg0: i32, %arg1: i32, %arg2: i32) -> (i32, i32) {
    %c0_i32 = arith.constant 0 : i32
    %c0_i32_0 = arith.constant 0 : i32
    return %c0_i32, %arg1 : i32, i32
  }
  func.func @transform_3(%arg0: i32, %arg1: i32, %arg2: i32) -> (i32, i32) {
    %c0_i32 = arith.constant 0 : i32
    return %arg0, %arg1 : i32, i32
  }
  func.func @transform_4(%arg0: i32, %arg1: i32, %arg2: i32) -> (i32, i32) {
    %c0_i32 = arith.constant 0 : i32
    return %arg0, %arg1 : i32, i32
  }
}

module attributes {stable_mosaic.version = 11 : i64} {
  func.func @_layernorm_kernel(%arg0: i32, %arg1: memref<24x128xbf16, #tpu.memory_space<vmem>>, %arg2: memref<1x128xbf16, #tpu.memory_space<vmem>>, %arg3: memref<1x128xbf16, #tpu.memory_space<vmem>>, %arg4: memref<24x128xbf16, #tpu.memory_space<vmem>>) attributes {dimension_semantics = [#tpu.dimension_semantics<parallel>], iteration_bounds = array<i64: 1>, scalar_prefetch = 0 : i64, scratch_operands = 0 : i64, tpu.core_type = #tpu.core_type<tc>, window_params = [{transform_indices = @transform_0, window_bounds = array<i64: 24, 128>}, {pipeline_mode = #tpu.pipeline_mode<synchronous>, transform_indices = @transform_1, window_bounds = array<i64: 1, 128>}, {pipeline_mode = #tpu.pipeline_mode<synchronous>, transform_indices = @transform_2, window_bounds = array<i64: 1, 128>}, {transform_indices = @transform_3, window_bounds = array<i64: 24, 128>}]} {
    %c0 = arith.constant 0 : index
    %c0_0 = arith.constant 0 : index
    %0 = vector.load %arg1[%c0, %c0_0] : memref<24x128xbf16, #tpu.memory_space<vmem>>, vector<24x128xbf16>
    %1 = arith.extf %0 : vector<24x128xbf16> to vector<24x128xf32>
    %cst = arith.constant dense<0.000000e+00> : vector<24xf32>
    %2 = vector.multi_reduction <add>, %1, %cst [1] : vector<24x128xf32> to vector<24xf32>
    %3 = vector.shape_cast %2 : vector<24xf32> to vector<24x1xf32>
    %cst_1 = arith.constant 1.280000e+02 : f32
    %4 = vector.broadcast %cst_1 : f32 to vector<24x1xf32>
    %5 = arith.divf %3, %4 : vector<24x1xf32>
    %6 = vector.broadcast %5 : vector<24x1xf32> to vector<24x128xf32>
    %7 = arith.subf %1, %6 : vector<24x128xf32>
    %8 = arith.mulf %7, %7 : vector<24x128xf32>
    %cst_2 = arith.constant dense<0.000000e+00> : vector<24xf32>
    %9 = vector.multi_reduction <add>, %8, %cst_2 [1] : vector<24x128xf32> to vector<24xf32>
    %10 = vector.shape_cast %9 : vector<24xf32> to vector<24x1xf32>
    %cst_3 = arith.constant 1.280000e+02 : f32
    %11 = vector.broadcast %cst_3 : f32 to vector<24x1xf32>
    %12 = arith.divf %10, %11 : vector<24x1xf32>
    %13 = vector.broadcast %5 : vector<24x1xf32> to vector<24x128xf32>
    %14 = arith.subf %1, %13 : vector<24x128xf32>
    %cst_4 = arith.constant 9.99999997E-7 : f32
    %15 = vector.broadcast %cst_4 : f32 to vector<24x1xf32>
    %16 = arith.addf %12, %15 : vector<24x1xf32>
    %17 = math.rsqrt %16 : vector<24x1xf32>
    %18 = vector.broadcast %17 : vector<24x1xf32> to vector<24x128xf32>
    %19 = arith.mulf %14, %18 : vector<24x128xf32>
    %c0_5 = arith.constant 0 : index
    %c0_6 = arith.constant 0 : index
    %20 = vector.load %arg2[%c0_5, %c0_6] : memref<1x128xbf16, #tpu.memory_space<vmem>>, vector<1x128xbf16>
    %21 = arith.extf %20 : vector<1x128xbf16> to vector<1x128xf32>
    %22 = vector.broadcast %21 : vector<1x128xf32> to vector<24x128xf32>
    %23 = arith.mulf %19, %22 : vector<24x128xf32>
    %c0_7 = arith.constant 0 : index
    %c0_8 = arith.constant 0 : index
    %24 = vector.load %arg3[%c0_7, %c0_8] : memref<1x128xbf16, #tpu.memory_space<vmem>>, vector<1x128xbf16>
    %25 = arith.extf %24 : vector<1x128xbf16> to vector<1x128xf32>
    %26 = vector.broadcast %25 : vector<1x128xf32> to vector<24x128xf32>
    %27 = arith.addf %23, %26 : vector<24x128xf32>
    %28 = arith.truncf %27 : vector<24x128xf32> to vector<24x128xbf16>
    %c0_9 = arith.constant 0 : index
    %c0_10 = arith.constant 0 : index
    %29 = vector.load %arg4[%c0_9, %c0_10] : memref<24x128xbf16, #tpu.memory_space<vmem>>, vector<24x128xbf16>
    tpu.vector_store %arg4[%c0_9, %c0_10], %28 {strides = array<i32>} : memref<24x128xbf16, #tpu.memory_space<vmem>>, vector<24x128xbf16>,
    return
  }
  func.func @transform_0(%arg0: i32) -> (i32, i32) {
    %c0_i32 = arith.constant 0 : i32
    %c0_i32_0 = arith.constant 0 : i32
    return %arg0, %c0_i32 : i32, i32
  }
  func.func @transform_1(%arg0: i32) -> (i32, i32) {
    %c0_i32 = arith.constant 0 : i32
    %c0_i32_0 = arith.constant 0 : i32
    %c0_i32_1 = arith.constant 0 : i32
    return %c0_i32, %c0_i32_0 : i32, i32
  }
  func.func @transform_2(%arg0: i32) -> (i32, i32) {
    %c0_i32 = arith.constant 0 : i32
    %c0_i32_0 = arith.constant 0 : i32
    %c0_i32_1 = arith.constant 0 : i32
    return %c0_i32, %c0_i32_0 : i32, i32
  }
  func.func @transform_3(%arg0: i32) -> (i32, i32) {
    %c0_i32 = arith.constant 0 : i32
    %c0_i32_0 = arith.constant 0 : i32
    return %arg0, %c0_i32 : i32, i32
  }
}

module attributes {stable_mosaic.version = 11 : i64} {
  func.func @_linear_kernel(%arg0: i32, %arg1: i32, %arg2: i32, %arg3: memref<24x128xbf16, #tpu.memory_space<vmem>>, %arg4: memref<128x512xbf16, #tpu.memory_space<vmem>>, %arg5: memref<1x512xbf16, #tpu.memory_space<vmem>>, %arg6: memref<1x128xbf16, #tpu.memory_space<vmem>>, %arg7: memref<1x128xbf16, #tpu.memory_space<vmem>>, %arg8: memref<24x512xbf16, #tpu.memory_space<vmem>>, %arg9: memref<24x512xf32, #tpu.memory_space<vmem>>, %arg10: memref<24x128xbf16, #tpu.memory_space<vmem>>) attributes {dimension_semantics = [#tpu.dimension_semantics<parallel>, #tpu.dimension_semantics<arbitrary>, #tpu.dimension_semantics<arbitrary>], iteration_bounds = array<i64: 1, 1, 1>, scalar_prefetch = 0 : i64, scratch_operands = 2 : i64, tpu.core_type = #tpu.core_type<tc>, window_params = [{transform_indices = @transform_0, window_bounds = array<i64: 24, 128>}, {transform_indices = @transform_1, window_bounds = array<i64: 128, 512>}, {transform_indices = @transform_2, window_bounds = array<i64: 1, 512>}, {transform_indices = @transform_3, window_bounds = array<i64: 1, 128>}, {transform_indices = @transform_4, window_bounds = array<i64: 1, 128>}, {transform_indices = @transform_5, window_bounds = array<i64: 24, 512>}]} {
    %c0_i32 = arith.constant 0 : i32
    %0 = arith.cmpi eq, %arg2, %c0_i32 : i32
    %1 = arith.extui %0 : i1 to i32
    %c0_i32_0 = arith.constant 0 : i32
    %2 = arith.cmpi ne, %1, %c0_i32_0 : i32
    scf.if %2 {
      %cst_12 = arith.constant 0.000000e+00 : f32
      %15 = vector.broadcast %cst_12 : f32 to vector<24x512xf32>
      %c0_13 = arith.constant 0 : index
      %c0_14 = arith.constant 0 : index
      %16 = vector.load %arg9[%c0_13, %c0_14] : memref<24x512xf32, #tpu.memory_space<vmem>>, vector<24x512xf32>
      tpu.vector_store %arg9[%c0_13, %c0_14], %15 {strides = array<i32>} : memref<24x512xf32, #tpu.memory_space<vmem>>, vector<24x512xf32>,
    } else {
    }
    %c0_i32_1 = arith.constant 0 : i32
    %3 = arith.cmpi eq, %arg1, %c0_i32_1 : i32
    %4 = arith.extui %3 : i1 to i32
    %c0_i32_2 = arith.constant 0 : i32
    %5 = arith.cmpi ne, %4, %c0_i32_2 : i32
    scf.if %5 {
      %c0_12 = arith.constant 0 : index
      %c0_13 = arith.constant 0 : index
      %15 = vector.load %arg3[%c0_12, %c0_13] : memref<24x128xbf16, #tpu.memory_space<vmem>>, vector<24x128xbf16>
      %16 = arith.extf %15 : vector<24x128xbf16> to vector<24x128xf32>
      %cst_14 = arith.constant dense<0.000000e+00> : vector<24xf32>
      %17 = vector.multi_reduction <add>, %16, %cst_14 [1] : vector<24x128xf32> to vector<24xf32>
      %18 = vector.shape_cast %17 : vector<24xf32> to vector<24x1xf32>
      %cst_15 = arith.constant 1.280000e+02 : f32
      %19 = vector.broadcast %cst_15 : f32 to vector<24x1xf32>
      %20 = arith.divf %18, %19 : vector<24x1xf32>
      %21 = vector.broadcast %20 : vector<24x1xf32> to vector<24x128xf32>
      %22 = arith.subf %16, %21 : vector<24x128xf32>
      %23 = arith.mulf %22, %22 : vector<24x128xf32>
      %cst_16 = arith.constant dense<0.000000e+00> : vector<24xf32>
      %24 = vector.multi_reduction <add>, %23, %cst_16 [1] : vector<24x128xf32> to vector<24xf32>
      %25 = vector.shape_cast %24 : vector<24xf32> to vector<24x1xf32>
      %cst_17 = arith.constant 1.280000e+02 : f32
      %26 = vector.broadcast %cst_17 : f32 to vector<24x1xf32>
      %27 = arith.divf %25, %26 : vector<24x1xf32>
      %28 = vector.broadcast %20 : vector<24x1xf32> to vector<24x128xf32>
      %29 = arith.subf %16, %28 : vector<24x128xf32>
      %cst_18 = arith.constant 9.99999997E-7 : f32
      %30 = vector.broadcast %cst_18 : f32 to vector<24x1xf32>
      %31 = arith.addf %27, %30 : vector<24x1xf32>
      %32 = math.rsqrt %31 : vector<24x1xf32>
      %33 = vector.broadcast %32 : vector<24x1xf32> to vector<24x128xf32>
      %34 = arith.mulf %29, %33 : vector<24x128xf32>
      %c0_19 = arith.constant 0 : index
      %c0_20 = arith.constant 0 : index
      %35 = vector.load %arg6[%c0_19, %c0_20] : memref<1x128xbf16, #tpu.memory_space<vmem>>, vector<1x128xbf16>
      %36 = arith.extf %35 : vector<1x128xbf16> to vector<1x128xf32>
      %37 = vector.broadcast %36 : vector<1x128xf32> to vector<24x128xf32>
      %38 = arith.mulf %34, %37 : vector<24x128xf32>
      %c0_21 = arith.constant 0 : index
      %c0_22 = arith.constant 0 : index
      %39 = vector.load %arg7[%c0_21, %c0_22] : memref<1x128xbf16, #tpu.memory_space<vmem>>, vector<1x128xbf16>
      %40 = arith.extf %39 : vector<1x128xbf16> to vector<1x128xf32>
      %41 = vector.broadcast %40 : vector<1x128xf32> to vector<24x128xf32>
      %42 = arith.addf %38, %41 : vector<24x128xf32>
      %43 = arith.truncf %42 : vector<24x128xf32> to vector<24x128xbf16>
      %c0_23 = arith.constant 0 : index
      %c0_24 = arith.constant 0 : index
      %44 = vector.load %arg10[%c0_23, %c0_24] : memref<24x128xbf16, #tpu.memory_space<vmem>>, vector<24x128xbf16>
      tpu.vector_store %arg10[%c0_23, %c0_24], %43 {strides = array<i32>} : memref<24x128xbf16, #tpu.memory_space<vmem>>, vector<24x128xbf16>,
    } else {
    }
    %c0 = arith.constant 0 : index
    %c0_3 = arith.constant 0 : index
    %6 = vector.load %arg10[%c0, %c0_3] : memref<24x128xbf16, #tpu.memory_space<vmem>>, vector<24x128xbf16>
    %c0_4 = arith.constant 0 : index
    %c0_5 = arith.constant 0 : index
    %7 = vector.load %arg9[%c0_4, %c0_5] : memref<24x512xf32, #tpu.memory_space<vmem>>, vector<24x512xf32>
    %c0_6 = arith.constant 0 : index
    %c0_7 = arith.constant 0 : index
    %8 = vector.load %arg4[%c0_6, %c0_7] : memref<128x512xbf16, #tpu.memory_space<vmem>>, vector<128x512xbf16>
    %cst = arith.constant dense<0.000000e+00> : vector<24x512xf32>
    %9 = tpu.matmul %6, %8, %cst {dimension_numbers = #tpu.dot_dimension_numbers<[1], [0], [0], [1], [0, 0, 1, 1], [], []>} : vector<24x128xbf16>, vector<128x512xbf16>, vector<24x512xf32> -> vector<24x512xf32>
    %10 = arith.addf %7, %9 : vector<24x512xf32>
    %c0_8 = arith.constant 0 : index
    %c0_9 = arith.constant 0 : index
    %11 = vector.load %arg9[%c0_8, %c0_9] : memref<24x512xf32, #tpu.memory_space<vmem>>, vector<24x512xf32>
    tpu.vector_store %arg9[%c0_8, %c0_9], %10 {strides = array<i32>} : memref<24x512xf32, #tpu.memory_space<vmem>>, vector<24x512xf32>,
    %c0_i32_10 = arith.constant 0 : i32
    %12 = arith.cmpi eq, %arg2, %c0_i32_10 : i32
    %13 = arith.extui %12 : i1 to i32
    %c0_i32_11 = arith.constant 0 : i32
    %14 = arith.cmpi ne, %13, %c0_i32_11 : i32
    scf.if %14 {
      %c0_12 = arith.constant 0 : index
      %c0_13 = arith.constant 0 : index
      %15 = vector.load %arg9[%c0_12, %c0_13] : memref<24x512xf32, #tpu.memory_space<vmem>>, vector<24x512xf32>
      %c0_14 = arith.constant 0 : index
      %c0_15 = arith.constant 0 : index
      %16 = vector.load %arg5[%c0_14, %c0_15] : memref<1x512xbf16, #tpu.memory_space<vmem>>, vector<1x512xbf16>
      %17 = arith.extf %16 : vector<1x512xbf16> to vector<1x512xf32>
      %18 = vector.broadcast %17 : vector<1x512xf32> to vector<24x512xf32>
      %19 = arith.addf %15, %18 : vector<24x512xf32>
      %20 = arith.mulf %19, %19 : vector<24x512xf32>
      %21 = arith.mulf %19, %20 : vector<24x512xf32>
      %cst_16 = arith.constant 4.471500e-02 : f32
      %22 = vector.broadcast %cst_16 : f32 to vector<24x512xf32>
      %23 = arith.mulf %22, %21 : vector<24x512xf32>
      %24 = arith.addf %19, %23 : vector<24x512xf32>
      %cst_17 = arith.constant 0.797884583 : f32
      %25 = vector.broadcast %cst_17 : f32 to vector<24x512xf32>
      %26 = arith.mulf %25, %24 : vector<24x512xf32>
      %27 = math.tanh %26 : vector<24x512xf32>
      %cst_18 = arith.constant 1.000000e+00 : f32
      %28 = vector.broadcast %cst_18 : f32 to vector<24x512xf32>
      %29 = arith.addf %28, %27 : vector<24x512xf32>
      %cst_19 = arith.constant 5.000000e-01 : f32
      %30 = vector.broadcast %cst_19 : f32 to vector<24x512xf32>
      %31 = arith.mulf %30, %29 : vector<24x512xf32>
      %32 = arith.mulf %19, %31 : vector<24x512xf32>
      %33 = arith.truncf %32 : vector<24x512xf32> to vector<24x512xbf16>
      %c0_20 = arith.constant 0 : index
      %c0_21 = arith.constant 0 : index
      %34 = vector.load %arg8[%c0_20, %c0_21] : memref<24x512xbf16, #tpu.memory_space<vmem>>, vector<24x512xbf16>
      tpu.vector_store %arg8[%c0_20, %c0_21], %33 {strides = array<i32>} : memref<24x512xbf16, #tpu.memory_space<vmem>>, vector<24x512xbf16>,
    } else {
    }
    return
  }
  func.func @transform_0(%arg0: i32, %arg1: i32, %arg2: i32) -> (i32, i32) {
    %c0_i32 = arith.constant 0 : i32
    return %arg0, %arg2 : i32, i32
  }
  func.func @transform_1(%arg0: i32, %arg1: i32, %arg2: i32) -> (i32, i32) {
    %c0_i32 = arith.constant 0 : i32
    return %arg2, %arg1 : i32, i32
  }
  func.func @transform_2(%arg0: i32, %arg1: i32, %arg2: i32) -> (i32, i32) {
    %c0_i32 = arith.constant 0 : i32
    %c0_i32_0 = arith.constant 0 : i32
    return %c0_i32, %arg1 : i32, i32
  }
  func.func @transform_3(%arg0: i32, %arg1: i32, %arg2: i32) -> (i32, i32) {
    %c0_i32 = arith.constant 0 : i32
    %c0_i32_0 = arith.constant 0 : i32
    return %c0_i32, %arg2 : i32, i32
  }
  func.func @transform_4(%arg0: i32, %arg1: i32, %arg2: i32) -> (i32, i32) {
    %c0_i32 = arith.constant 0 : i32
    %c0_i32_0 = arith.constant 0 : i32
    return %c0_i32, %arg2 : i32, i32
  }
  func.func @transform_5(%arg0: i32, %arg1: i32, %arg2: i32) -> (i32, i32) {
    %c0_i32 = arith.constant 0 : i32
    return %arg0, %arg1 : i32, i32
  }
}

module attributes {stable_mosaic.version = 11 : i64} {
  func.func @_linear_kernel(%arg0: i32, %arg1: i32, %arg2: i32, %arg3: memref<8x128xbf16, #tpu.memory_space<vmem>>, %arg4: memref<128x128xbf16, #tpu.memory_space<vmem>>, %arg5: memref<1x128xbf16, #tpu.memory_space<vmem>>, %arg6: memref<8x128xf32, #tpu.memory_space<vmem>>, %arg7: memref<8x128xf32, #tpu.memory_space<vmem>>) attributes {dimension_semantics = [#tpu.dimension_semantics<parallel>, #tpu.dimension_semantics<parallel>, #tpu.dimension_semantics<arbitrary>], iteration_bounds = array<i64: 1, 1, 1>, scalar_prefetch = 0 : i64, scratch_operands = 1 : i64, tpu.core_type = #tpu.core_type<tc>, window_params = [{transform_indices = @transform_0, window_bounds = array<i64: 8, 128>}, {transform_indices = @transform_1, window_bounds = array<i64: 128, 128>}, {transform_indices = @transform_2, window_bounds = array<i64: 1, 128>}, {transform_indices = @transform_3, window_bounds = array<i64: 8, 128>}]} {
    %c0_i32 = arith.constant 0 : i32
    %0 = arith.cmpi eq, %arg2, %c0_i32 : i32
    %1 = arith.extui %0 : i1 to i32
    %c0_i32_0 = arith.constant 0 : i32
    %2 = arith.cmpi ne, %1, %c0_i32_0 : i32
    scf.if %2 {
      %cst_10 = arith.constant 0.000000e+00 : f32
      %12 = vector.broadcast %cst_10 : f32 to vector<8x128xf32>
      %c0_11 = arith.constant 0 : index
      %c0_12 = arith.constant 0 : index
      %13 = vector.load %arg7[%c0_11, %c0_12] : memref<8x128xf32, #tpu.memory_space<vmem>>, vector<8x128xf32>
      tpu.vector_store %arg7[%c0_11, %c0_12], %12 {strides = array<i32>} : memref<8x128xf32, #tpu.memory_space<vmem>>, vector<8x128xf32>,
    } else {
    }
    %c0 = arith.constant 0 : index
    %c0_1 = arith.constant 0 : index
    %3 = vector.load %arg3[%c0, %c0_1] : memref<8x128xbf16, #tpu.memory_space<vmem>>, vector<8x128xbf16>
    %c0_2 = arith.constant 0 : index
    %c0_3 = arith.constant 0 : index
    %4 = vector.load %arg7[%c0_2, %c0_3] : memref<8x128xf32, #tpu.memory_space<vmem>>, vector<8x128xf32>
    %c0_4 = arith.constant 0 : index
    %c0_5 = arith.constant 0 : index
    %5 = vector.load %arg4[%c0_4, %c0_5] : memref<128x128xbf16, #tpu.memory_space<vmem>>, vector<128x128xbf16>
    %cst = arith.constant dense<0.000000e+00> : vector<8x128xf32>
    %6 = tpu.matmul %3, %5, %cst {dimension_numbers = #tpu.dot_dimension_numbers<[1], [0], [0], [1], [0, 0, 1, 1], [], []>} : vector<8x128xbf16>, vector<128x128xbf16>, vector<8x128xf32> -> vector<8x128xf32>
    %7 = arith.addf %4, %6 : vector<8x128xf32>
    %c0_6 = arith.constant 0 : index
    %c0_7 = arith.constant 0 : index
    %8 = vector.load %arg7[%c0_6, %c0_7] : memref<8x128xf32, #tpu.memory_space<vmem>>, vector<8x128xf32>
    tpu.vector_store %arg7[%c0_6, %c0_7], %7 {strides = array<i32>} : memref<8x128xf32, #tpu.memory_space<vmem>>, vector<8x128xf32>,
    %c0_i32_8 = arith.constant 0 : i32
    %9 = arith.cmpi eq, %arg2, %c0_i32_8 : i32
    %10 = arith.extui %9 : i1 to i32
    %c0_i32_9 = arith.constant 0 : i32
    %11 = arith.cmpi ne, %10, %c0_i32_9 : i32
    scf.if %11 {
      %c0_10 = arith.constant 0 : index
      %c0_11 = arith.constant 0 : index
      %12 = vector.load %arg7[%c0_10, %c0_11] : memref<8x128xf32, #tpu.memory_space<vmem>>, vector<8x128xf32>
      %c0_12 = arith.constant 0 : index
      %c0_13 = arith.constant 0 : index
      %13 = vector.load %arg5[%c0_12, %c0_13] : memref<1x128xbf16, #tpu.memory_space<vmem>>, vector<1x128xbf16>
      %14 = arith.extf %13 : vector<1x128xbf16> to vector<1x128xf32>
      %15 = vector.broadcast %14 : vector<1x128xf32> to vector<8x128xf32>
      %16 = arith.addf %12, %15 : vector<8x128xf32>
      %c0_14 = arith.constant 0 : index
      %c0_15 = arith.constant 0 : index
      %17 = vector.load %arg6[%c0_14, %c0_15] : memref<8x128xf32, #tpu.memory_space<vmem>>, vector<8x128xf32>
      tpu.vector_store %arg6[%c0_14, %c0_15], %16 {strides = array<i32>} : memref<8x128xf32, #tpu.memory_space<vmem>>, vector<8x128xf32>,
    } else {
    }
    return
  }
  func.func @transform_0(%arg0: i32, %arg1: i32, %arg2: i32) -> (i32, i32) {
    %c0_i32 = arith.constant 0 : i32
    return %arg0, %arg2 : i32, i32
  }
  func.func @transform_1(%arg0: i32, %arg1: i32, %arg2: i32) -> (i32, i32) {
    %c0_i32 = arith.constant 0 : i32
    return %arg2, %arg1 : i32, i32
  }
  func.func @transform_2(%arg0: i32, %arg1: i32, %arg2: i32) -> (i32, i32) {
    %c0_i32 = arith.constant 0 : i32
    %c0_i32_0 = arith.constant 0 : i32
    return %c0_i32, %arg1 : i32, i32
  }
  func.func @transform_3(%arg0: i32, %arg1: i32, %arg2: i32) -> (i32, i32) {
    %c0_i32 = arith.constant 0 : i32
    return %arg0, %arg1 : i32, i32
  }
}

</mosaic_0001>

<llo_original>
// kernel: forward.13
$region0: #{forward.13}
  #allocation0 [shape = 'u32[]', space=smem, size = 0x4, offset = 0x4, fixed_abs, tag = 'smem constant byte address 0x4 - core index']
  #allocation1 [shape = 'u32[72,128]{1,0:T(1,128)}', space=vmem, size = 0x9000, scoped, tag = 'internal scratch']
  #allocation2 [shape = 'f32[16,128]{1,0:T(8,128)}', space=vmem, size = 0x2000, scoped, tag = 'scratch operand']
  %s0 = inlined_call_operand.vmem [shape: bf16[16,768], index: 0, kind: input, shape index: {}]
  %s1 = inlined_call_operand.vmem [shape: bf16[768,128], index: 1, kind: input, shape index: {}]
  %s2 = inlined_call_operand.vmem [shape: bf16[1,128], index: 2, kind: input, shape index: {}]
  %s3 = inlined_call_operand.vmem [shape: bf16[16,128], index: 3, kind: output, shape index: {}]
  %s4 = sld [smem:[#allocation0]]
  $region91: #{forward.13} parent=0
    _
  %s6 = ssub.s32 1, %s4
  %s7 = scalar_select 0, %s6, %s4
  $region1: #{forward.13} parent=0
    #allocation3 [shape = 'u8[16384]{0}', space=vmem, size = 0x4000, scoped, tag = 'input window, operand 0']
    loop: start=0, step=1, limit=5
    $region2: #{forward.13} parent=1 // loop_pre_header
      _
    $region3: #{forward.13} parent=1 // loop_header
      %s9 = sphi 0, %s13
      %p10 = scmp.ge.s32.totalorder %s9, 5
      %s16 = sphi 0, %s35
      %s17 = sphi 0, %s31
      %s18 = sphi 0, %s27
      %s19 = sphi 0, %s16
      %s20 = sphi 0, %s17
      %s21 = sphi 0, %s18
      %s22 = sphi 0, %s19
      %s23 = sphi 0, %s20
      %s24 = sphi 0, %s21
      %s40 = sphi 0, %s42
      %s43 = sphi 0, %s40
      %s44 = sphi 0, %s43
      %s60 = sphi 0, %s44
      %s68 = sphi 0, %s70
      %s71 = sphi 0, %s68
      %s72 = sphi 0, %s71
      %s88 = sphi 0, %s72
      %s94 = sphi 0, %s96
      %s97 = sphi 0, %s94
      %s98 = sphi 0, %s97
      %s114 = sphi 0, %s98
      %s122 = sphi 0, %s124
      %s125 = sphi 0, %s122
      %s126 = sphi 0, %s125
      %s142 = sphi 0, %s126
    $region4: #{forward.13} parent=1 // loop_header_branch
      %12 = sbr.rel (%p10) target = $region8
    $region5: #{forward.13} parent=1 // loop_body
      %s14 = ssub.s32 %s9, 1
      %s15 = ssub.s32 %s9, 2
      %s25 = sadd.s32 1, %s18
      %p26 = scmp.ge.s32.totalorder %s25, 3
      %s27 = scalar_select %p26, 0, %s25
      %s28 = sadd.s32 1, %s17
      %s29 = scalar_select %p26, %s28, %s17
      %p30 = scmp.ge.s32.totalorder %s29, 1
      %s31 = scalar_select %p30, 0, %s29
      %s32 = sadd.s32 1, %s16
      %s33 = scalar_select %p30, %s32, %s16
      %p34 = scmp.ge.s32.totalorder %s33, 1
      %s35 = scalar_select %p34, 0, %s33
      %s36 = ssub.s32 %s16, %s35
      %s37 = ssub.s32 %s18, %s27
      %s38 = sor.u32 %s36, %s37
      %p39 = scmp.eq.s32.totalorder %s38, 0
      %s41 = sadd.s32 %s40, 1
      %s42 = scalar_select %p39, %s40, %s41
      %p45 = pneg %p39
      %p46 = scmp.eq.s32.totalorder %s9, 2
      %p47 = por %p45, %p46
      %p48 = scmp.ne.s32.totalorder %s40, %s43
      %p49 = scmp.eq.s32.totalorder %s9, 0
      %p50 = por %p48, %p49
      %p51 = scmp.ne.s32.totalorder %s40, %s43
      %p52 = scmp.eq.s32.totalorder %s14, 2
      %p53 = por %p51, %p52
      %p54 = scmp.ne.s32.totalorder %s43, %s44
      %p55 = scmp.eq.s32.totalorder %s14, 0
      %p56 = por %p54, %p55
      %p57 = scmp.ne.s32.totalorder %s43, %s44
      %p58 = scmp.eq.s32.totalorder %s15, 2
      %p59 = por %p57, %p58
      %p61 = scmp.ne.s32.totalorder %s44, %s60
      %p62 = scmp.eq.s32.totalorder %s15, 0
      %p63 = por %p61, %p62
      %s64 = ssub.s32 %s18, %s27
      %s65 = ssub.s32 %s17, %s31
      %s66 = sor.u32 %s64, %s65
      %p67 = scmp.eq.s32.totalorder %s66, 0
      %s69 = sadd.s32 %s68, 1
      %s70 = scalar_select %p67, %s68, %s69
      %p73 = pneg %p67
      %p74 = scmp.eq.s32.totalorder %s9, 2
      %p75 = por %p73, %p74
      %p76 = scmp.ne.s32.totalorder %s68, %s71
      %p77 = scmp.eq.s32.totalorder %s9, 0
      %p78 = por %p76, %p77
      %p79 = scmp.ne.s32.totalorder %s68, %s71
      %p80 = scmp.eq.s32.totalorder %s14, 2
      %p81 = por %p79, %p80
      %p82 = scmp.ne.s32.totalorder %s71, %s72
      %p83 = scmp.eq.s32.totalorder %s14, 0
      %p84 = por %p82, %p83
      %p85 = scmp.ne.s32.totalorder %s71, %s72
      %p86 = scmp.eq.s32.totalorder %s15, 2
      %p87 = por %p85, %p86
      %p89 = scmp.ne.s32.totalorder %s72, %s88
      %p90 = scmp.eq.s32.totalorder %s15, 0
      %p91 = por %p89, %p90
      %s92 = ssub.s32 %s17, %s31
      %p93 = scmp.eq.s32.totalorder %s92, 0
      %s95 = sadd.s32 %s94, 1
      %s96 = scalar_select %p93, %s94, %s95
      %p99 = pneg %p93
      %p100 = scmp.eq.s32.totalorder %s9, 2
      %p101 = por %p99, %p100
      %p102 = scmp.ne.s32.totalorder %s94, %s97
      %p103 = scmp.eq.s32.totalorder %s9, 0
      %p104 = por %p102, %p103
      %p105 = scmp.ne.s32.totalorder %s94, %s97
      %p106 = scmp.eq.s32.totalorder %s14, 2
      %p107 = por %p105, %p106
      %p108 = scmp.ne.s32.totalorder %s97, %s98
      %p109 = scmp.eq.s32.totalorder %s14, 0
      %p110 = por %p108, %p109
      %p111 = scmp.ne.s32.totalorder %s97, %s98
      %p112 = scmp.eq.s32.totalorder %s15, 2
      %p113 = por %p111, %p112
      %p115 = scmp.ne.s32.totalorder %s98, %s114
      %p116 = scmp.eq.s32.totalorder %s15, 0
      %p117 = por %p115, %p116
      %s118 = ssub.s32 %s16, %s35
      %s119 = ssub.s32 %s17, %s31
      %s120 = sor.u32 %s118, %s119
      %p121 = scmp.eq.s32.totalorder %s120, 0
      %s123 = sadd.s32 %s122, 1
      %s124 = scalar_select %p121, %s122, %s123
      %p127 = pneg %p121
      %p128 = scmp.eq.s32.totalorder %s9, 2
      %p129 = por %p127, %p128
      %p130 = scmp.ne.s32.totalorder %s122, %s125
      %p131 = scmp.eq.s32.totalorder %s9, 0
      %p132 = por %p130, %p131
      %p133 = scmp.ne.s32.totalorder %s122, %s125
      %p134 = scmp.eq.s32.totalorder %s14, 2
      %p135 = por %p133, %p134
      %p136 = scmp.ne.s32.totalorder %s125, %s126
      %p137 = scmp.eq.s32.totalorder %s14, 0
      %p138 = por %p136, %p137
      %p139 = scmp.ne.s32.totalorder %s125, %s126
      %p140 = scmp.eq.s32.totalorder %s15, 2
      %p141 = por %p139, %p140
      %p143 = scmp.ne.s32.totalorder %s126, %s142
      %p144 = scmp.eq.s32.totalorder %s15, 0
      %p145 = por %p143, %p144
      %p146 = scmp.le.s32.totalorder 1, %s9
      %p147 = scmp.lt.s32.totalorder %s9, 4
      %p148 = pnand %p146, %p147
      %p149 = pneg %p148
      // Predicated region
      $region9: #{forward.13} parent=5 // pred_check
        _
      $region10: #{forward.13} parent=5 // pred_check_branch
        %151 = sbr.rel (%p148) target = $region12
      $region11: #{forward.13} parent=5 // pred_region
        %s152 = ssub.s32 %s9, 1
        // Predicated region
        $region13: #{forward.13} parent=11 // pred_check
          %p153 = pneg %p110
        $region14: #{forward.13} parent=11 // pred_check_branch
          %155 = sbr.rel (%p153) target = $region16
        $region15: #{forward.13} parent=11 // pred_region
          %p156 = scmp.lt.s32.totalorder %s20, 0
          %s157 = scalar_select %p156, %s20, 0
          %s158 = scalar_lea.vmem %s2, %s157
        $region16: #{forward.13} parent=11 // pred_fallthru
          _
      $region12: #{forward.13} parent=5 // pred_fallthru
        _
      %p159 = scmp.lt.s32.totalorder %s9, 3
      // Predicated region
      $region17: #{forward.13} parent=5 // pred_check
        %p160 = pneg %p159
      $region18: #{forward.13} parent=5 // pred_check_branch
        %162 = sbr.rel (%p160) target = $region20
      $region19: #{forward.13} parent=5 // pred_region
        // Predicated region
        $region21: #{forward.13} parent=19 // pred_check
          %p163 = pneg %p50
        $region22: #{forward.13} parent=19 // pred_check_branch
          %165 = sbr.rel (%p163) target = $region24
        $region23: #{forward.13} parent=19 // pred_region
          %s166 = sand.u32 %s40, 1
          %s167 = sand.u32 %s40, 1
          %s168 = smul.addr %s167, 16
          %s169 = scalar_lea.vmem [#allocation3], %s168
          %s170 = smul.u32 2, %s16
          %s171 = smul.u32 2, %s18
          %s172 = smul.addr %s170, 6
          %s173 = sadd.s32 %s171, %s172
          %s174 = smul.addr %s173, 4
          %s175 = scalar_lea.vmem %s0, %s174
          // Predicated region
          $region25: #{forward.13} parent=23 // pred_check
            _
          $region26: #{forward.13} parent=23 // pred_check_branch
            %177 = sbr.rel (0) target = $region28
          $region27: #{forward.13} parent=23 // pred_region
            // Predicated region
            $region29: #{forward.13} parent=27 // pred_check
              _
            $region30: #{forward.13} parent=27 // pred_check_branch
              %179 = sbr.rel (0) target = $region32
            $region31: #{forward.13} parent=27 // pred_region
              // Predicated region
              $region44: #{forward.13} parent=31 // pred_check
                _
              $region45: #{forward.13} parent=31 // pred_check_branch
                %197 = sbr.rel (0) target = $region47
              $region46: #{forward.13} parent=31 // pred_region
                loop: start=0, step=1, limit=1
                $region48: #{forward.13} parent=46 // loop_pre_header
                  _
                $region49: #{forward.13} parent=46 // loop_header
                  %s199 = sphi 0, %s203
                  %p200 = scmp.ge.s32.totalorder %s199, 1
                  %s204 = sphi %s175, %s175
                  %s205 = sphi %s169, %s169
                $region50: #{forward.13} parent=46 // loop_header_branch
                  %202 = sbr.rel (%p200) target = $region54
                $region51: #{forward.13} parent=46 // loop_body
                  %v206 = vld [vmem:[%s204] sm:$0xff]
                  %207 = vst [vmem:[%s205] sm:$0xff] %v206
                  %v208 = vld [vmem:[%s204 + $0x18] sm:$0xff]
                  %209 = vst [vmem:[%s205 + $0x8] sm:$0xff] %v208
                $region52: #{forward.13} parent=46 // loop_footer
                  %s203 = sadd.s32 1, %s199
                $region53: #{forward.13} parent=46 // loop_footer_branch
                  %198 = sbr.rel target = $region49
                $region54: #{forward.13} parent=46 // loop_exit
                  _
              $region47: #{forward.13} parent=31 // pred_fallthru
                _
              // Predicated region
              $region55: #{forward.13} parent=31 // pred_check
                _
              $region56: #{forward.13} parent=31 // pred_check_branch
                %211 = sbr.rel target = $region58
              $region57: #{forward.13} parent=31 // pred_region
                _
              $region58: #{forward.13} parent=31 // pred_fallthru
                _
            $region32: #{forward.13} parent=27 // pred_fallthru
              _
            // Predicated region
            $region33: #{forward.13} parent=27 // pred_check
              _
            $region34: #{forward.13} parent=27 // pred_check_branch
              %181 = sbr.rel target = $region36
            $region35: #{forward.13} parent=27 // pred_region
              %s183 = ssub.s32 256, 1
              loop: start=0, step=1, limit=1
              $region37: #{forward.13} parent=35 // loop_pre_header
                _
              $region38: #{forward.13} parent=35 // loop_header
                %s185 = sphi 0, %s189
                %p186 = scmp.ge.s32.totalorder %s185, 1
                %s190 = sphi %s175, %s175
                %s191 = sphi %s169, %s169
              $region39: #{forward.13} parent=35 // loop_header_branch
                %188 = sbr.rel (%p186) target = $region43
              $region40: #{forward.13} parent=35 // loop_body
                %v192 = vld [vmem:[%s190] sm:%s183]
                %193 = vst [vmem:[%s191] sm:%s183] %v192
                %v194 = vld [vmem:[%s190 + $0x18] sm:%s183]
                %195 = vst [vmem:[%s191 + $0x8] sm:%s183] %v194
              $region41: #{forward.13} parent=35 // loop_footer
                %s189 = sadd.s32 1, %s185
              $region42: #{forward.13} parent=35 // loop_footer_branch
                %184 = sbr.rel target = $region38
              $region43: #{forward.13} parent=35 // loop_exit
                _
            $region36: #{forward.13} parent=27 // pred_fallthru
              _
          $region28: #{forward.13} parent=23 // pred_fallthru
            _
          %212 = vnop
        $region24: #{forward.13} parent=19 // pred_fallthru
          _
        // Predicated region
        $region59: #{forward.13} parent=19 // pred_check
          %p213 = pneg %p78
        $region60: #{forward.13} parent=19 // pred_check_branch
          %215 = sbr.rel (%p213) target = $region62
        $region61: #{forward.13} parent=19 // pred_region
          %s216 = smul.u32 32, %s18
          %p217 = scmp.lt.s32.totalorder %s216, 95
          %s218 = scalar_select %p217, %s216, 95
          %p219 = scmp.lt.s32.totalorder %s17, 0
          %s220 = scalar_select %p219, %s17, 0
          %s221 = sadd.s32 %s220, %s218
          %s222 = smul.addr %s221, 4
          %s223 = scalar_lea.vmem %s1, %s222
          %s224 = smul.u32 32, %s18
        $region62: #{forward.13} parent=19 // pred_fallthru
          _
      $region20: #{forward.13} parent=5 // pred_fallthru
        _
      %p225 = scmp.le.s32.totalorder 1, %s9
      %p226 = scmp.lt.s32.totalorder %s9, 4
      %p227 = pnand %p225, %p226
      %p228 = pneg %p227
      // Predicated region
      $region63: #{forward.13} parent=5 // pred_check
        _
      $region64: #{forward.13} parent=5 // pred_check_branch
        %230 = sbr.rel (%p227) target = $region66
      $region65: #{forward.13} parent=5 // pred_region
        %s231 = ssub.s32 %s9, 1
        %s232 = sand.u32 %s43, 1
        %s233 = sand.u32 %s43, 1
        %s234 = smul.addr %s233, 16
        %s235 = scalar_lea.vmem [#allocation3], %s234
        // Predicated region
        $region67: #{forward.13} parent=65 // pred_check
          %p236 = pneg %p56
        $region68: #{forward.13} parent=65 // pred_check_branch
          %238 = sbr.rel (%p236) target = $region70
        $region69: #{forward.13} parent=65 // pred_region
          _
        $region70: #{forward.13} parent=65 // pred_fallthru
          _
        %s239 = sand.u32 %s43, 1
        %s240 = sand.u32 %s43, 1
        %s241 = smul.addr %s240, 16
        %s242 = scalar_lea.vmem [#allocation3], %s241
        %p243 = pneg %p56
        %p244 = pneg %p53
        %s245 = smul.u32 32, %s21
        %p246 = scmp.lt.s32.totalorder %s245, 95
        %s247 = scalar_select %p246, %s245, 95
        %p248 = scmp.lt.s32.totalorder %s20, 0
        %s249 = scalar_select %p248, %s20, 0
        %s250 = sadd.s32 %s249, %s247
        %s251 = smul.addr %s250, 4
        %s252 = scalar_lea.vmem %s1, %s251
        %p253 = pneg %p84
        %p254 = pneg %p81
        %p255 = scmp.lt.s32.totalorder %s20, 0
        %s256 = scalar_select %p255, %s20, 0
        %s257 = scalar_lea.vmem %s2, %s256
        %p258 = pneg %p110
        %p259 = pneg %p107
        %p260 = pneg %p138
        %p261 = pneg %p135
        %s262 = smul.u32 2, %s19
        %p263 = scmp.lt.s32.totalorder %s262, 1
        %s264 = scalar_select %p263, %s262, 1
        %p265 = scmp.lt.s32.totalorder %s20, 0
        %s266 = scalar_select %p265, %s20, 0
        %s267 = sadd.s32 %s266, %s264
        %s268 = smul.addr %s267, 4
        %s269 = scalar_lea.vmem %s3, %s268
        %s270 = smul.u32 2, %s19
        %s271 = smul.u32 2, %s21
        %s272 = smul.u32 32, %s21
        %p273 = scmp.lt.s32.totalorder %s272, 95
        %s274 = scalar_select %p273, %s272, 95
        %p275 = scmp.lt.s32.totalorder %s20, 0
        %s276 = scalar_select %p275, %s20, 0
        %s277 = sadd.s32 %s276, %s274
        %s278 = smul.addr %s277, 4
        %s279 = scalar_lea.vmem %s1, %s278
        %s280 = smul.u32 32, %s21
        %p281 = scmp.lt.s32.totalorder %s20, 0
        %s282 = scalar_select %p281, %s20, 0
        %s283 = scalar_lea.vmem %s2, %s282
        %s284 = smul.u32 2, %s19
        %p285 = scmp.lt.s32.totalorder %s284, 1
        %s286 = scalar_select %p285, %s284, 1
        %p287 = scmp.lt.s32.totalorder %s20, 0
        %s288 = scalar_select %p287, %s20, 0
        %s289 = sadd.s32 %s288, %s286
        %s290 = smul.addr %s289, 4
        %s291 = scalar_lea.vmem %s3, %s290
        %s292 = smul.u32 2, %s19
        %p293 = scmp.eq.s32.totalorder %s21, 0
        // Predicated region
        $region71: #{forward.13} parent=65 // pred_check
          %p294 = pneg %p293
        $region72: #{forward.13} parent=65 // pred_check_branch
          %296 = sbr.rel (%p294) target = $region74
        $region73: #{forward.13} parent=65 // pred_region
          %297 = vst [vmem:[#allocation2] sm:$0xff] 0.0
          %298 = vst [vmem:[#allocation2 + $0x8] sm:$0xff] 0.0
        $region74: #{forward.13} parent=65 // pred_fallthru
          _
        %v299 = vld [vmem:[%s235] sm:$0xff]
        %v300 = vld [vmem:[%s235 + $0x8] sm:$0xff]
        %v301 = vld [vmem:[#allocation2] sm:$0xff]
        %v302 = vld [vmem:[#allocation2 + $0x8] sm:$0xff]
        %v303 = vld [vmem:[%s279] sm:$0xf]
        %v304 = vld [vmem:[%s279 + $0x4] sm:$0xf]
        %v305 = vld [vmem:[%s279 + $0x8] sm:$0xf]
        %v306 = vld [vmem:[%s279 + $0xc] sm:$0xf]
        %v307 = vld [vmem:[%s279 + $0x10] sm:$0xf]
        %v308 = vld [vmem:[%s279 + $0x14] sm:$0xf]
        %v309 = vld [vmem:[%s279 + $0x18] sm:$0xf]
        %v310 = vld [vmem:[%s279 + $0x1c] sm:$0xf]
        %v311 = vld [vmem:[%s279 + $0x20] sm:$0xf]
        %v312 = vld [vmem:[%s279 + $0x24] sm:$0xf]
        %v313 = vld [vmem:[%s279 + $0x28] sm:$0xf]
        %v314 = vld [vmem:[%s279 + $0x2c] sm:$0xf]
        %v315 = vld [vmem:[%s279 + $0x30] sm:$0xf]
        %v316 = vld [vmem:[%s279 + $0x34] sm:$0xf]
        %v317 = vld [vmem:[%s279 + $0x38] sm:$0xf]
        %v318 = vld [vmem:[%s279 + $0x3c] sm:$0xf]
        %v319 = vld [vmem:[%s279 + $0x40] sm:$0xf]
        %v320 = vld [vmem:[%s279 + $0x44] sm:$0xf]
        %v321 = vld [vmem:[%s279 + $0x48] sm:$0xf]
        %v322 = vld [vmem:[%s279 + $0x4c] sm:$0xf]
        %v323 = vld [vmem:[%s279 + $0x50] sm:$0xf]
        %v324 = vld [vmem:[%s279 + $0x54] sm:$0xf]
        %v325 = vld [vmem:[%s279 + $0x58] sm:$0xf]
        %v326 = vld [vmem:[%s279 + $0x5c] sm:$0xf]
        %v327 = vld [vmem:[%s279 + $0x60] sm:$0xf]
        %v328 = vld [vmem:[%s279 + $0x64] sm:$0xf]
        %v329 = vld [vmem:[%s279 + $0x68] sm:$0xf]
        %v330 = vld [vmem:[%s279 + $0x6c] sm:$0xf]
        %v331 = vld [vmem:[%s279 + $0x70] sm:$0xf]
        %v332 = vld [vmem:[%s279 + $0x74] sm:$0xf]
        %v333 = vld [vmem:[%s279 + $0x78] sm:$0xf]
        %v334 = vld [vmem:[%s279 + $0x7c] sm:$0xf]
        %v337 = vunpack.c.l.b16 %v299
        %v338 = vunpack.c.h.b16 %v299
        %v339 = vunpack.c.l.b16 %v300
        %v340 = vunpack.c.h.b16 %v300
        %v341 = vpack.c.b16 %v339, %v337
        %v342 = vpack.c.b16 %v340, %v338
        %v377 = vunpack.c.l.b16 %v303
        %v378 = vunpack.c.l.b16 %v304
        %v379 = vunpack.c.l.b16 %v305
        %v380 = vunpack.c.l.b16 %v306
        %v381 = vunpack.c.l.b16 %v307
        %v382 = vunpack.c.l.b16 %v308
        %v383 = vunpack.c.l.b16 %v309
        %v384 = vunpack.c.l.b16 %v310
        %v385 = vunpack.c.l.b16 %v311
        %v386 = vunpack.c.l.b16 %v312
        %v387 = vunpack.c.l.b16 %v313
        %v388 = vunpack.c.l.b16 %v314
        %v389 = vunpack.c.l.b16 %v315
        %v390 = vunpack.c.l.b16 %v316
        %v391 = vunpack.c.l.b16 %v317
        %v392 = vunpack.c.l.b16 %v318
        %v393 = vunpack.c.l.b16 %v319
        %v394 = vunpack.c.l.b16 %v320
        %v395 = vunpack.c.l.b16 %v321
        %v396 = vunpack.c.l.b16 %v322
        %v397 = vunpack.c.l.b16 %v323
        %v398 = vunpack.c.l.b16 %v324
        %v399 = vunpack.c.l.b16 %v325
        %v400 = vunpack.c.l.b16 %v326
        %v401 = vunpack.c.l.b16 %v327
        %v402 = vunpack.c.l.b16 %v328
        %v403 = vunpack.c.l.b16 %v329
        %v404 = vunpack.c.l.b16 %v330
        %v405 = vunpack.c.l.b16 %v331
        %v406 = vunpack.c.l.b16 %v332
        %v407 = vunpack.c.l.b16 %v333
        %v408 = vunpack.c.l.b16 %v334
        %v409 = vpack.c.b16 %v378, %v377
        %v410 = vpack.c.b16 %v380, %v379
        %v411 = vpack.c.b16 %v382, %v381
        %v412 = vpack.c.b16 %v384, %v383
        %v413 = vpack.c.b16 %v386, %v385
        %v414 = vpack.c.b16 %v388, %v387
        %v415 = vpack.c.b16 %v390, %v389
        %v416 = vpack.c.b16 %v392, %v391
        %v417 = vpack.c.b16 %v394, %v393
        %v418 = vpack.c.b16 %v396, %v395
        %v419 = vpack.c.b16 %v398, %v397
        %v420 = vpack.c.b16 %v400, %v399
        %v421 = vpack.c.b16 %v402, %v401
        %v422 = vpack.c.b16 %v404, %v403
        %v423 = vpack.c.b16 %v406, %v405
        %v424 = vpack.c.b16 %v408, %v407
        %441 = vmatpush.bf16.msra.mxu0 %v416
        %442 = vmatpush.bf16.msra.mxu0 %v415
        %443 = vmatpush.bf16.msra.mxu0 %v414
        %444 = vmatpush.bf16.msra.mxu0 %v413
        %445 = vmatpush.bf16.msra.mxu0 %v412
        %446 = vmatpush.bf16.msra.mxu0 %v411
        %447 = vmatpush.bf16.msra.mxu0 %v410
        %448 = vmatpush.bf16.msra.mxu0 %v409
        %449 = vmatmul.bf16.gmra.mxu0 %v341
        %v450 = vpop.f32.mrf.mxu0
        %v451 = vadd.f32 0.0, %v450
        %v452 = vpop.f32.mrf.mxu0
        %v453 = vadd.f32 0.0, %v452
        %454 = vdwg.mxu0
        %455 = vmatpush.bf16.msra.mxu0 %v424
        %456 = vmatpush.bf16.msra.mxu0 %v423
        %457 = vmatpush.bf16.msra.mxu0 %v422
        %458 = vmatpush.bf16.msra.mxu0 %v421
        %459 = vmatpush.bf16.msra.mxu0 %v420
        %460 = vmatpush.bf16.msra.mxu0 %v419
        %461 = vmatpush.bf16.msra.mxu0 %v418
        %462 = vmatpush.bf16.msra.mxu0 %v417
        %463 = vmatmul.bf16.gmra.mxu0 %v342
        %v464 = vpop.f32.mrf.mxu0
        %v465 = vadd.f32 %v451, %v464
        %v466 = vpop.f32.mrf.mxu0
        %v467 = vadd.f32 %v453, %v466
        %468 = vdwg.mxu0
        %v469 = vadd.f32 %v301, %v465
        %v470 = vadd.f32 %v302, %v467
        %471 = vst [vmem:[#allocation2] sm:$0xff] %v469
        %472 = vst [vmem:[#allocation2 + $0x8] sm:$0xff] %v470
        %p473 = scmp.eq.s32.totalorder %s21, 2
        // Predicated region
        $region75: #{forward.13} parent=65 // pred_check
          %p474 = pneg %p473
        $region76: #{forward.13} parent=65 // pred_check_branch
          %476 = sbr.rel (%p474) target = $region78
        $region77: #{forward.13} parent=65 // pred_region
          %v477 = vld [vmem:[#allocation2] sm:$0xff]
          %v478 = vld [vmem:[#allocation2 + $0x8] sm:$0xff]
          %v479 = vld [vmem:[%s283] sm:$0x1]
          %v480 = vunpack.c.l.bf16 %v479
          %v481 = vperm.slane %v480, 0
          %v482 = vadd.f32 %v477, %v481
          %v483 = vadd.f32 %v478, %v481
          %v484 = vpack.c.bf16 %v482, %v482
          %v485 = vpack.c.bf16 %v483, %v483
          %486 = vst [vmem:[%s291] sm:$0xf] %v484
          %487 = vst [vmem:[%s291 + $0x4] sm:$0xf] %v485
        $region78: #{forward.13} parent=65 // pred_fallthru
          _
        %s488 = smul.u32 2, %s19
        %p489 = scmp.lt.s32.totalorder %s488, 1
        %s490 = scalar_select %p489, %s488, 1
        %p491 = scmp.lt.s32.totalorder %s20, 0
        %s492 = scalar_select %p491, %s20, 0
        %s493 = sadd.s32 %s492, %s490
        %s494 = smul.addr %s493, 4
        %s495 = scalar_lea.vmem %s3, %s494
        // Predicated region
        $region79: #{forward.13} parent=65 // pred_check
          %p496 = pneg %p135
        $region80: #{forward.13} parent=65 // pred_check_branch
          %498 = sbr.rel (%p496) target = $region82
        $region81: #{forward.13} parent=65 // pred_region
          %s499 = smul.u32 2, %s19
        $region82: #{forward.13} parent=65 // pred_fallthru
          _
        // Predicated region
        $region83: #{forward.13} parent=65 // pred_check
          %p500 = pneg %p135
        $region84: #{forward.13} parent=65 // pred_check_branch
          %502 = sbr.rel (%p500) target = $region86
        $region85: #{forward.13} parent=65 // pred_region
          %s503 = smul.u32 2, %s19
          %p504 = scmp.lt.s32.totalorder %s503, 1
          %s505 = scalar_select %p504, %s503, 1
          %p506 = scmp.lt.s32.totalorder %s20, 0
          %s507 = scalar_select %p506, %s20, 0
          %s508 = sadd.s32 %s507, %s505
          %s509 = smul.addr %s508, 4
          %s510 = scalar_lea.vmem %s3, %s509
        $region86: #{forward.13} parent=65 // pred_fallthru
          _
      $region66: #{forward.13} parent=5 // pred_fallthru
        _
      %p511 = scmp.le.s32.totalorder 2, %s9
      // Predicated region
      $region87: #{forward.13} parent=5 // pred_check
        %p512 = pneg %p511
      $region88: #{forward.13} parent=5 // pred_check_branch
        %514 = sbr.rel (%p512) target = $region90
      $region89: #{forward.13} parent=5 // pred_region
        %s515 = ssub.s32 %s9, 2
      $region90: #{forward.13} parent=5 // pred_fallthru
        _
    $region6: #{forward.13} parent=1 // loop_footer
      %s13 = sadd.s32 1, %s9
    $region7: #{forward.13} parent=1 // loop_footer_branch
      %8 = sbr.rel target = $region3
    $region8: #{forward.13} parent=1 // loop_exit
      _

// kernel: forward.14
$region0: #{forward.14}
  #allocation0 [shape = 'u32[]', space=smem, size = 0x4, offset = 0x4, fixed_abs, tag = 'smem constant byte address 0x4 - core index']
  #allocation1 [shape = 'u32[72,128]{1,0:T(1,128)}', space=vmem, size = 0x9000, scoped, tag = 'internal scratch']
  #allocation2 [shape = 'f32[24,384]{1,0:T(8,128)}', space=vmem, size = 0x9000, scoped, tag = 'scratch operand']
  #allocation3 [shape = 'bf16[24,128]{1,0:T(8,128)(2,1)}', space=vmem, size = 0x1800, scoped, tag = 'scratch operand']
  %s0 = inlined_call_operand.vmem [shape: bf16[24,128], index: 0, kind: input, shape index: {}]
  %s1 = inlined_call_operand.vmem [shape: bf16[128,384], index: 1, kind: input, shape index: {}]
  %s2 = inlined_call_operand.vmem [shape: bf16[1,384], index: 2, kind: input, shape index: {}]
  %s3 = inlined_call_operand.vmem [shape: bf16[1,128], index: 3, kind: input, shape index: {}]
  %s4 = inlined_call_operand.vmem [shape: bf16[1,128], index: 4, kind: input, shape index: {}]
  %s5 = inlined_call_operand.vmem [shape: bf16[24,384], index: 5, kind: output, shape index: {}]
  %s6 = sld [smem:[#allocation0]]
  $region42: #{forward.14} parent=0
    _
  %s8 = ssub.s32 1, %s6
  %s9 = scalar_select 0, %s8, %s6
  // Predicated region
  $region2: #{forward.14} parent=0 // pred_check
    _
  $region3: #{forward.14} parent=0 // pred_check_branch
    %11 = sbr.rel (0) target = $region5
  $region4: #{forward.14} parent=0 // pred_region
    _
  $region5: #{forward.14} parent=0 // pred_fallthru
    _
  // Predicated region
  $region6: #{forward.14} parent=0 // pred_check
    _
  $region7: #{forward.14} parent=0 // pred_check_branch
    %13 = sbr.rel (0) target = $region9
  $region8: #{forward.14} parent=0 // pred_region
    _
  $region9: #{forward.14} parent=0 // pred_fallthru
    _
  // Predicated region
  $region10: #{forward.14} parent=0 // pred_check
    _
  $region11: #{forward.14} parent=0 // pred_check_branch
    %15 = sbr.rel (0) target = $region13
  $region12: #{forward.14} parent=0 // pred_region
    _
  $region13: #{forward.14} parent=0 // pred_fallthru
    _
  // Predicated region
  $region14: #{forward.14} parent=0 // pred_check
    _
  $region15: #{forward.14} parent=0 // pred_check_branch
    %17 = sbr.rel (0) target = $region17
  $region16: #{forward.14} parent=0 // pred_region
    _
  $region17: #{forward.14} parent=0 // pred_fallthru
    _
  // Predicated region
  $region18: #{forward.14} parent=0 // pred_check
    _
  $region19: #{forward.14} parent=0 // pred_check_branch
    %19 = sbr.rel (0) target = $region21
  $region20: #{forward.14} parent=0 // pred_region
    _
  $region21: #{forward.14} parent=0 // pred_fallthru
    _
  %p20 = scmp.eq.s32.totalorder 0, 0
  // Predicated region
  $region22: #{forward.14} parent=0 // pred_check
    %p21 = pneg %p20
  $region23: #{forward.14} parent=0 // pred_check_branch
    %23 = sbr.rel (%p21) target = $region25
  $region24: #{forward.14} parent=0 // pred_region
    %24 = vst [vmem:[#allocation2] sm:$0xff] 0.0
    %25 = vst [vmem:[#allocation2 + $0x8] sm:$0xff] 0.0
    %26 = vst [vmem:[#allocation2 + $0x10] sm:$0xff] 0.0
    %27 = vst [vmem:[#allocation2 + $0x18] sm:$0xff] 0.0
    %28 = vst [vmem:[#allocation2 + $0x20] sm:$0xff] 0.0
    %29 = vst [vmem:[#allocation2 + $0x28] sm:$0xff] 0.0
    %30 = vst [vmem:[#allocation2 + $0x30] sm:$0xff] 0.0
    %31 = vst [vmem:[#allocation2 + $0x38] sm:$0xff] 0.0
    %32 = vst [vmem:[#allocation2 + $0x40] sm:$0xff] 0.0
  $region25: #{forward.14} parent=0 // pred_fallthru
    _
  %p33 = scmp.eq.s32.totalorder 0, 0
  // Predicated region
  $region26: #{forward.14} parent=0 // pred_check
    %p34 = pneg %p33
  $region27: #{forward.14} parent=0 // pred_check_branch
    %36 = sbr.rel (%p34) target = $region29
  $region28: #{forward.14} parent=0 // pred_region
    %v37 = vld [vmem:[%s0] sm:$0xf]
    %v38 = vld [vmem:[%s0 + $0x4] sm:$0xf]
    %v39 = vld [vmem:[%s0 + $0x8] sm:$0xf]
    %v40 = vunpack.c.l.bf16 %v37
    %v41 = vunpack.c.l.bf16 %v38
    %v42 = vunpack.c.l.bf16 %v39
    %43 = vadd.xlane.f32.xlu0 %v40
    %v44 = vpop.xlane.xlu0 %43
    %45 = vadd.xlane.f32.xlu0 %v41
    %v46 = vpop.xlane.xlu0 %45
    %47 = vadd.xlane.f32.xlu0 %v42
    %v48 = vpop.xlane.xlu0 %47
    %v49 = vrcp.pop 128.0
    %v50 = vmul.f32 128.0, %v49
    %v51 = vsub.f32 1.0, %v50
    %v52 = vmul.f32 %v49, %v51
    %v53 = vadd.f32 %v49, %v52
    %vm54 = vweird.f32 %v49
    %v55 = vsel %vm54, %v49, %v53
    %v56 = vmul.f32 %v44, %v55
    %v57 = vmul.f32 %v46, %v55
    %v58 = vmul.f32 %v48, %v55
    %v59 = vsub.f32 %v40, %v56
    %v60 = vsub.f32 %v41, %v57
    %v61 = vsub.f32 %v42, %v58
    %v62 = vmul.f32 %v59, %v59
    %v63 = vmul.f32 %v60, %v60
    %v64 = vmul.f32 %v61, %v61
    %65 = vadd.xlane.f32.xlu0 %v62
    %v66 = vpop.xlane.xlu0 %65
    %67 = vadd.xlane.f32.xlu0 %v63
    %v68 = vpop.xlane.xlu0 %67
    %69 = vadd.xlane.f32.xlu0 %v64
    %v70 = vpop.xlane.xlu0 %69
    %v71 = vmul.f32 %v66, %v55
    %v72 = vmul.f32 %v68, %v55
    %v73 = vmul.f32 %v70, %v55
    %v74 = vadd.f32 %v71, 1e-06
    %v75 = vadd.f32 %v72, 1e-06
    %v76 = vadd.f32 %v73, 1e-06
    %v77 = vrsqrt.pop %v74
    %v78 = vmul.f32 %v77, %v74
    %v79 = vmul.f32 %v78, %v77
    %v80 = vmul.f32 0.5, %v79
    %v81 = vsub.f32 1.5, %v80
    %v82 = vmul.f32 %v77, %v81
    %vm83 = vweird.f32 %v74
    %vm84 = vweird.f32 %v77
    %vm85 = vmor %vm83, %vm84
    %v86 = vsel %vm85, %v77, %v82
    %v87 = vrsqrt.pop %v75
    %v88 = vmul.f32 %v87, %v75
    %v89 = vmul.f32 %v88, %v87
    %v90 = vmul.f32 0.5, %v89
    %v91 = vsub.f32 1.5, %v90
    %v92 = vmul.f32 %v87, %v91
    %vm93 = vweird.f32 %v75
    %vm94 = vweird.f32 %v87
    %vm95 = vmor %vm93, %vm94
    %v96 = vsel %vm95, %v87, %v92
    %v97 = vrsqrt.pop %v76
    %v98 = vmul.f32 %v97, %v76
    %v99 = vmul.f32 %v98, %v97
    %v100 = vmul.f32 0.5, %v99
    %v101 = vsub.f32 1.5, %v100
    %v102 = vmul.f32 %v97, %v101
    %vm103 = vweird.f32 %v76
    %vm104 = vweird.f32 %v97
    %vm105 = vmor %vm103, %vm104
    %v106 = vsel %vm105, %v97, %v102
    %v107 = vmul.f32 %v59, %v86
    %v108 = vmul.f32 %v60, %v96
    %v109 = vmul.f32 %v61, %v106
    %v110 = vld [vmem:[%s3] sm:$0x1]
    %v111 = vunpack.c.l.bf16 %v110
    %v112 = vperm.slane %v111, 0
    %v113 = vmul.f32 %v107, %v112
    %v114 = vmul.f32 %v108, %v112
    %v115 = vmul.f32 %v109, %v112
    %v116 = vld [vmem:[%s4] sm:$0x1]
    %v117 = vunpack.c.l.bf16 %v116
    %v118 = vperm.slane %v117, 0
    %v119 = vadd.f32 %v113, %v118
    %v120 = vadd.f32 %v114, %v118
    %v121 = vadd.f32 %v115, %v118
    %v122 = vpack.c.bf16 %v119, %v119
    %v123 = vpack.c.bf16 %v120, %v120
    %v124 = vpack.c.bf16 %v121, %v121
    %125 = vst [vmem:[#allocation3] sm:$0xf] %v122
    %126 = vst [vmem:[#allocation3 + $0x4] sm:$0xf] %v123
    %127 = vst [vmem:[#allocation3 + $0x8] sm:$0xf] %v124
  $region29: #{forward.14} parent=0 // pred_fallthru
    _
  %v128 = vld [vmem:[#allocation3] sm:$0xf]
  %v129 = vld [vmem:[#allocation3 + $0x4] sm:$0xf]
  %v130 = vld [vmem:[#allocation3 + $0x8] sm:$0xf]
  %v131 = vld [vmem:[#allocation2] sm:$0xff]
  %v132 = vld [vmem:[#allocation2 + $0x8] sm:$0xff]
  %v133 = vld [vmem:[#allocation2 + $0x10] sm:$0xff]
  %v134 = vld [vmem:[#allocation2 + $0x18] sm:$0xff]
  %v135 = vld [vmem:[#allocation2 + $0x20] sm:$0xff]
  %v136 = vld [vmem:[#allocation2 + $0x28] sm:$0xff]
  %v137 = vld [vmem:[#allocation2 + $0x30] sm:$0xff]
  %v138 = vld [vmem:[#allocation2 + $0x38] sm:$0xff]
  %v139 = vld [vmem:[#allocation2 + $0x40] sm:$0xff]
  %v140 = vld [vmem:[%s1] sm:$0xff]
  %v141 = vld [vmem:[%s1 + $0x8] sm:$0xf]
  %v142 = vld [vmem:[%s1 + $0xc] sm:$0xff]
  %v143 = vld [vmem:[%s1 + $0x14] sm:$0xf]
  %v144 = vld [vmem:[%s1 + $0x18] sm:$0xff]
  %v145 = vld [vmem:[%s1 + $0x20] sm:$0xf]
  %v146 = vld [vmem:[%s1 + $0x24] sm:$0xff]
  %v147 = vld [vmem:[%s1 + $0x2c] sm:$0xf]
  %v148 = vld [vmem:[%s1 + $0x30] sm:$0xff]
  %v149 = vld [vmem:[%s1 + $0x38] sm:$0xf]
  %v150 = vld [vmem:[%s1 + $0x3c] sm:$0xff]
  %v151 = vld [vmem:[%s1 + $0x44] sm:$0xf]
  %v152 = vld [vmem:[%s1 + $0x48] sm:$0xff]
  %v153 = vld [vmem:[%s1 + $0x50] sm:$0xf]
  %v154 = vld [vmem:[%s1 + $0x54] sm:$0xff]
  %v155 = vld [vmem:[%s1 + $0x5c] sm:$0xf]
  %v156 = vld [vmem:[%s1 + $0x60] sm:$0xff]
  %v157 = vld [vmem:[%s1 + $0x68] sm:$0xf]
  %v158 = vld [vmem:[%s1 + $0x6c] sm:$0xff]
  %v159 = vld [vmem:[%s1 + $0x74] sm:$0xf]
  %v160 = vld [vmem:[%s1 + $0x78] sm:$0xff]
  %v161 = vld [vmem:[%s1 + $0x80] sm:$0xf]
  %v162 = vld [vmem:[%s1 + $0x84] sm:$0xff]
  %v163 = vld [vmem:[%s1 + $0x8c] sm:$0xf]
  %v164 = vld [vmem:[%s1 + $0x90] sm:$0xff]
  %v165 = vld [vmem:[%s1 + $0x98] sm:$0xf]
  %v166 = vld [vmem:[%s1 + $0x9c] sm:$0xff]
  %v167 = vld [vmem:[%s1 + $0xa4] sm:$0xf]
  %v168 = vld [vmem:[%s1 + $0xa8] sm:$0xff]
  %v169 = vld [vmem:[%s1 + $0xb0] sm:$0xf]
  %v170 = vld [vmem:[%s1 + $0xb4] sm:$0xff]
  %v171 = vld [vmem:[%s1 + $0xbc] sm:$0xf]
  %v175 = vunpack.c.l.b16 %v128
  %v176 = vunpack.c.l.b16 %v129
  %v177 = vunpack.c.l.b16 %v130
  %v178 = vpack.c.b16 %v176, %v175
  %v179 = vpack.c.b16 %v177, %v177
  %v214 = vunpack.c.l.b16 %v140
  %v215 = vunpack.c.h.b16 %v140
  %v216 = vunpack.c.l.b16 %v141
  %v217 = vunpack.c.l.b16 %v142
  %v218 = vunpack.c.h.b16 %v142
  %v219 = vunpack.c.l.b16 %v143
  %v220 = vunpack.c.l.b16 %v144
  %v221 = vunpack.c.h.b16 %v144
  %v222 = vunpack.c.l.b16 %v145
  %v223 = vunpack.c.l.b16 %v146
  %v224 = vunpack.c.h.b16 %v146
  %v225 = vunpack.c.l.b16 %v147
  %v226 = vunpack.c.l.b16 %v148
  %v227 = vunpack.c.h.b16 %v148
  %v228 = vunpack.c.l.b16 %v149
  %v229 = vunpack.c.l.b16 %v150
  %v230 = vunpack.c.h.b16 %v150
  %v231 = vunpack.c.l.b16 %v151
  %v232 = vunpack.c.l.b16 %v152
  %v233 = vunpack.c.h.b16 %v152
  %v234 = vunpack.c.l.b16 %v153
  %v235 = vunpack.c.l.b16 %v154
  %v236 = vunpack.c.h.b16 %v154
  %v237 = vunpack.c.l.b16 %v155
  %v238 = vunpack.c.l.b16 %v156
  %v239 = vunpack.c.h.b16 %v156
  %v240 = vunpack.c.l.b16 %v157
  %v241 = vunpack.c.l.b16 %v158
  %v242 = vunpack.c.h.b16 %v158
  %v243 = vunpack.c.l.b16 %v159
  %v244 = vunpack.c.l.b16 %v160
  %v245 = vunpack.c.h.b16 %v160
  %v246 = vunpack.c.l.b16 %v161
  %v247 = vunpack.c.l.b16 %v162
  %v248 = vunpack.c.h.b16 %v162
  %v249 = vunpack.c.l.b16 %v163
  %v250 = vunpack.c.l.b16 %v164
  %v251 = vunpack.c.h.b16 %v164
  %v252 = vunpack.c.l.b16 %v165
  %v253 = vunpack.c.l.b16 %v166
  %v254 = vunpack.c.h.b16 %v166
  %v255 = vunpack.c.l.b16 %v167
  %v256 = vunpack.c.l.b16 %v168
  %v257 = vunpack.c.h.b16 %v168
  %v258 = vunpack.c.l.b16 %v169
  %v259 = vunpack.c.l.b16 %v170
  %v260 = vunpack.c.h.b16 %v170
  %v261 = vunpack.c.l.b16 %v171
  %v262 = vpack.c.b16 %v217, %v214
  %v263 = vpack.c.b16 %v218, %v215
  %v264 = vpack.c.b16 %v219, %v216
  %v265 = vpack.c.b16 %v223, %v220
  %v266 = vpack.c.b16 %v224, %v221
  %v267 = vpack.c.b16 %v225, %v222
  %v268 = vpack.c.b16 %v229, %v226
  %v269 = vpack.c.b16 %v230, %v227
  %v270 = vpack.c.b16 %v231, %v228
  %v271 = vpack.c.b16 %v235, %v232
  %v272 = vpack.c.b16 %v236, %v233
  %v273 = vpack.c.b16 %v237, %v234
  %v274 = vpack.c.b16 %v241, %v238
  %v275 = vpack.c.b16 %v242, %v239
  %v276 = vpack.c.b16 %v243, %v240
  %v277 = vpack.c.b16 %v247, %v244
  %v278 = vpack.c.b16 %v248, %v245
  %v279 = vpack.c.b16 %v249, %v246
  %v280 = vpack.c.b16 %v253, %v250
  %v281 = vpack.c.b16 %v254, %v251
  %v282 = vpack.c.b16 %v255, %v252
  %v283 = vpack.c.b16 %v259, %v256
  %v284 = vpack.c.b16 %v260, %v257
  %v285 = vpack.c.b16 %v261, %v258
  %310 = vmatpush.bf16.msra.mxu0 %v283
  %311 = vmatpush.bf16.msra.mxu0 %v280
  %312 = vmatpush.bf16.msra.mxu0 %v277
  %313 = vmatpush.bf16.msra.mxu0 %v274
  %314 = vmatpush.bf16.msra.mxu0 %v271
  %315 = vmatpush.bf16.msra.mxu0 %v268
  %316 = vmatpush.bf16.msra.mxu0 %v265
  %317 = vmatpush.bf16.msra.mxu0 %v262
  %318 = vmatmul.bf16.gmra.mxu0 %v178
  %v319 = vpop.f32.mrf.mxu0
  %v320 = vadd.f32 0.0, %v319
  %v321 = vpop.f32.mrf.mxu0
  %v322 = vadd.f32 0.0, %v321
  %323 = vmatmul.bf16.gmra.mxu0 %v179
  %v324 = vpop.f32.mrf.mxu0
  %v325 = vadd.f32 0.0, %v324
  %v326 = vpop.f32.mrf.mxu0
  %327 = vdwg.mxu0
  %328 = vmatpush.bf16.msra.mxu0 %v284
  %329 = vmatpush.bf16.msra.mxu0 %v281
  %330 = vmatpush.bf16.msra.mxu0 %v278
  %331 = vmatpush.bf16.msra.mxu0 %v275
  %332 = vmatpush.bf16.msra.mxu0 %v272
  %333 = vmatpush.bf16.msra.mxu0 %v269
  %334 = vmatpush.bf16.msra.mxu0 %v266
  %335 = vmatpush.bf16.msra.mxu0 %v263
  %336 = vmatmul.bf16.gmra.mxu0 %v178
  %v337 = vpop.f32.mrf.mxu0
  %v338 = vadd.f32 0.0, %v337
  %v339 = vpop.f32.mrf.mxu0
  %v340 = vadd.f32 0.0, %v339
  %341 = vmatmul.bf16.gmra.mxu0 %v179
  %v342 = vpop.f32.mrf.mxu0
  %v343 = vadd.f32 0.0, %v342
  %v344 = vpop.f32.mrf.mxu0
  %345 = vdwg.mxu0
  %346 = vmatpush.bf16.msra.mxu0 %v285
  %347 = vmatpush.bf16.msra.mxu0 %v282
  %348 = vmatpush.bf16.msra.mxu0 %v279
  %349 = vmatpush.bf16.msra.mxu0 %v276
  %350 = vmatpush.bf16.msra.mxu0 %v273
  %351 = vmatpush.bf16.msra.mxu0 %v270
  %352 = vmatpush.bf16.msra.mxu0 %v267
  %353 = vmatpush.bf16.msra.mxu0 %v264
  %354 = vmatmul.bf16.gmra.mxu0 %v178
  %v355 = vpop.f32.mrf.mxu0
  %v356 = vadd.f32 0.0, %v355
  %v357 = vpop.f32.mrf.mxu0
  %v358 = vadd.f32 0.0, %v357
  %359 = vmatmul.bf16.gmra.mxu0 %v179
  %v360 = vpop.f32.mrf.mxu0
  %v361 = vadd.f32 0.0, %v360
  %v362 = vpop.f32.mrf.mxu0
  %363 = vdwg.mxu0
  %v364 = vadd.f32 %v131, %v320
  %v365 = vadd.f32 %v132, %v338
  %v366 = vadd.f32 %v133, %v356
  %v367 = vadd.f32 %v134, %v322
  %v368 = vadd.f32 %v135, %v340
  %v369 = vadd.f32 %v136, %v358
  %v370 = vadd.f32 %v137, %v325
  %v371 = vadd.f32 %v138, %v343
  %v372 = vadd.f32 %v139, %v361
  %373 = vst [vmem:[#allocation2] sm:$0xff] %v364
  %374 = vst [vmem:[#allocation2 + $0x8] sm:$0xff] %v365
  %375 = vst [vmem:[#allocation2 + $0x10] sm:$0xff] %v366
  %376 = vst [vmem:[#allocation2 + $0x18] sm:$0xff] %v367
  %377 = vst [vmem:[#allocation2 + $0x20] sm:$0xff] %v368
  %378 = vst [vmem:[#allocation2 + $0x28] sm:$0xff] %v369
  %379 = vst [vmem:[#allocation2 + $0x30] sm:$0xff] %v370
  %380 = vst [vmem:[#allocation2 + $0x38] sm:$0xff] %v371
  %381 = vst [vmem:[#allocation2 + $0x40] sm:$0xff] %v372
  // Predicated region
  $region30: #{forward.14} parent=0 // pred_check
    %p382 = pneg %p20
  $region31: #{forward.14} parent=0 // pred_check_branch
    %384 = sbr.rel (%p382) target = $region33
  $region32: #{forward.14} parent=0 // pred_region
    %v385 = vld [vmem:[#allocation2] sm:$0xff]
    %v386 = vld [vmem:[#allocation2 + $0x8] sm:$0xff]
    %v387 = vld [vmem:[#allocation2 + $0x10] sm:$0xff]
    %v388 = vld [vmem:[#allocation2 + $0x18] sm:$0xff]
    %v389 = vld [vmem:[#allocation2 + $0x20] sm:$0xff]
    %v390 = vld [vmem:[#allocation2 + $0x28] sm:$0xff]
    %v391 = vld [vmem:[#allocation2 + $0x30] sm:$0xff]
    %v392 = vld [vmem:[#allocation2 + $0x38] sm:$0xff]
    %v393 = vld [vmem:[#allocation2 + $0x40] sm:$0xff]
    %v394 = vld [vmem:[%s2] sm:$0x7]
    %v395 = vunpack.c.l.bf16 %v394
    %v397 = vperm.slane %v395, 0
    %v398 = vperm.slane %v395, 2
    %v399 = vperm.slane %v395, 4
    %v403 = vperm.slane %v397, 0
    %v404 = vperm.slane %v398, 0
    %v405 = vperm.slane %v399, 0
    %v406 = vadd.f32 %v385, %v403
    %v407 = vadd.f32 %v386, %v404
    %v408 = vadd.f32 %v387, %v405
    %v409 = vadd.f32 %v388, %v403
    %v410 = vadd.f32 %v389, %v404
    %v411 = vadd.f32 %v390, %v405
    %v412 = vadd.f32 %v391, %v403
    %v413 = vadd.f32 %v392, %v404
    %v414 = vadd.f32 %v393, %v405
    %v415 = vpack.c.bf16 %v407, %v406
    %v416 = vpack.c.bf16 %v408, %v408
    %v417 = vpack.c.bf16 %v410, %v409
    %v418 = vpack.c.bf16 %v411, %v411
    %v419 = vpack.c.bf16 %v413, %v412
    %v420 = vpack.c.bf16 %v414, %v414
    %421 = vst [vmem:[%s5] sm:$0xff] %v415
    %422 = vst [vmem:[%s5 + $0x8] sm:$0xf] %v416
    %423 = vst [vmem:[%s5 + $0xc] sm:$0xff] %v417
    %424 = vst [vmem:[%s5 + $0x14] sm:$0xf] %v418
    %425 = vst [vmem:[%s5 + $0x18] sm:$0xff] %v419
    %426 = vst [vmem:[%s5 + $0x20] sm:$0xf] %v420
  $region33: #{forward.14} parent=0 // pred_fallthru
    _
  // Predicated region
  $region34: #{forward.14} parent=0 // pred_check
    _
  $region35: #{forward.14} parent=0 // pred_check_branch
    %428 = sbr.rel (0) target = $region37
  $region36: #{forward.14} parent=0 // pred_region
    _
  $region37: #{forward.14} parent=0 // pred_fallthru
    _
  // Predicated region
  $region38: #{forward.14} parent=0 // pred_check
    _
  $region39: #{forward.14} parent=0 // pred_check_branch
    %430 = sbr.rel (0) target = $region41
  $region40: #{forward.14} parent=0 // pred_region
    _
  $region41: #{forward.14} parent=0 // pred_fallthru
    _

// kernel: forward.15
$region0: #{forward.15}
  #allocation0 [shape = 'u32[]', space=smem, size = 0x4, offset = 0x4, fixed_abs, tag = 'smem constant byte address 0x4 - core index']
  #allocation1 [shape = 'u32[72,128]{1,0:T(1,128)}', space=vmem, size = 0x9000, scoped, tag = 'internal scratch']
  #allocation2 [shape = 'f32[2,16,1]{2,1,0:T(8,128)}', space=vmem, size = 0x4000, scoped, tag = 'scratch operand']
  #allocation3 [shape = 'f32[2,16,1]{2,1,0:T(8,128)}', space=vmem, size = 0x4000, scoped, tag = 'scratch operand']
  #allocation4 [shape = 'f32[16,128]{1,0:T(8,128)}', space=vmem, size = 0x2000, scoped, tag = 'scratch operand']
  %s0 = inlined_call_operand.vmem [shape: bf16[2,16,384], index: 0, kind: input, shape index: {}, may-alias: {0,1,2}]
  %s1 = inlined_call_operand.vmem [shape: bf16[2,16,384], index: 1, kind: input, shape index: {}, may-alias: {0,1,2}]
  %s2 = inlined_call_operand.vmem [shape: bf16[2,16,384], index: 2, kind: input, shape index: {}, may-alias: {0,1,2}]
  %s3 = inlined_call_operand.vmem [shape: bf16[2,16,128], index: 3, kind: output, shape index: {}]
  %s4 = sld [smem:[#allocation0]]
  $region176: #{forward.15} parent=0
    _
  %s6 = ssub.s32 1, %s4
  %s7 = scalar_select 0, %s6, %s4
  $region1: #{forward.15} parent=0
    #allocation5 [shape = 'u8[8192]{0}', space=vmem, size = 0x2000, scoped, tag = 'input window, operand 0']
    #allocation6 [shape = 'u8[8192]{0}', space=vmem, size = 0x2000, scoped, tag = 'input window, operand 1']
    #allocation7 [shape = 'u8[8192]{0}', space=vmem, size = 0x2000, scoped, tag = 'input window, operand 2']
    loop: start=0, step=1, limit=4
    $region2: #{forward.15} parent=1 // loop_pre_header
      _
    $region3: #{forward.15} parent=1 // loop_header
      %s9 = sphi 0, %s13
      %p10 = scmp.ge.s32.totalorder %s9, 4
      %s16 = sphi 0, %s35
      %s17 = sphi 0, %s31
      %s18 = sphi 0, %s27
      %s19 = sphi 0, %s16
      %s20 = sphi 0, %s17
      %s21 = sphi 0, %s18
      %s22 = sphi 0, %s19
      %s23 = sphi 0, %s20
      %s24 = sphi 0, %s21
      %s40 = sphi 0, %s42
      %s43 = sphi 0, %s40
      %s44 = sphi 0, %s43
      %s60 = sphi 0, %s44
      %s72 = sphi 0, %s74
      %s75 = sphi 0, %s72
      %s76 = sphi 0, %s75
      %s92 = sphi 0, %s76
      %s104 = sphi 0, %s106
      %s107 = sphi 0, %s104
      %s108 = sphi 0, %s107
      %s124 = sphi 0, %s108
      %s132 = sphi 0, %s134
      %s135 = sphi 0, %s132
      %s136 = sphi 0, %s135
      %s152 = sphi 0, %s136
    $region4: #{forward.15} parent=1 // loop_header_branch
      %12 = sbr.rel (%p10) target = $region8
    $region5: #{forward.15} parent=1 // loop_body
      %s14 = ssub.s32 %s9, 1
      %s15 = ssub.s32 %s9, 2
      %s25 = sadd.s32 1, %s18
      %p26 = scmp.ge.s32.totalorder %s25, 1
      %s27 = scalar_select %p26, 0, %s25
      %s28 = sadd.s32 1, %s17
      %s29 = scalar_select %p26, %s28, %s17
      %p30 = scmp.ge.s32.totalorder %s29, 1
      %s31 = scalar_select %p30, 0, %s29
      %s32 = sadd.s32 1, %s16
      %s33 = scalar_select %p30, %s32, %s16
      %p34 = scmp.ge.s32.totalorder %s33, 2
      %s35 = scalar_select %p34, 0, %s33
      %s36 = ssub.s32 %s16, %s35
      %s37 = ssub.s32 %s17, %s31
      %s38 = sor.u32 %s36, %s37
      %p39 = scmp.eq.s32.totalorder %s38, 0
      %s41 = sadd.s32 %s40, 1
      %s42 = scalar_select %p39, %s40, %s41
      %p45 = pneg %p39
      %p46 = scmp.eq.s32.totalorder %s9, 1
      %p47 = por %p45, %p46
      %p48 = scmp.ne.s32.totalorder %s40, %s43
      %p49 = scmp.eq.s32.totalorder %s9, 0
      %p50 = por %p48, %p49
      %p51 = scmp.ne.s32.totalorder %s40, %s43
      %p52 = scmp.eq.s32.totalorder %s14, 1
      %p53 = por %p51, %p52
      %p54 = scmp.ne.s32.totalorder %s43, %s44
      %p55 = scmp.eq.s32.totalorder %s14, 0
      %p56 = por %p54, %p55
      %p57 = scmp.ne.s32.totalorder %s43, %s44
      %p58 = scmp.eq.s32.totalorder %s15, 1
      %p59 = por %p57, %p58
      %p61 = scmp.ne.s32.totalorder %s44, %s60
      %p62 = scmp.eq.s32.totalorder %s15, 0
      %p63 = por %p61, %p62
      %s64 = sadd.s32 %s17, 1
      %s65 = sadd.s32 %s31, 1
      %s66 = ssub.s32 %s16, %s35
      %s67 = ssub.s32 %s18, %s27
      %s68 = sor.u32 %s66, %s67
      %s69 = ssub.s32 %s64, %s65
      %s70 = sor.u32 %s68, %s69
      %p71 = scmp.eq.s32.totalorder %s70, 0
      %s73 = sadd.s32 %s72, 1
      %s74 = scalar_select %p71, %s72, %s73
      %p77 = pneg %p71
      %p78 = scmp.eq.s32.totalorder %s9, 1
      %p79 = por %p77, %p78
      %p80 = scmp.ne.s32.totalorder %s72, %s75
      %p81 = scmp.eq.s32.totalorder %s9, 0
      %p82 = por %p80, %p81
      %p83 = scmp.ne.s32.totalorder %s72, %s75
      %p84 = scmp.eq.s32.totalorder %s14, 1
      %p85 = por %p83, %p84
      %p86 = scmp.ne.s32.totalorder %s75, %s76
      %p87 = scmp.eq.s32.totalorder %s14, 0
      %p88 = por %p86, %p87
      %p89 = scmp.ne.s32.totalorder %s75, %s76
      %p90 = scmp.eq.s32.totalorder %s15, 1
      %p91 = por %p89, %p90
      %p93 = scmp.ne.s32.totalorder %s76, %s92
      %p94 = scmp.eq.s32.totalorder %s15, 0
      %p95 = por %p93, %p94
      %s96 = sadd.s32 %s17, 2
      %s97 = sadd.s32 %s31, 2
      %s98 = ssub.s32 %s16, %s35
      %s99 = ssub.s32 %s18, %s27
      %s100 = sor.u32 %s98, %s99
      %s101 = ssub.s32 %s96, %s97
      %s102 = sor.u32 %s100, %s101
      %p103 = scmp.eq.s32.totalorder %s102, 0
      %s105 = sadd.s32 %s104, 1
      %s106 = scalar_select %p103, %s104, %s105
      %p109 = pneg %p103
      %p110 = scmp.eq.s32.totalorder %s9, 1
      %p111 = por %p109, %p110
      %p112 = scmp.ne.s32.totalorder %s104, %s107
      %p113 = scmp.eq.s32.totalorder %s9, 0
      %p114 = por %p112, %p113
      %p115 = scmp.ne.s32.totalorder %s104, %s107
      %p116 = scmp.eq.s32.totalorder %s14, 1
      %p117 = por %p115, %p116
      %p118 = scmp.ne.s32.totalorder %s107, %s108
      %p119 = scmp.eq.s32.totalorder %s14, 0
      %p120 = por %p118, %p119
      %p121 = scmp.ne.s32.totalorder %s107, %s108
      %p122 = scmp.eq.s32.totalorder %s15, 1
      %p123 = por %p121, %p122
      %p125 = scmp.ne.s32.totalorder %s108, %s124
      %p126 = scmp.eq.s32.totalorder %s15, 0
      %p127 = por %p125, %p126
      %s128 = ssub.s32 %s16, %s35
      %s129 = ssub.s32 %s17, %s31
      %s130 = sor.u32 %s128, %s129
      %p131 = scmp.eq.s32.totalorder %s130, 0
      %s133 = sadd.s32 %s132, 1
      %s134 = scalar_select %p131, %s132, %s133
      %p137 = pneg %p131
      %p138 = scmp.eq.s32.totalorder %s9, 1
      %p139 = por %p137, %p138
      %p140 = scmp.ne.s32.totalorder %s132, %s135
      %p141 = scmp.eq.s32.totalorder %s9, 0
      %p142 = por %p140, %p141
      %p143 = scmp.ne.s32.totalorder %s132, %s135
      %p144 = scmp.eq.s32.totalorder %s14, 1
      %p145 = por %p143, %p144
      %p146 = scmp.ne.s32.totalorder %s135, %s136
      %p147 = scmp.eq.s32.totalorder %s14, 0
      %p148 = por %p146, %p147
      %p149 = scmp.ne.s32.totalorder %s135, %s136
      %p150 = scmp.eq.s32.totalorder %s15, 1
      %p151 = por %p149, %p150
      %p153 = scmp.ne.s32.totalorder %s136, %s152
      %p154 = scmp.eq.s32.totalorder %s15, 0
      %p155 = por %p153, %p154
      %p156 = scmp.le.s32.totalorder 1, %s9
      %p157 = scmp.lt.s32.totalorder %s9, 3
      %p158 = pnand %p156, %p157
      %p159 = pneg %p158
      // Predicated region
      $region9: #{forward.15} parent=5 // pred_check
        _
      $region10: #{forward.15} parent=5 // pred_check_branch
        %161 = sbr.rel (%p158) target = $region12
      $region11: #{forward.15} parent=5 // pred_region
        %s162 = ssub.s32 %s9, 1
      $region12: #{forward.15} parent=5 // pred_fallthru
        _
      %p163 = scmp.lt.s32.totalorder %s9, 2
      // Predicated region
      $region13: #{forward.15} parent=5 // pred_check
        %p164 = pneg %p163
      $region14: #{forward.15} parent=5 // pred_check_branch
        %166 = sbr.rel (%p164) target = $region16
      $region15: #{forward.15} parent=5 // pred_region
        // Predicated region
        $region17: #{forward.15} parent=15 // pred_check
          %p167 = pneg %p50
        $region18: #{forward.15} parent=15 // pred_check_branch
          %169 = sbr.rel (%p167) target = $region20
        $region19: #{forward.15} parent=15 // pred_region
          %s170 = sand.u32 %s40, 1
          %s171 = sand.u32 %s40, 1
          %s172 = smul.addr %s171, 8
          %s173 = scalar_lea.vmem [#allocation5], %s172
          %s174 = smul.addr %s16, 6
          %s175 = sadd.s32 %s17, %s174
          %s176 = smul.addr %s175, 4
          %s177 = scalar_lea.vmem %s0, %s176
          // Predicated region
          $region21: #{forward.15} parent=19 // pred_check
            _
          $region22: #{forward.15} parent=19 // pred_check_branch
            %179 = sbr.rel (0) target = $region24
          $region23: #{forward.15} parent=19 // pred_region
            // Predicated region
            $region25: #{forward.15} parent=23 // pred_check
              _
            $region26: #{forward.15} parent=23 // pred_check_branch
              %181 = sbr.rel target = $region28
            $region27: #{forward.15} parent=23 // pred_region
              // Predicated region
              $region40: #{forward.15} parent=27 // pred_check
                _
              $region41: #{forward.15} parent=27 // pred_check_branch
                %199 = sbr.rel (0) target = $region43
              $region42: #{forward.15} parent=27 // pred_region
                loop: start=0, step=1, limit=1
                $region44: #{forward.15} parent=42 // loop_pre_header
                  _
                $region45: #{forward.15} parent=42 // loop_header
                  %s201 = sphi 0, %s205
                  %p202 = scmp.ge.s32.totalorder %s201, 1
                  %s206 = sphi %s177, %s177
                  %s207 = sphi %s173, %s173
                $region46: #{forward.15} parent=42 // loop_header_branch
                  %204 = sbr.rel (%p202) target = $region50
                $region47: #{forward.15} parent=42 // loop_body
                  _
                $region48: #{forward.15} parent=42 // loop_footer
                  %s205 = sadd.s32 1, %s201
                $region49: #{forward.15} parent=42 // loop_footer_branch
                  %200 = sbr.rel target = $region45
                $region50: #{forward.15} parent=42 // loop_exit
                  _
                %s209 = ssub.s32 16, 1
                loop: start=0, step=1, limit=1
                $region51: #{forward.15} parent=42 // loop_pre_header
                  _
                $region52: #{forward.15} parent=42 // loop_header
                  %s211 = sphi 0, %s215
                  %p212 = scmp.ge.s32.totalorder %s211, 1
                  %s216 = sphi %s177, %s177
                  %s217 = sphi %s173, %s173
                $region53: #{forward.15} parent=42 // loop_header_branch
                  %214 = sbr.rel (%p212) target = $region57
                $region54: #{forward.15} parent=42 // loop_body
                  %v218 = vld [vmem:[%s216] sm:%s209]
                  %219 = vst [vmem:[%s217] sm:%s209] %v218
                  %v220 = vld [vmem:[%s216 + $0xc] sm:%s209]
                  %221 = vst [vmem:[%s217 + $0x4] sm:%s209] %v220
                $region55: #{forward.15} parent=42 // loop_footer
                  %s215 = sadd.s32 1, %s211
                $region56: #{forward.15} parent=42 // loop_footer_branch
                  %210 = sbr.rel target = $region52
                $region57: #{forward.15} parent=42 // loop_exit
                  _
              $region43: #{forward.15} parent=27 // pred_fallthru
                _
            $region28: #{forward.15} parent=23 // pred_fallthru
              _
            // Predicated region
            $region29: #{forward.15} parent=23 // pred_check
              _
            $region30: #{forward.15} parent=23 // pred_check_branch
              %183 = sbr.rel (0) target = $region32
            $region31: #{forward.15} parent=23 // pred_region
              %s185 = ssub.s32 16, 1
              loop: start=0, step=1, limit=1
              $region33: #{forward.15} parent=31 // loop_pre_header
                _
              $region34: #{forward.15} parent=31 // loop_header
                %s187 = sphi 0, %s191
                %p188 = scmp.ge.s32.totalorder %s187, 1
                %s192 = sphi %s177, %s177
                %s193 = sphi %s173, %s173
              $region35: #{forward.15} parent=31 // loop_header_branch
                %190 = sbr.rel (%p188) target = $region39
              $region36: #{forward.15} parent=31 // loop_body
                %v194 = vld [vmem:[%s192] sm:%s185]
                %195 = vst [vmem:[%s193] sm:%s185] %v194
                %v196 = vld [vmem:[%s192 + $0xc] sm:%s185]
                %197 = vst [vmem:[%s193 + $0x4] sm:%s185] %v196
              $region37: #{forward.15} parent=31 // loop_footer
                %s191 = sadd.s32 1, %s187
              $region38: #{forward.15} parent=31 // loop_footer_branch
                %186 = sbr.rel target = $region34
              $region39: #{forward.15} parent=31 // loop_exit
                _
            $region32: #{forward.15} parent=23 // pred_fallthru
              _
          $region24: #{forward.15} parent=19 // pred_fallthru
            _
          %222 = vnop
        $region20: #{forward.15} parent=15 // pred_fallthru
          _
        // Predicated region
        $region58: #{forward.15} parent=15 // pred_check
          %p223 = pneg %p82
        $region59: #{forward.15} parent=15 // pred_check_branch
          %225 = sbr.rel (%p223) target = $region61
        $region60: #{forward.15} parent=15 // pred_region
          %s226 = sand.u32 %s72, 1
          %s227 = sand.u32 %s72, 1
          %s228 = smul.addr %s227, 8
          %s229 = scalar_lea.vmem [#allocation6], %s228
          %s230 = sadd.s32 %s17, 1
          %s231 = smul.u32 2, %s18
          %s232 = smul.addr %s231, 3
          %s233 = sadd.s32 %s230, %s232
          %s234 = smul.addr %s16, 6
          %s235 = sadd.s32 %s233, %s234
          %s236 = smul.addr %s235, 4
          %s237 = scalar_lea.vmem %s1, %s236
          // Predicated region
          $region62: #{forward.15} parent=60 // pred_check
            _
          $region63: #{forward.15} parent=60 // pred_check_branch
            %239 = sbr.rel (0) target = $region65
          $region64: #{forward.15} parent=60 // pred_region
            // Predicated region
            $region66: #{forward.15} parent=64 // pred_check
              _
            $region67: #{forward.15} parent=64 // pred_check_branch
              %241 = sbr.rel target = $region69
            $region68: #{forward.15} parent=64 // pred_region
              // Predicated region
              $region81: #{forward.15} parent=68 // pred_check
                _
              $region82: #{forward.15} parent=68 // pred_check_branch
                %259 = sbr.rel (0) target = $region84
              $region83: #{forward.15} parent=68 // pred_region
                loop: start=0, step=1, limit=1
                $region85: #{forward.15} parent=83 // loop_pre_header
                  _
                $region86: #{forward.15} parent=83 // loop_header
                  %s261 = sphi 0, %s265
                  %p262 = scmp.ge.s32.totalorder %s261, 1
                  %s266 = sphi %s237, %s237
                  %s267 = sphi %s229, %s229
                $region87: #{forward.15} parent=83 // loop_header_branch
                  %264 = sbr.rel (%p262) target = $region91
                $region88: #{forward.15} parent=83 // loop_body
                  _
                $region89: #{forward.15} parent=83 // loop_footer
                  %s265 = sadd.s32 1, %s261
                $region90: #{forward.15} parent=83 // loop_footer_branch
                  %260 = sbr.rel target = $region86
                $region91: #{forward.15} parent=83 // loop_exit
                  _
                %s269 = ssub.s32 16, 1
                loop: start=0, step=1, limit=1
                $region92: #{forward.15} parent=83 // loop_pre_header
                  _
                $region93: #{forward.15} parent=83 // loop_header
                  %s271 = sphi 0, %s275
                  %p272 = scmp.ge.s32.totalorder %s271, 1
                  %s276 = sphi %s237, %s237
                  %s277 = sphi %s229, %s229
                $region94: #{forward.15} parent=83 // loop_header_branch
                  %274 = sbr.rel (%p272) target = $region98
                $region95: #{forward.15} parent=83 // loop_body
                  %v278 = vld [vmem:[%s276] sm:%s269]
                  %279 = vst [vmem:[%s277] sm:%s269] %v278
                  %v280 = vld [vmem:[%s276 + $0xc] sm:%s269]
                  %281 = vst [vmem:[%s277 + $0x4] sm:%s269] %v280
                $region96: #{forward.15} parent=83 // loop_footer
                  %s275 = sadd.s32 1, %s271
                $region97: #{forward.15} parent=83 // loop_footer_branch
                  %270 = sbr.rel target = $region93
                $region98: #{forward.15} parent=83 // loop_exit
                  _
              $region84: #{forward.15} parent=68 // pred_fallthru
                _
            $region69: #{forward.15} parent=64 // pred_fallthru
              _
            // Predicated region
            $region70: #{forward.15} parent=64 // pred_check
              _
            $region71: #{forward.15} parent=64 // pred_check_branch
              %243 = sbr.rel (0) target = $region73
            $region72: #{forward.15} parent=64 // pred_region
              %s245 = ssub.s32 16, 1
              loop: start=0, step=1, limit=1
              $region74: #{forward.15} parent=72 // loop_pre_header
                _
              $region75: #{forward.15} parent=72 // loop_header
                %s247 = sphi 0, %s251
                %p248 = scmp.ge.s32.totalorder %s247, 1
                %s252 = sphi %s237, %s237
                %s253 = sphi %s229, %s229
              $region76: #{forward.15} parent=72 // loop_header_branch
                %250 = sbr.rel (%p248) target = $region80
              $region77: #{forward.15} parent=72 // loop_body
                %v254 = vld [vmem:[%s252] sm:%s245]
                %255 = vst [vmem:[%s253] sm:%s245] %v254
                %v256 = vld [vmem:[%s252 + $0xc] sm:%s245]
                %257 = vst [vmem:[%s253 + $0x4] sm:%s245] %v256
              $region78: #{forward.15} parent=72 // loop_footer
                %s251 = sadd.s32 1, %s247
              $region79: #{forward.15} parent=72 // loop_footer_branch
                %246 = sbr.rel target = $region75
              $region80: #{forward.15} parent=72 // loop_exit
                _
            $region73: #{forward.15} parent=64 // pred_fallthru
              _
          $region65: #{forward.15} parent=60 // pred_fallthru
            _
          %282 = vnop
        $region61: #{forward.15} parent=15 // pred_fallthru
          _
        // Predicated region
        $region99: #{forward.15} parent=15 // pred_check
          %p283 = pneg %p114
        $region100: #{forward.15} parent=15 // pred_check_branch
          %285 = sbr.rel (%p283) target = $region102
        $region101: #{forward.15} parent=15 // pred_region
          %s286 = sand.u32 %s104, 1
          %s287 = sand.u32 %s104, 1
          %s288 = smul.addr %s287, 8
          %s289 = scalar_lea.vmem [#allocation7], %s288
          %s290 = sadd.s32 %s17, 2
          %s291 = smul.u32 2, %s18
          %s292 = smul.addr %s291, 3
          %s293 = sadd.s32 %s290, %s292
          %s294 = smul.addr %s16, 6
          %s295 = sadd.s32 %s293, %s294
          %s296 = smul.addr %s295, 4
          %s297 = scalar_lea.vmem %s2, %s296
          // Predicated region
          $region103: #{forward.15} parent=101 // pred_check
            _
          $region104: #{forward.15} parent=101 // pred_check_branch
            %299 = sbr.rel (0) target = $region106
          $region105: #{forward.15} parent=101 // pred_region
            // Predicated region
            $region107: #{forward.15} parent=105 // pred_check
              _
            $region108: #{forward.15} parent=105 // pred_check_branch
              %301 = sbr.rel target = $region110
            $region109: #{forward.15} parent=105 // pred_region
              // Predicated region
              $region122: #{forward.15} parent=109 // pred_check
                _
              $region123: #{forward.15} parent=109 // pred_check_branch
                %319 = sbr.rel (0) target = $region125
              $region124: #{forward.15} parent=109 // pred_region
                loop: start=0, step=1, limit=1
                $region126: #{forward.15} parent=124 // loop_pre_header
                  _
                $region127: #{forward.15} parent=124 // loop_header
                  %s321 = sphi 0, %s325
                  %p322 = scmp.ge.s32.totalorder %s321, 1
                  %s326 = sphi %s297, %s297
                  %s327 = sphi %s289, %s289
                $region128: #{forward.15} parent=124 // loop_header_branch
                  %324 = sbr.rel (%p322) target = $region132
                $region129: #{forward.15} parent=124 // loop_body
                  _
                $region130: #{forward.15} parent=124 // loop_footer
                  %s325 = sadd.s32 1, %s321
                $region131: #{forward.15} parent=124 // loop_footer_branch
                  %320 = sbr.rel target = $region127
                $region132: #{forward.15} parent=124 // loop_exit
                  _
                %s329 = ssub.s32 16, 1
                loop: start=0, step=1, limit=1
                $region133: #{forward.15} parent=124 // loop_pre_header
                  _
                $region134: #{forward.15} parent=124 // loop_header
                  %s331 = sphi 0, %s335
                  %p332 = scmp.ge.s32.totalorder %s331, 1
                  %s336 = sphi %s297, %s297
                  %s337 = sphi %s289, %s289
                $region135: #{forward.15} parent=124 // loop_header_branch
                  %334 = sbr.rel (%p332) target = $region139
                $region136: #{forward.15} parent=124 // loop_body
                  %v338 = vld [vmem:[%s336] sm:%s329]
                  %339 = vst [vmem:[%s337] sm:%s329] %v338
                  %v340 = vld [vmem:[%s336 + $0xc] sm:%s329]
                  %341 = vst [vmem:[%s337 + $0x4] sm:%s329] %v340
                $region137: #{forward.15} parent=124 // loop_footer
                  %s335 = sadd.s32 1, %s331
                $region138: #{forward.15} parent=124 // loop_footer_branch
                  %330 = sbr.rel target = $region134
                $region139: #{forward.15} parent=124 // loop_exit
                  _
              $region125: #{forward.15} parent=109 // pred_fallthru
                _
            $region110: #{forward.15} parent=105 // pred_fallthru
              _
            // Predicated region
            $region111: #{forward.15} parent=105 // pred_check
              _
            $region112: #{forward.15} parent=105 // pred_check_branch
              %303 = sbr.rel (0) target = $region114
            $region113: #{forward.15} parent=105 // pred_region
              %s305 = ssub.s32 16, 1
              loop: start=0, step=1, limit=1
              $region115: #{forward.15} parent=113 // loop_pre_header
                _
              $region116: #{forward.15} parent=113 // loop_header
                %s307 = sphi 0, %s311
                %p308 = scmp.ge.s32.totalorder %s307, 1
                %s312 = sphi %s297, %s297
                %s313 = sphi %s289, %s289
              $region117: #{forward.15} parent=113 // loop_header_branch
                %310 = sbr.rel (%p308) target = $region121
              $region118: #{forward.15} parent=113 // loop_body
                %v314 = vld [vmem:[%s312] sm:%s305]
                %315 = vst [vmem:[%s313] sm:%s305] %v314
                %v316 = vld [vmem:[%s312 + $0xc] sm:%s305]
                %317 = vst [vmem:[%s313 + $0x4] sm:%s305] %v316
              $region119: #{forward.15} parent=113 // loop_footer
                %s311 = sadd.s32 1, %s307
              $region120: #{forward.15} parent=113 // loop_footer_branch
                %306 = sbr.rel target = $region116
              $region121: #{forward.15} parent=113 // loop_exit
                _
            $region114: #{forward.15} parent=105 // pred_fallthru
              _
          $region106: #{forward.15} parent=101 // pred_fallthru
            _
          %342 = vnop
        $region102: #{forward.15} parent=15 // pred_fallthru
          _
      $region16: #{forward.15} parent=5 // pred_fallthru
        _
      %p343 = scmp.le.s32.totalorder 1, %s9
      %p344 = scmp.lt.s32.totalorder %s9, 3
      %p345 = pnand %p343, %p344
      %p346 = pneg %p345
      // Predicated region
      $region140: #{forward.15} parent=5 // pred_check
        _
      $region141: #{forward.15} parent=5 // pred_check_branch
        %348 = sbr.rel (%p345) target = $region143
      $region142: #{forward.15} parent=5 // pred_region
        %s349 = ssub.s32 %s9, 1
        %s350 = sand.u32 %s43, 1
        %s351 = sand.u32 %s43, 1
        %s352 = smul.addr %s351, 8
        %s353 = scalar_lea.vmem [#allocation5], %s352
        // Predicated region
        $region144: #{forward.15} parent=142 // pred_check
          %p354 = pneg %p56
        $region145: #{forward.15} parent=142 // pred_check_branch
          %356 = sbr.rel (%p354) target = $region147
        $region146: #{forward.15} parent=142 // pred_region
          _
        $region147: #{forward.15} parent=142 // pred_fallthru
          _
        %s357 = sand.u32 %s75, 1
        %s358 = sand.u32 %s75, 1
        %s359 = smul.addr %s358, 8
        %s360 = scalar_lea.vmem [#allocation6], %s359
        // Predicated region
        $region148: #{forward.15} parent=142 // pred_check
          %p361 = pneg %p88
        $region149: #{forward.15} parent=142 // pred_check_branch
          %363 = sbr.rel (%p361) target = $region151
        $region150: #{forward.15} parent=142 // pred_region
          _
        $region151: #{forward.15} parent=142 // pred_fallthru
          _
        %s364 = sand.u32 %s107, 1
        %s365 = sand.u32 %s107, 1
        %s366 = smul.addr %s365, 8
        %s367 = scalar_lea.vmem [#allocation7], %s366
        // Predicated region
        $region152: #{forward.15} parent=142 // pred_check
          %p368 = pneg %p120
        $region153: #{forward.15} parent=142 // pred_check_branch
          %370 = sbr.rel (%p368) target = $region155
        $region154: #{forward.15} parent=142 // pred_region
          _
        $region155: #{forward.15} parent=142 // pred_fallthru
          _
        %s371 = sand.u32 %s43, 1
        %s372 = sand.u32 %s43, 1
        %s373 = smul.addr %s372, 8
        %s374 = scalar_lea.vmem [#allocation5], %s373
        %p375 = pneg %p56
        %p376 = pneg %p53
        %s377 = sand.u32 %s75, 1
        %s378 = sand.u32 %s75, 1
        %s379 = smul.addr %s378, 8
        %s380 = scalar_lea.vmem [#allocation6], %s379
        %p381 = pneg %p88
        %p382 = pneg %p85
        %s383 = sand.u32 %s107, 1
        %s384 = sand.u32 %s107, 1
        %s385 = smul.addr %s384, 8
        %s386 = scalar_lea.vmem [#allocation7], %s385
        %p387 = pneg %p120
        %p388 = pneg %p117
        %p389 = pneg %p148
        %p390 = pneg %p145
        %p391 = scmp.lt.s32.totalorder %s19, 1
        %s392 = scalar_select %p391, %s19, 1
        %p393 = scmp.lt.s32.totalorder %s20, 0
        %s394 = scalar_select %p393, %s20, 0
        %s395 = smul.addr %s392, 2
        %s396 = sadd.s32 %s394, %s395
        %s397 = smul.addr %s396, 4
        %s398 = scalar_lea.vmem %s3, %s397
        %s399 = sadd.s32 %s20, 1
        %s400 = smul.u32 2, %s21
        %s401 = sadd.s32 %s20, 2
        %s402 = smul.u32 2, %s21
        %p403 = scmp.lt.s32.totalorder %s19, 1
        %s404 = scalar_select %p403, %s19, 1
        %p405 = scmp.lt.s32.totalorder %s20, 0
        %s406 = scalar_select %p405, %s20, 0
        %s407 = smul.addr %s404, 2
        %s408 = sadd.s32 %s406, %s407
        %s409 = smul.addr %s408, 4
        %s410 = scalar_lea.vmem %s3, %s409
        %p412 = scmp.eq.s32.totalorder %s21, 0
        // Predicated region
        $region156: #{forward.15} parent=142 // pred_check
          %p413 = pneg %p412
        $region157: #{forward.15} parent=142 // pred_check_branch
          %415 = sbr.rel (%p413) target = $region159
        $region158: #{forward.15} parent=142 // pred_region
          %vm416 = vcmask 7168
          %417 = vst.msk [vmem:[#allocation2] sm:$0xff] %vm416, -1e+30
          %418 = vst.msk [vmem:[#allocation2 + $0x8] sm:$0xff] %vm416, -1e+30
          %419 = vst.msk [vmem:[#allocation2 + $0x10] sm:$0xff] %vm416, -1e+30
          %420 = vst.msk [vmem:[#allocation2 + $0x18] sm:$0xff] %vm416, -1e+30
          %421 = vst.msk [vmem:[#allocation3] sm:$0xff] %vm416, 0.0
          %422 = vst.msk [vmem:[#allocation3 + $0x8] sm:$0xff] %vm416, 0.0
          %423 = vst.msk [vmem:[#allocation3 + $0x10] sm:$0xff] %vm416, 0.0
          %424 = vst.msk [vmem:[#allocation3 + $0x18] sm:$0xff] %vm416, 0.0
          %425 = vst [vmem:[#allocation4] sm:$0xff] 0.0
          %426 = vst [vmem:[#allocation4 + $0x8] sm:$0xff] 0.0
        $region159: #{forward.15} parent=142 // pred_fallthru
          _
        %s427 = smul.u32 %s21, 16
        %v428 = vlaneseq
        %v429 = vand.u32 %v428, 127
        %v430 = vstv %s427
        %v431 = vadd.s32 %v430, %v429
        %v432 = vld [vmem:[%s353] sm:$0xf]
        %v433 = vld [vmem:[%s353 + $0x4] sm:$0xf]
        %v434 = vld [vmem:[%s360] sm:$0xf]
        %v435 = vld [vmem:[%s360 + $0x4] sm:$0xf]
        %v436 = vld [vmem:[%s367] sm:$0xf]
        %v437 = vld [vmem:[%s367 + $0x4] sm:$0xf]
        %v440 = vunpack.c.l.b16 %v432
        %v441 = vunpack.c.l.b16 %v433
        %v442 = vpack.c.b16 %v441, %v440
        %v445 = vunpack.c.l.b16 %v434
        %v446 = vunpack.c.l.b16 %v435
        %v447 = vpack.c.b16 %v446, %v445
        %vm448 = vcmask 523264
        %v450 = vsel %vm448, %v442, 0
        %v453 = vsel %vm448, %v447, 0
        %455 = vmatpush.bf16.xpose.msra.mxu0 0
        %456 = vmatpush.bf16.xpose.msra.mxu0 0
        %457 = vmatpush.bf16.xpose.msra.mxu0 0
        %458 = vmatpush.bf16.xpose.msra.mxu0 0
        %459 = vmatpush.bf16.xpose.msra.mxu0 0
        %460 = vmatpush.bf16.xpose.msra.mxu0 0
        %461 = vmatpush.bf16.xpose.msra.mxu0 0
        %462 = vmatpush.bf16.xpose.msra.mxu0 %v453
        %463 = vmatmul.bf16.gmra.mxu0 %v450
        %v464 = vpop.f32.mrf.mxu0
        %v465 = vadd.f32 0.0, %v464
        %v466 = vpop.f32.mrf.mxu0
        %v467 = vadd.f32 0.0, %v466
        %468 = vdwg.mxu0
        %vm469 = vcmp.lt.s32.totalorder %v431, 10
        %v470 = vsel %vm469, 1, 0
        %vm471 = vcmp.eq.s32.totalorder %v470, 1
        %v472 = vsel %vm471, %v465, -1e+30
        %v473 = vsel %vm471, %v467, -1e+30
        %v474 = vld [vmem:[#allocation2] sm:$0xff]
        %v475 = vld [vmem:[#allocation2 + $0x8] sm:$0xff]
        %vm476 = vcmask 130048
        %v477 = vsel %vm476, %v472, -inf
        %478 = vmax.xlane.f32.xlu0 %v477
        %v479 = vpop.xlane.xlu0 %478
        %v480 = vsel %vm476, %v473, -inf
        %481 = vmax.xlane.f32.xlu0 %v480
        %v482 = vpop.xlane.xlu0 %481
        %v483 = vmax.f32 %v474, %v479
        %v484 = vmax.f32 %v475, %v482
        %v485 = vsub.f32 %v474, %v483
        %v486 = vsub.f32 %v475, %v484
        %v487 = vmul.f32 %v485, 1.442695
        %v488 = vpow.pop %v487
        %v489 = vmul.f32 %v486, 1.442695
        %v490 = vpow.pop %v489
        %492 = vset.pattern.permute.xlu0 0
        %493 = vperm.xlu0 %492, %v483
        %v494 = vpop.permute.xlu0 %493
        %497 = vset.pattern.permute.xlu0 0
        %498 = vperm.xlu0 %497, %v484
        %v499 = vpop.permute.xlu0 %498
        %v501 = vsub.f32 %v472, %v494
        %v502 = vsub.f32 %v473, %v499
        %v503 = vmul.f32 %v501, 1.442695
        %v504 = vpow.pop %v503
        %v505 = vmul.f32 %v502, 1.442695
        %v506 = vpow.pop %v505
        %v507 = vld [vmem:[#allocation3] sm:$0xff]
        %v508 = vld [vmem:[#allocation3 + $0x8] sm:$0xff]
        %v509 = vmul.f32 %v488, %v507
        %v510 = vmul.f32 %v490, %v508
        %v511 = vsel %vm476, %v504, 0.0
        %512 = vadd.xlane.f32.xlu0 %v511
        %v513 = vpop.xlane.xlu0 %512
        %v514 = vsel %vm476, %v506, 0.0
        %515 = vadd.xlane.f32.xlu0 %v514
        %v516 = vpop.xlane.xlu0 %515
        %v517 = vadd.f32 %v509, %v513
        %v518 = vadd.f32 %v510, %v516
        %vm519 = vcmask 7168
        %520 = vst.msk [vmem:[#allocation3] sm:$0xff] %vm519, %v517
        %521 = vst.msk [vmem:[#allocation3 + $0x8] sm:$0xff] %vm519, %v518
        %v522 = vld [vmem:[#allocation4] sm:$0xff]
        %v523 = vld [vmem:[#allocation4 + $0x8] sm:$0xff]
        %525 = vset.pattern.permute.xlu0 0
        %526 = vperm.xlu0 %525, %v488
        %v527 = vpop.permute.xlu0 %526
        %530 = vset.pattern.permute.xlu0 0
        %531 = vperm.xlu0 %530, %v490
        %v532 = vpop.permute.xlu0 %531
        %v534 = vmul.f32 %v527, %v522
        %v535 = vmul.f32 %v532, %v523
        %v536 = vpack.c.bf16 %v506, %v504
        %v539 = vunpack.c.l.b16 %v436
        %v540 = vunpack.c.l.b16 %v437
        %v541 = vpack.c.b16 %v540, %v539
        %v544 = vsel %vm476, %v536, 0
        %546 = vmatpush.bf16.msra.mxu0 0
        %547 = vmatpush.bf16.msra.mxu0 0
        %548 = vmatpush.bf16.msra.mxu0 0
        %549 = vmatpush.bf16.msra.mxu0 0
        %550 = vmatpush.bf16.msra.mxu0 0
        %551 = vmatpush.bf16.msra.mxu0 0
        %552 = vmatpush.bf16.msra.mxu0 0
        %553 = vmatpush.bf16.msra.mxu0 %v541
        %554 = vmatmul.bf16.gmra.mxu0 %v544
        %v555 = vpop.f32.mrf.mxu0
        %v556 = vadd.f32 0.0, %v555
        %v557 = vpop.f32.mrf.mxu0
        %v558 = vadd.f32 0.0, %v557
        %559 = vdwg.mxu0
        %v560 = vadd.f32 %v534, %v556
        %v561 = vadd.f32 %v535, %v558
        %562 = vst.msk [vmem:[#allocation4] sm:$0xff] %vm448, %v560
        %563 = vst.msk [vmem:[#allocation4 + $0x8] sm:$0xff] %vm448, %v561
        %564 = vst.msk [vmem:[#allocation2] sm:$0xff] %vm519, %v483
        %565 = vst.msk [vmem:[#allocation2 + $0x8] sm:$0xff] %vm519, %v484
        %v566 = vld [vmem:[%s353] sm:$0xf]
        %v567 = vld [vmem:[%s353 + $0x4] sm:$0xf]
        %v568 = vld [vmem:[%s360] sm:$0xf]
        %v569 = vld [vmem:[%s360 + $0x4] sm:$0xf]
        %v570 = vld [vmem:[%s367] sm:$0xf]
        %v571 = vld [vmem:[%s367 + $0x4] sm:$0xf]
        %v574 = vunpack.c.l.b16 %v566
        %v575 = vunpack.c.l.b16 %v567
        %v576 = vpack.c.b16 %v575, %v574
        %577 = vrot.lane.b32.xlu0 %v576, 64
        %v578 = vpop.permute.xlu0 %577
        %v581 = vunpack.c.l.b16 %v568
        %v582 = vunpack.c.l.b16 %v569
        %v583 = vpack.c.b16 %v582, %v581
        %584 = vrot.lane.b32.xlu0 %v583, 64
        %v585 = vpop.permute.xlu0 %584
        %v587 = vsel %vm448, %v578, 0
        %v590 = vsel %vm448, %v585, 0
        %592 = vmatpush.bf16.xpose.msra.mxu0 0
        %593 = vmatpush.bf16.xpose.msra.mxu0 0
        %594 = vmatpush.bf16.xpose.msra.mxu0 0
        %595 = vmatpush.bf16.xpose.msra.mxu0 0
        %596 = vmatpush.bf16.xpose.msra.mxu0 0
        %597 = vmatpush.bf16.xpose.msra.mxu0 0
        %598 = vmatpush.bf16.xpose.msra.mxu0 0
        %599 = vmatpush.bf16.xpose.msra.mxu0 %v590
        %600 = vmatmul.bf16.gmra.mxu0 %v587
        %v601 = vpop.f32.mrf.mxu0
        %v602 = vadd.f32 0.0, %v601
        %v603 = vpop.f32.mrf.mxu0
        %v604 = vadd.f32 0.0, %v603
        %605 = vdwg.mxu0
        %v606 = vsel %vm471, %v602, -1e+30
        %v607 = vsel %vm471, %v604, -1e+30
        %s608 = scalar_lea.vmem [#allocation2], 16
        %v609 = vld [vmem:[%s608] sm:$0xff]
        %v610 = vld [vmem:[%s608 + $0x8] sm:$0xff]
        %v611 = vsel %vm476, %v606, -inf
        %612 = vmax.xlane.f32.xlu0 %v611
        %v613 = vpop.xlane.xlu0 %612
        %v614 = vsel %vm476, %v607, -inf
        %615 = vmax.xlane.f32.xlu0 %v614
        %v616 = vpop.xlane.xlu0 %615
        %v617 = vmax.f32 %v609, %v613
        %v618 = vmax.f32 %v610, %v616
        %v619 = vsub.f32 %v609, %v617
        %v620 = vsub.f32 %v610, %v618
        %v621 = vmul.f32 %v619, 1.442695
        %v622 = vpow.pop %v621
        %v623 = vmul.f32 %v620, 1.442695
        %v624 = vpow.pop %v623
        %626 = vset.pattern.permute.xlu0 0
        %627 = vperm.xlu0 %626, %v617
        %v628 = vpop.permute.xlu0 %627
        %631 = vset.pattern.permute.xlu0 0
        %632 = vperm.xlu0 %631, %v618
        %v633 = vpop.permute.xlu0 %632
        %v635 = vsub.f32 %v606, %v628
        %v636 = vsub.f32 %v607, %v633
        %v637 = vmul.f32 %v635, 1.442695
        %v638 = vpow.pop %v637
        %v639 = vmul.f32 %v636, 1.442695
        %v640 = vpow.pop %v639
        %s641 = scalar_lea.vmem [#allocation3], 16
        %v642 = vld [vmem:[%s641] sm:$0xff]
        %v643 = vld [vmem:[%s641 + $0x8] sm:$0xff]
        %v644 = vmul.f32 %v622, %v642
        %v645 = vmul.f32 %v624, %v643
        %v646 = vsel %vm476, %v638, 0.0
        %647 = vadd.xlane.f32.xlu0 %v646
        %v648 = vpop.xlane.xlu0 %647
        %v649 = vsel %vm476, %v640, 0.0
        %650 = vadd.xlane.f32.xlu0 %v649
        %v651 = vpop.xlane.xlu0 %650
        %v652 = vadd.f32 %v644, %v648
        %v653 = vadd.f32 %v645, %v651
        %654 = vst.msk [vmem:[%s641] sm:$0xff] %vm519, %v652
        %655 = vst.msk [vmem:[%s641 + $0x8] sm:$0xff] %vm519, %v653
        %v656 = vld [vmem:[#allocation4] sm:$0xff]
        %v657 = vld [vmem:[#allocation4 + $0x8] sm:$0xff]
        %659 = vset.pattern.permute.xlu0 0
        %660 = vperm.xlu0 %659, %v622
        %v661 = vpop.permute.xlu0 %660
        %664 = vset.pattern.permute.xlu0 0
        %665 = vperm.xlu0 %664, %v624
        %v666 = vpop.permute.xlu0 %665
        %v668 = vmul.f32 %v661, %v656
        %v669 = vmul.f32 %v666, %v657
        %v670 = vpack.c.bf16 %v640, %v638
        %v673 = vunpack.c.l.b16 %v570
        %v674 = vunpack.c.l.b16 %v571
        %v675 = vpack.c.b16 %v674, %v673
        %676 = vrot.lane.b32.xlu0 %v675, 64
        %v677 = vpop.permute.xlu0 %676
        %v680 = vsel %vm476, %v670, 0
        %682 = vmatpush.bf16.msra.mxu0 0
        %683 = vmatpush.bf16.msra.mxu0 0
        %684 = vmatpush.bf16.msra.mxu0 0
        %685 = vmatpush.bf16.msra.mxu0 0
        %686 = vmatpush.bf16.msra.mxu0 0
        %687 = vmatpush.bf16.msra.mxu0 0
        %688 = vmatpush.bf16.msra.mxu0 0
        %689 = vmatpush.bf16.msra.mxu0 %v677
        %690 = vmatmul.bf16.gmra.mxu0 %v680
        %v691 = vpop.f32.mrf.mxu0
        %v692 = vadd.f32 0.0, %v691
        %v693 = vpop.f32.mrf.mxu0
        %v694 = vadd.f32 0.0, %v693
        %695 = vdwg.mxu0
        %698 = vrot.lane.b32.xlu0 %v692, 64
        %v699 = vpop.permute.xlu0 %698
        %700 = vrot.lane.b32.xlu0 %v694, 64
        %v701 = vpop.permute.xlu0 %700
        %v704 = vadd.f32 %v668, %v699
        %v705 = vadd.f32 %v669, %v701
        %vm706 = vcmask 1048064
        %707 = vst.msk [vmem:[#allocation4] sm:$0xff] %vm706, %v704
        %708 = vst.msk [vmem:[#allocation4 + $0x8] sm:$0xff] %vm706, %v705
        %709 = vst.msk [vmem:[%s608] sm:$0xff] %vm519, %v617
        %710 = vst.msk [vmem:[%s608 + $0x8] sm:$0xff] %vm519, %v618
        // Predicated region
        $region160: #{forward.15} parent=142 // pred_check
          %p711 = pneg %p412
        $region161: #{forward.15} parent=142 // pred_check_branch
          %713 = sbr.rel (%p711) target = $region163
        $region162: #{forward.15} parent=142 // pred_region
          %v714 = vld [vmem:[#allocation3] sm:$0xff]
          %v715 = vld [vmem:[#allocation3 + $0x8] sm:$0xff]
          %v716 = vrcp.pop %v714
          %v717 = vrcp.pop %v715
          %v718 = vld [vmem:[#allocation4] sm:$0xff]
          %v719 = vld [vmem:[#allocation4 + $0x8] sm:$0xff]
          %721 = vset.pattern.permute.xlu0 0
          %722 = vperm.xlu0 %721, %v716
          %v723 = vpop.permute.xlu0 %722
          %726 = vset.pattern.permute.xlu0 0
          %727 = vperm.xlu0 %726, %v717
          %v728 = vpop.permute.xlu0 %727
          %v730 = vmul.f32 %v718, %v723
          %v731 = vmul.f32 %v719, %v728
          %732 = vst.msk [vmem:[#allocation4] sm:$0xff] %vm448, %v730
          %733 = vst.msk [vmem:[#allocation4 + $0x8] sm:$0xff] %vm448, %v731
          %v734 = vld [vmem:[%s641] sm:$0xff]
          %v735 = vld [vmem:[%s641 + $0x8] sm:$0xff]
          %v736 = vrcp.pop %v734
          %v737 = vrcp.pop %v735
          %v738 = vld [vmem:[#allocation4] sm:$0xff]
          %v739 = vld [vmem:[#allocation4 + $0x8] sm:$0xff]
          %741 = vset.pattern.permute.xlu0 0
          %742 = vperm.xlu0 %741, %v736
          %v743 = vpop.permute.xlu0 %742
          %746 = vset.pattern.permute.xlu0 0
          %747 = vperm.xlu0 %746, %v737
          %v748 = vpop.permute.xlu0 %747
          %v750 = vmul.f32 %v738, %v743
          %v751 = vmul.f32 %v739, %v748
          %752 = vst.msk [vmem:[#allocation4] sm:$0xff] %vm706, %v750
          %753 = vst.msk [vmem:[#allocation4 + $0x8] sm:$0xff] %vm706, %v751
          %v754 = vld [vmem:[#allocation4] sm:$0xff]
          %v755 = vld [vmem:[#allocation4 + $0x8] sm:$0xff]
          %v756 = vpack.c.bf16 %v754, %v754
          %v757 = vpack.c.bf16 %v755, %v755
          %758 = vst [vmem:[%s410] sm:$0xf] %v756
          %759 = vst [vmem:[%s410 + $0x4] sm:$0xf] %v757
        $region163: #{forward.15} parent=142 // pred_fallthru
          _
        %p760 = scmp.lt.s32.totalorder %s19, 1
        %s761 = scalar_select %p760, %s19, 1
        %p762 = scmp.lt.s32.totalorder %s20, 0
        %s763 = scalar_select %p762, %s20, 0
        %s764 = smul.addr %s761, 2
        %s765 = sadd.s32 %s763, %s764
        %s766 = smul.addr %s765, 4
        %s767 = scalar_lea.vmem %s3, %s766
        // Predicated region
        $region164: #{forward.15} parent=142 // pred_check
          %p768 = pneg %p145
        $region165: #{forward.15} parent=142 // pred_check_branch
          %770 = sbr.rel (%p768) target = $region167
        $region166: #{forward.15} parent=142 // pred_region
          _
        $region167: #{forward.15} parent=142 // pred_fallthru
          _
      $region143: #{forward.15} parent=5 // pred_fallthru
        _
      %p771 = scmp.le.s32.totalorder 2, %s9
      // Predicated region
      $region168: #{forward.15} parent=5 // pred_check
        %p772 = pneg %p771
      $region169: #{forward.15} parent=5 // pred_check_branch
        %774 = sbr.rel (%p772) target = $region171
      $region170: #{forward.15} parent=5 // pred_region
        %s775 = ssub.s32 %s9, 2
        // Predicated region
        $region172: #{forward.15} parent=170 // pred_check
          %p776 = pneg %p151
        $region173: #{forward.15} parent=170 // pred_check_branch
          %778 = sbr.rel (%p776) target = $region175
        $region174: #{forward.15} parent=170 // pred_region
          %p779 = scmp.lt.s32.totalorder %s22, 1
          %s780 = scalar_select %p779, %s22, 1
          %p781 = scmp.lt.s32.totalorder %s23, 0
          %s782 = scalar_select %p781, %s23, 0
          %s783 = smul.addr %s780, 2
          %s784 = sadd.s32 %s782, %s783
          %s785 = smul.addr %s784, 4
          %s786 = scalar_lea.vmem %s3, %s785
        $region175: #{forward.15} parent=170 // pred_fallthru
          _
      $region171: #{forward.15} parent=5 // pred_fallthru
        _
    $region6: #{forward.15} parent=1 // loop_footer
      %s13 = sadd.s32 1, %s9
    $region7: #{forward.15} parent=1 // loop_footer_branch
      %8 = sbr.rel target = $region3
    $region8: #{forward.15} parent=1 // loop_exit
      _

// kernel: forward.16
$region0: #{forward.16}
  #allocation0 [shape = 'u32[]', space=smem, size = 0x4, offset = 0x4, fixed_abs, tag = 'smem constant byte address 0x4 - core index']
  #allocation1 [shape = 'u32[72,128]{1,0:T(1,128)}', space=vmem, size = 0x9000, scoped, tag = 'internal scratch']
  #allocation2 [shape = 'f32[24,128]{1,0:T(8,128)}', space=vmem, size = 0x3000, scoped, tag = 'scratch operand']
  %s0 = inlined_call_operand.vmem [shape: bf16[24,128], index: 0, kind: input, shape index: {}]
  %s1 = inlined_call_operand.vmem [shape: bf16[128,128], index: 1, kind: input, shape index: {}]
  %s2 = inlined_call_operand.vmem [shape: bf16[1,128], index: 2, kind: input, shape index: {}]
  %s3 = inlined_call_operand.vmem [shape: bf16[24,128], index: 3, kind: input, shape index: {}]
  %s4 = inlined_call_operand.vmem [shape: bf16[24,128], index: 4, kind: output, shape index: {}]
  %s5 = sld [smem:[#allocation0]]
  $region34: #{forward.16} parent=0
    _
  %s7 = ssub.s32 1, %s5
  %s8 = scalar_select 0, %s7, %s5
  // Predicated region
  $region2: #{forward.16} parent=0 // pred_check
    _
  $region3: #{forward.16} parent=0 // pred_check_branch
    %10 = sbr.rel (0) target = $region5
  $region4: #{forward.16} parent=0 // pred_region
    _
  $region5: #{forward.16} parent=0 // pred_fallthru
    _
  // Predicated region
  $region6: #{forward.16} parent=0 // pred_check
    _
  $region7: #{forward.16} parent=0 // pred_check_branch
    %12 = sbr.rel (0) target = $region9
  $region8: #{forward.16} parent=0 // pred_region
    _
  $region9: #{forward.16} parent=0 // pred_fallthru
    _
  // Predicated region
  $region10: #{forward.16} parent=0 // pred_check
    _
  $region11: #{forward.16} parent=0 // pred_check_branch
    %14 = sbr.rel (0) target = $region13
  $region12: #{forward.16} parent=0 // pred_region
    _
  $region13: #{forward.16} parent=0 // pred_fallthru
    _
  // Predicated region
  $region14: #{forward.16} parent=0 // pred_check
    _
  $region15: #{forward.16} parent=0 // pred_check_branch
    %16 = sbr.rel (0) target = $region17
  $region16: #{forward.16} parent=0 // pred_region
    _
  $region17: #{forward.16} parent=0 // pred_fallthru
    _
  %p17 = scmp.eq.s32.totalorder 0, 0
  // Predicated region
  $region18: #{forward.16} parent=0 // pred_check
    %p18 = pneg %p17
  $region19: #{forward.16} parent=0 // pred_check_branch
    %20 = sbr.rel (%p18) target = $region21
  $region20: #{forward.16} parent=0 // pred_region
    %21 = vst [vmem:[#allocation2] sm:$0xff] 0.0
    %22 = vst [vmem:[#allocation2 + $0x8] sm:$0xff] 0.0
    %23 = vst [vmem:[#allocation2 + $0x10] sm:$0xff] 0.0
  $region21: #{forward.16} parent=0 // pred_fallthru
    _
  %v24 = vld [vmem:[%s0] sm:$0xf]
  %v25 = vld [vmem:[%s0 + $0x4] sm:$0xf]
  %v26 = vld [vmem:[%s0 + $0x8] sm:$0xf]
  %v27 = vld [vmem:[#allocation2] sm:$0xff]
  %v28 = vld [vmem:[#allocation2 + $0x8] sm:$0xff]
  %v29 = vld [vmem:[#allocation2 + $0x10] sm:$0xff]
  %v30 = vld [vmem:[%s1] sm:$0xf]
  %v31 = vld [vmem:[%s1 + $0x4] sm:$0xf]
  %v32 = vld [vmem:[%s1 + $0x8] sm:$0xf]
  %v33 = vld [vmem:[%s1 + $0xc] sm:$0xf]
  %v34 = vld [vmem:[%s1 + $0x10] sm:$0xf]
  %v35 = vld [vmem:[%s1 + $0x14] sm:$0xf]
  %v36 = vld [vmem:[%s1 + $0x18] sm:$0xf]
  %v37 = vld [vmem:[%s1 + $0x1c] sm:$0xf]
  %v38 = vld [vmem:[%s1 + $0x20] sm:$0xf]
  %v39 = vld [vmem:[%s1 + $0x24] sm:$0xf]
  %v40 = vld [vmem:[%s1 + $0x28] sm:$0xf]
  %v41 = vld [vmem:[%s1 + $0x2c] sm:$0xf]
  %v42 = vld [vmem:[%s1 + $0x30] sm:$0xf]
  %v43 = vld [vmem:[%s1 + $0x34] sm:$0xf]
  %v44 = vld [vmem:[%s1 + $0x38] sm:$0xf]
  %v45 = vld [vmem:[%s1 + $0x3c] sm:$0xf]
  %v49 = vunpack.c.l.b16 %v24
  %v50 = vunpack.c.l.b16 %v25
  %v51 = vunpack.c.l.b16 %v26
  %v52 = vpack.c.b16 %v50, %v49
  %v53 = vpack.c.b16 %v51, %v51
  %v72 = vunpack.c.l.b16 %v30
  %v73 = vunpack.c.l.b16 %v31
  %v74 = vunpack.c.l.b16 %v32
  %v75 = vunpack.c.l.b16 %v33
  %v76 = vunpack.c.l.b16 %v34
  %v77 = vunpack.c.l.b16 %v35
  %v78 = vunpack.c.l.b16 %v36
  %v79 = vunpack.c.l.b16 %v37
  %v80 = vunpack.c.l.b16 %v38
  %v81 = vunpack.c.l.b16 %v39
  %v82 = vunpack.c.l.b16 %v40
  %v83 = vunpack.c.l.b16 %v41
  %v84 = vunpack.c.l.b16 %v42
  %v85 = vunpack.c.l.b16 %v43
  %v86 = vunpack.c.l.b16 %v44
  %v87 = vunpack.c.l.b16 %v45
  %v88 = vpack.c.b16 %v73, %v72
  %v89 = vpack.c.b16 %v75, %v74
  %v90 = vpack.c.b16 %v77, %v76
  %v91 = vpack.c.b16 %v79, %v78
  %v92 = vpack.c.b16 %v81, %v80
  %v93 = vpack.c.b16 %v83, %v82
  %v94 = vpack.c.b16 %v85, %v84
  %v95 = vpack.c.b16 %v87, %v86
  %104 = vmatpush.bf16.msra.mxu0 %v95
  %105 = vmatpush.bf16.msra.mxu0 %v94
  %106 = vmatpush.bf16.msra.mxu0 %v93
  %107 = vmatpush.bf16.msra.mxu0 %v92
  %108 = vmatpush.bf16.msra.mxu0 %v91
  %109 = vmatpush.bf16.msra.mxu0 %v90
  %110 = vmatpush.bf16.msra.mxu0 %v89
  %111 = vmatpush.bf16.msra.mxu0 %v88
  %112 = vmatmul.bf16.gmra.mxu0 %v52
  %v113 = vpop.f32.mrf.mxu0
  %v114 = vadd.f32 0.0, %v113
  %v115 = vpop.f32.mrf.mxu0
  %v116 = vadd.f32 0.0, %v115
  %117 = vmatmul.bf16.gmra.mxu0 %v53
  %v118 = vpop.f32.mrf.mxu0
  %v119 = vadd.f32 0.0, %v118
  %v120 = vpop.f32.mrf.mxu0
  %121 = vdwg.mxu0
  %v122 = vadd.f32 %v27, %v114
  %v123 = vadd.f32 %v28, %v116
  %v124 = vadd.f32 %v29, %v119
  %125 = vst [vmem:[#allocation2] sm:$0xff] %v122
  %126 = vst [vmem:[#allocation2 + $0x8] sm:$0xff] %v123
  %127 = vst [vmem:[#allocation2 + $0x10] sm:$0xff] %v124
  // Predicated region
  $region22: #{forward.16} parent=0 // pred_check
    %p128 = pneg %p17
  $region23: #{forward.16} parent=0 // pred_check_branch
    %130 = sbr.rel (%p128) target = $region25
  $region24: #{forward.16} parent=0 // pred_region
    %v131 = vld [vmem:[#allocation2] sm:$0xff]
    %v132 = vld [vmem:[#allocation2 + $0x8] sm:$0xff]
    %v133 = vld [vmem:[#allocation2 + $0x10] sm:$0xff]
    %v134 = vld [vmem:[%s2] sm:$0x1]
    %v135 = vunpack.c.l.bf16 %v134
    %v136 = vperm.slane %v135, 0
    %v137 = vadd.f32 %v131, %v136
    %v138 = vadd.f32 %v132, %v136
    %v139 = vadd.f32 %v133, %v136
    %v140 = vld [vmem:[%s3] sm:$0xf]
    %v141 = vld [vmem:[%s3 + $0x4] sm:$0xf]
    %v142 = vld [vmem:[%s3 + $0x8] sm:$0xf]
    %v143 = vunpack.c.l.bf16 %v140
    %v144 = vunpack.c.l.bf16 %v141
    %v145 = vunpack.c.l.bf16 %v142
    %v146 = vadd.f32 %v137, %v143
    %v147 = vadd.f32 %v138, %v144
    %v148 = vadd.f32 %v139, %v145
    %v149 = vpack.c.bf16 %v146, %v146
    %v150 = vpack.c.bf16 %v147, %v147
    %v151 = vpack.c.bf16 %v148, %v148
    %152 = vst [vmem:[%s4] sm:$0xf] %v149
    %153 = vst [vmem:[%s4 + $0x4] sm:$0xf] %v150
    %154 = vst [vmem:[%s4 + $0x8] sm:$0xf] %v151
  $region25: #{forward.16} parent=0 // pred_fallthru
    _
  // Predicated region
  $region26: #{forward.16} parent=0 // pred_check
    _
  $region27: #{forward.16} parent=0 // pred_check_branch
    %156 = sbr.rel (0) target = $region29
  $region28: #{forward.16} parent=0 // pred_region
    _
  $region29: #{forward.16} parent=0 // pred_fallthru
    _
  // Predicated region
  $region30: #{forward.16} parent=0 // pred_check
    _
  $region31: #{forward.16} parent=0 // pred_check_branch
    %158 = sbr.rel (0) target = $region33
  $region32: #{forward.16} parent=0 // pred_region
    _
  $region33: #{forward.16} parent=0 // pred_fallthru
    _

// kernel: forward.24
$region0: #{forward.24}
  #allocation0 [shape = 'u32[]', space=smem, size = 0x4, offset = 0x4, fixed_abs, tag = 'smem constant byte address 0x4 - core index']
  #allocation1 [shape = 'u32[72,128]{1,0:T(1,128)}', space=vmem, size = 0x9000, scoped, tag = 'internal scratch']
  %s0 = inlined_call_operand.vmem [shape: bf16[24,128], index: 0, kind: input, shape index: {}]
  %s1 = inlined_call_operand.vmem [shape: bf16[1,128], index: 1, kind: input, shape index: {}]
  %s2 = inlined_call_operand.vmem [shape: bf16[1,128], index: 2, kind: input, shape index: {}]
  %s3 = inlined_call_operand.vmem [shape: bf16[24,128], index: 3, kind: output, shape index: {}]
  %s4 = sld [smem:[#allocation0]]
  $region22: #{forward.24} parent=0
    _
  %s6 = ssub.s32 1, %s4
  %s7 = scalar_select 0, %s6, %s4
  // Predicated region
  $region2: #{forward.24} parent=0 // pred_check
    _
  $region3: #{forward.24} parent=0 // pred_check_branch
    %9 = sbr.rel (0) target = $region5
  $region4: #{forward.24} parent=0 // pred_region
    _
  $region5: #{forward.24} parent=0 // pred_fallthru
    _
  // Predicated region
  $region6: #{forward.24} parent=0 // pred_check
    _
  $region7: #{forward.24} parent=0 // pred_check_branch
    %11 = sbr.rel (0) target = $region9
  $region8: #{forward.24} parent=0 // pred_region
    _
  $region9: #{forward.24} parent=0 // pred_fallthru
    _
  // Predicated region
  $region10: #{forward.24} parent=0 // pred_check
    _
  $region11: #{forward.24} parent=0 // pred_check_branch
    %13 = sbr.rel (0) target = $region13
  $region12: #{forward.24} parent=0 // pred_region
    _
  $region13: #{forward.24} parent=0 // pred_fallthru
    _
  %v14 = vld [vmem:[%s0] sm:$0xf]
  %v15 = vld [vmem:[%s0 + $0x4] sm:$0xf]
  %v16 = vld [vmem:[%s0 + $0x8] sm:$0xf]
  %v17 = vunpack.c.l.bf16 %v14
  %v18 = vunpack.c.l.bf16 %v15
  %v19 = vunpack.c.l.bf16 %v16
  %20 = vadd.xlane.f32.xlu0 %v17
  %v21 = vpop.xlane.xlu0 %20
  %22 = vadd.xlane.f32.xlu0 %v18
  %v23 = vpop.xlane.xlu0 %22
  %24 = vadd.xlane.f32.xlu0 %v19
  %v25 = vpop.xlane.xlu0 %24
  %v26 = vrcp.pop 128.0
  %v27 = vmul.f32 128.0, %v26
  %v28 = vsub.f32 1.0, %v27
  %v29 = vmul.f32 %v26, %v28
  %v30 = vadd.f32 %v26, %v29
  %vm31 = vweird.f32 %v26
  %v32 = vsel %vm31, %v26, %v30
  %v33 = vmul.f32 %v21, %v32
  %v34 = vmul.f32 %v23, %v32
  %v35 = vmul.f32 %v25, %v32
  %v36 = vsub.f32 %v17, %v33
  %v37 = vsub.f32 %v18, %v34
  %v38 = vsub.f32 %v19, %v35
  %v39 = vmul.f32 %v36, %v36
  %v40 = vmul.f32 %v37, %v37
  %v41 = vmul.f32 %v38, %v38
  %42 = vadd.xlane.f32.xlu0 %v39
  %v43 = vpop.xlane.xlu0 %42
  %44 = vadd.xlane.f32.xlu0 %v40
  %v45 = vpop.xlane.xlu0 %44
  %46 = vadd.xlane.f32.xlu0 %v41
  %v47 = vpop.xlane.xlu0 %46
  %v48 = vmul.f32 %v43, %v32
  %v49 = vmul.f32 %v45, %v32
  %v50 = vmul.f32 %v47, %v32
  %v51 = vadd.f32 %v48, 1e-06
  %v52 = vadd.f32 %v49, 1e-06
  %v53 = vadd.f32 %v50, 1e-06
  %v54 = vrsqrt.pop %v51
  %v55 = vmul.f32 %v54, %v51
  %v56 = vmul.f32 %v55, %v54
  %v57 = vmul.f32 0.5, %v56
  %v58 = vsub.f32 1.5, %v57
  %v59 = vmul.f32 %v54, %v58
  %vm60 = vweird.f32 %v51
  %vm61 = vweird.f32 %v54
  %vm62 = vmor %vm60, %vm61
  %v63 = vsel %vm62, %v54, %v59
  %v64 = vrsqrt.pop %v52
  %v65 = vmul.f32 %v64, %v52
  %v66 = vmul.f32 %v65, %v64
  %v67 = vmul.f32 0.5, %v66
  %v68 = vsub.f32 1.5, %v67
  %v69 = vmul.f32 %v64, %v68
  %vm70 = vweird.f32 %v52
  %vm71 = vweird.f32 %v64
  %vm72 = vmor %vm70, %vm71
  %v73 = vsel %vm72, %v64, %v69
  %v74 = vrsqrt.pop %v53
  %v75 = vmul.f32 %v74, %v53
  %v76 = vmul.f32 %v75, %v74
  %v77 = vmul.f32 0.5, %v76
  %v78 = vsub.f32 1.5, %v77
  %v79 = vmul.f32 %v74, %v78
  %vm80 = vweird.f32 %v53
  %vm81 = vweird.f32 %v74
  %vm82 = vmor %vm80, %vm81
  %v83 = vsel %vm82, %v74, %v79
  %v84 = vmul.f32 %v36, %v63
  %v85 = vmul.f32 %v37, %v73
  %v86 = vmul.f32 %v38, %v83
  %v87 = vld [vmem:[%s1] sm:$0x1]
  %v88 = vunpack.c.l.bf16 %v87
  %v89 = vperm.slane %v88, 0
  %v90 = vmul.f32 %v84, %v89
  %v91 = vmul.f32 %v85, %v89
  %v92 = vmul.f32 %v86, %v89
  %v93 = vld [vmem:[%s2] sm:$0x1]
  %v94 = vunpack.c.l.bf16 %v93
  %v95 = vperm.slane %v94, 0
  %v96 = vadd.f32 %v90, %v95
  %v97 = vadd.f32 %v91, %v95
  %v98 = vadd.f32 %v92, %v95
  %v99 = vpack.c.bf16 %v96, %v96
  %v100 = vpack.c.bf16 %v97, %v97
  %v101 = vpack.c.bf16 %v98, %v98
  %102 = vst [vmem:[%s3] sm:$0xf] %v99
  %103 = vst [vmem:[%s3 + $0x4] sm:$0xf] %v100
  %104 = vst [vmem:[%s3 + $0x8] sm:$0xf] %v101
  // Predicated region
  $region14: #{forward.24} parent=0 // pred_check
    _
  $region15: #{forward.24} parent=0 // pred_check_branch
    %106 = sbr.rel (0) target = $region17
  $region16: #{forward.24} parent=0 // pred_region
    _
  $region17: #{forward.24} parent=0 // pred_fallthru
    _
  // Predicated region
  $region18: #{forward.24} parent=0 // pred_check
    _
  $region19: #{forward.24} parent=0 // pred_check_branch
    %108 = sbr.rel (0) target = $region21
  $region20: #{forward.24} parent=0 // pred_region
    _
  $region21: #{forward.24} parent=0 // pred_fallthru
    _

// kernel: forward.18
$region0: #{forward.18}
  #allocation0 [shape = 'u32[]', space=smem, size = 0x4, offset = 0x4, fixed_abs, tag = 'smem constant byte address 0x4 - core index']
  #allocation1 [shape = 'u32[72,128]{1,0:T(1,128)}', space=vmem, size = 0x9000, scoped, tag = 'internal scratch']
  #allocation2 [shape = 'f32[24,128]{1,0:T(8,128)}', space=vmem, size = 0x3000, scoped, tag = 'scratch operand']
  %s0 = inlined_call_operand.vmem [shape: bf16[24,512], index: 0, kind: input, shape index: {}]
  %s1 = inlined_call_operand.vmem [shape: bf16[512,128], index: 1, kind: input, shape index: {}]
  %s2 = inlined_call_operand.vmem [shape: bf16[1,128], index: 2, kind: input, shape index: {}]
  %s3 = inlined_call_operand.vmem [shape: bf16[24,128], index: 3, kind: input, shape index: {}]
  %s4 = inlined_call_operand.vmem [shape: bf16[24,128], index: 4, kind: output, shape index: {}]
  %s5 = sld [smem:[#allocation0]]
  $region34: #{forward.18} parent=0
    _
  %s7 = ssub.s32 1, %s5
  %s8 = scalar_select 0, %s7, %s5
  // Predicated region
  $region2: #{forward.18} parent=0 // pred_check
    _
  $region3: #{forward.18} parent=0 // pred_check_branch
    %10 = sbr.rel (0) target = $region5
  $region4: #{forward.18} parent=0 // pred_region
    _
  $region5: #{forward.18} parent=0 // pred_fallthru
    _
  // Predicated region
  $region6: #{forward.18} parent=0 // pred_check
    _
  $region7: #{forward.18} parent=0 // pred_check_branch
    %12 = sbr.rel (0) target = $region9
  $region8: #{forward.18} parent=0 // pred_region
    _
  $region9: #{forward.18} parent=0 // pred_fallthru
    _
  // Predicated region
  $region10: #{forward.18} parent=0 // pred_check
    _
  $region11: #{forward.18} parent=0 // pred_check_branch
    %14 = sbr.rel (0) target = $region13
  $region12: #{forward.18} parent=0 // pred_region
    _
  $region13: #{forward.18} parent=0 // pred_fallthru
    _
  // Predicated region
  $region14: #{forward.18} parent=0 // pred_check
    _
  $region15: #{forward.18} parent=0 // pred_check_branch
    %16 = sbr.rel (0) target = $region17
  $region16: #{forward.18} parent=0 // pred_region
    _
  $region17: #{forward.18} parent=0 // pred_fallthru
    _
  %p17 = scmp.eq.s32.totalorder 0, 0
  // Predicated region
  $region18: #{forward.18} parent=0 // pred_check
    %p18 = pneg %p17
  $region19: #{forward.18} parent=0 // pred_check_branch
    %20 = sbr.rel (%p18) target = $region21
  $region20: #{forward.18} parent=0 // pred_region
    %21 = vst [vmem:[#allocation2] sm:$0xff] 0.0
    %22 = vst [vmem:[#allocation2 + $0x8] sm:$0xff] 0.0
    %23 = vst [vmem:[#allocation2 + $0x10] sm:$0xff] 0.0
  $region21: #{forward.18} parent=0 // pred_fallthru
    _
  %v24 = vld [vmem:[%s0] sm:$0xff]
  %v25 = vld [vmem:[%s0 + $0x8] sm:$0xff]
  %v26 = vld [vmem:[%s0 + $0x10] sm:$0xff]
  %v27 = vld [vmem:[%s0 + $0x18] sm:$0xff]
  %v28 = vld [vmem:[%s0 + $0x20] sm:$0xff]
  %v29 = vld [vmem:[%s0 + $0x28] sm:$0xff]
  %v30 = vld [vmem:[#allocation2] sm:$0xff]
  %v31 = vld [vmem:[#allocation2 + $0x8] sm:$0xff]
  %v32 = vld [vmem:[#allocation2 + $0x10] sm:$0xff]
  %v33 = vld [vmem:[%s1] sm:$0xf]
  %v34 = vld [vmem:[%s1 + $0x4] sm:$0xf]
  %v35 = vld [vmem:[%s1 + $0x8] sm:$0xf]
  %v36 = vld [vmem:[%s1 + $0xc] sm:$0xf]
  %v37 = vld [vmem:[%s1 + $0x10] sm:$0xf]
  %v38 = vld [vmem:[%s1 + $0x14] sm:$0xf]
  %v39 = vld [vmem:[%s1 + $0x18] sm:$0xf]
  %v40 = vld [vmem:[%s1 + $0x1c] sm:$0xf]
  %v41 = vld [vmem:[%s1 + $0x20] sm:$0xf]
  %v42 = vld [vmem:[%s1 + $0x24] sm:$0xf]
  %v43 = vld [vmem:[%s1 + $0x28] sm:$0xf]
  %v44 = vld [vmem:[%s1 + $0x2c] sm:$0xf]
  %v45 = vld [vmem:[%s1 + $0x30] sm:$0xf]
  %v46 = vld [vmem:[%s1 + $0x34] sm:$0xf]
  %v47 = vld [vmem:[%s1 + $0x38] sm:$0xf]
  %v48 = vld [vmem:[%s1 + $0x3c] sm:$0xf]
  %v49 = vld [vmem:[%s1 + $0x40] sm:$0xf]
  %v50 = vld [vmem:[%s1 + $0x44] sm:$0xf]
  %v51 = vld [vmem:[%s1 + $0x48] sm:$0xf]
  %v52 = vld [vmem:[%s1 + $0x4c] sm:$0xf]
  %v53 = vld [vmem:[%s1 + $0x50] sm:$0xf]
  %v54 = vld [vmem:[%s1 + $0x54] sm:$0xf]
  %v55 = vld [vmem:[%s1 + $0x58] sm:$0xf]
  %v56 = vld [vmem:[%s1 + $0x5c] sm:$0xf]
  %v57 = vld [vmem:[%s1 + $0x60] sm:$0xf]
  %v58 = vld [vmem:[%s1 + $0x64] sm:$0xf]
  %v59 = vld [vmem:[%s1 + $0x68] sm:$0xf]
  %v60 = vld [vmem:[%s1 + $0x6c] sm:$0xf]
  %v61 = vld [vmem:[%s1 + $0x70] sm:$0xf]
  %v62 = vld [vmem:[%s1 + $0x74] sm:$0xf]
  %v63 = vld [vmem:[%s1 + $0x78] sm:$0xf]
  %v64 = vld [vmem:[%s1 + $0x7c] sm:$0xf]
  %v65 = vld [vmem:[%s1 + $0x80] sm:$0xf]
  %v66 = vld [vmem:[%s1 + $0x84] sm:$0xf]
  %v67 = vld [vmem:[%s1 + $0x88] sm:$0xf]
  %v68 = vld [vmem:[%s1 + $0x8c] sm:$0xf]
  %v69 = vld [vmem:[%s1 + $0x90] sm:$0xf]
  %v70 = vld [vmem:[%s1 + $0x94] sm:$0xf]
  %v71 = vld [vmem:[%s1 + $0x98] sm:$0xf]
  %v72 = vld [vmem:[%s1 + $0x9c] sm:$0xf]
  %v73 = vld [vmem:[%s1 + $0xa0] sm:$0xf]
  %v74 = vld [vmem:[%s1 + $0xa4] sm:$0xf]
  %v75 = vld [vmem:[%s1 + $0xa8] sm:$0xf]
  %v76 = vld [vmem:[%s1 + $0xac] sm:$0xf]
  %v77 = vld [vmem:[%s1 + $0xb0] sm:$0xf]
  %v78 = vld [vmem:[%s1 + $0xb4] sm:$0xf]
  %v79 = vld [vmem:[%s1 + $0xb8] sm:$0xf]
  %v80 = vld [vmem:[%s1 + $0xbc] sm:$0xf]
  %v81 = vld [vmem:[%s1 + $0xc0] sm:$0xf]
  %v82 = vld [vmem:[%s1 + $0xc4] sm:$0xf]
  %v83 = vld [vmem:[%s1 + $0xc8] sm:$0xf]
  %v84 = vld [vmem:[%s1 + $0xcc] sm:$0xf]
  %v85 = vld [vmem:[%s1 + $0xd0] sm:$0xf]
  %v86 = vld [vmem:[%s1 + $0xd4] sm:$0xf]
  %v87 = vld [vmem:[%s1 + $0xd8] sm:$0xf]
  %v88 = vld [vmem:[%s1 + $0xdc] sm:$0xf]
  %v89 = vld [vmem:[%s1 + $0xe0] sm:$0xf]
  %v90 = vld [vmem:[%s1 + $0xe4] sm:$0xf]
  %v91 = vld [vmem:[%s1 + $0xe8] sm:$0xf]
  %v92 = vld [vmem:[%s1 + $0xec] sm:$0xf]
  %v93 = vld [vmem:[%s1 + $0xf0] sm:$0xf]
  %v94 = vld [vmem:[%s1 + $0xf4] sm:$0xf]
  %v95 = vld [vmem:[%s1 + $0xf8] sm:$0xf]
  %v96 = vld [vmem:[%s1 + $0xfc] sm:$0xf]
  %v103 = vunpack.c.l.b16 %v24
  %v104 = vunpack.c.h.b16 %v24
  %v105 = vunpack.c.l.b16 %v25
  %v106 = vunpack.c.h.b16 %v25
  %v107 = vunpack.c.l.b16 %v26
  %v108 = vunpack.c.h.b16 %v26
  %v109 = vunpack.c.l.b16 %v27
  %v110 = vunpack.c.h.b16 %v27
  %v111 = vunpack.c.l.b16 %v28
  %v112 = vunpack.c.h.b16 %v28
  %v113 = vunpack.c.l.b16 %v29
  %v114 = vunpack.c.h.b16 %v29
  %v115 = vpack.c.b16 %v107, %v103
  %v116 = vpack.c.b16 %v108, %v104
  %v117 = vpack.c.b16 %v109, %v105
  %v118 = vpack.c.b16 %v110, %v106
  %v119 = vpack.c.b16 %v111, %v111
  %v120 = vpack.c.b16 %v112, %v112
  %v121 = vpack.c.b16 %v113, %v113
  %v122 = vpack.c.b16 %v114, %v114
  %v195 = vunpack.c.l.b16 %v33
  %v196 = vunpack.c.l.b16 %v34
  %v197 = vunpack.c.l.b16 %v35
  %v198 = vunpack.c.l.b16 %v36
  %v199 = vunpack.c.l.b16 %v37
  %v200 = vunpack.c.l.b16 %v38
  %v201 = vunpack.c.l.b16 %v39
  %v202 = vunpack.c.l.b16 %v40
  %v203 = vunpack.c.l.b16 %v41
  %v204 = vunpack.c.l.b16 %v42
  %v205 = vunpack.c.l.b16 %v43
  %v206 = vunpack.c.l.b16 %v44
  %v207 = vunpack.c.l.b16 %v45
  %v208 = vunpack.c.l.b16 %v46
  %v209 = vunpack.c.l.b16 %v47
  %v210 = vunpack.c.l.b16 %v48
  %v211 = vunpack.c.l.b16 %v49
  %v212 = vunpack.c.l.b16 %v50
  %v213 = vunpack.c.l.b16 %v51
  %v214 = vunpack.c.l.b16 %v52
  %v215 = vunpack.c.l.b16 %v53
  %v216 = vunpack.c.l.b16 %v54
  %v217 = vunpack.c.l.b16 %v55
  %v218 = vunpack.c.l.b16 %v56
  %v219 = vunpack.c.l.b16 %v57
  %v220 = vunpack.c.l.b16 %v58
  %v221 = vunpack.c.l.b16 %v59
  %v222 = vunpack.c.l.b16 %v60
  %v223 = vunpack.c.l.b16 %v61
  %v224 = vunpack.c.l.b16 %v62
  %v225 = vunpack.c.l.b16 %v63
  %v226 = vunpack.c.l.b16 %v64
  %v227 = vunpack.c.l.b16 %v65
  %v228 = vunpack.c.l.b16 %v66
  %v229 = vunpack.c.l.b16 %v67
  %v230 = vunpack.c.l.b16 %v68
  %v231 = vunpack.c.l.b16 %v69
  %v232 = vunpack.c.l.b16 %v70
  %v233 = vunpack.c.l.b16 %v71
  %v234 = vunpack.c.l.b16 %v72
  %v235 = vunpack.c.l.b16 %v73
  %v236 = vunpack.c.l.b16 %v74
  %v237 = vunpack.c.l.b16 %v75
  %v238 = vunpack.c.l.b16 %v76
  %v239 = vunpack.c.l.b16 %v77
  %v240 = vunpack.c.l.b16 %v78
  %v241 = vunpack.c.l.b16 %v79
  %v242 = vunpack.c.l.b16 %v80
  %v243 = vunpack.c.l.b16 %v81
  %v244 = vunpack.c.l.b16 %v82
  %v245 = vunpack.c.l.b16 %v83
  %v246 = vunpack.c.l.b16 %v84
  %v247 = vunpack.c.l.b16 %v85
  %v248 = vunpack.c.l.b16 %v86
  %v249 = vunpack.c.l.b16 %v87
  %v250 = vunpack.c.l.b16 %v88
  %v251 = vunpack.c.l.b16 %v89
  %v252 = vunpack.c.l.b16 %v90
  %v253 = vunpack.c.l.b16 %v91
  %v254 = vunpack.c.l.b16 %v92
  %v255 = vunpack.c.l.b16 %v93
  %v256 = vunpack.c.l.b16 %v94
  %v257 = vunpack.c.l.b16 %v95
  %v258 = vunpack.c.l.b16 %v96
  %v259 = vpack.c.b16 %v196, %v195
  %v260 = vpack.c.b16 %v198, %v197
  %v261 = vpack.c.b16 %v200, %v199
  %v262 = vpack.c.b16 %v202, %v201
  %v263 = vpack.c.b16 %v204, %v203
  %v264 = vpack.c.b16 %v206, %v205
  %v265 = vpack.c.b16 %v208, %v207
  %v266 = vpack.c.b16 %v210, %v209
  %v267 = vpack.c.b16 %v212, %v211
  %v268 = vpack.c.b16 %v214, %v213
  %v269 = vpack.c.b16 %v216, %v215
  %v270 = vpack.c.b16 %v218, %v217
  %v271 = vpack.c.b16 %v220, %v219
  %v272 = vpack.c.b16 %v222, %v221
  %v273 = vpack.c.b16 %v224, %v223
  %v274 = vpack.c.b16 %v226, %v225
  %v275 = vpack.c.b16 %v228, %v227
  %v276 = vpack.c.b16 %v230, %v229
  %v277 = vpack.c.b16 %v232, %v231
  %v278 = vpack.c.b16 %v234, %v233
  %v279 = vpack.c.b16 %v236, %v235
  %v280 = vpack.c.b16 %v238, %v237
  %v281 = vpack.c.b16 %v240, %v239
  %v282 = vpack.c.b16 %v242, %v241
  %v283 = vpack.c.b16 %v244, %v243
  %v284 = vpack.c.b16 %v246, %v245
  %v285 = vpack.c.b16 %v248, %v247
  %v286 = vpack.c.b16 %v250, %v249
  %v287 = vpack.c.b16 %v252, %v251
  %v288 = vpack.c.b16 %v254, %v253
  %v289 = vpack.c.b16 %v256, %v255
  %v290 = vpack.c.b16 %v258, %v257
  %323 = vmatpush.bf16.msra.mxu0 %v266
  %324 = vmatpush.bf16.msra.mxu0 %v265
  %325 = vmatpush.bf16.msra.mxu0 %v264
  %326 = vmatpush.bf16.msra.mxu0 %v263
  %327 = vmatpush.bf16.msra.mxu0 %v262
  %328 = vmatpush.bf16.msra.mxu0 %v261
  %329 = vmatpush.bf16.msra.mxu0 %v260
  %330 = vmatpush.bf16.msra.mxu0 %v259
  %331 = vmatmul.bf16.gmra.mxu0 %v115
  %v332 = vpop.f32.mrf.mxu0
  %v333 = vadd.f32 0.0, %v332
  %v334 = vpop.f32.mrf.mxu0
  %v335 = vadd.f32 0.0, %v334
  %336 = vmatmul.bf16.gmra.mxu0 %v119
  %v337 = vpop.f32.mrf.mxu0
  %v338 = vadd.f32 0.0, %v337
  %v339 = vpop.f32.mrf.mxu0
  %340 = vdwg.mxu0
  %341 = vmatpush.bf16.msra.mxu0 %v274
  %342 = vmatpush.bf16.msra.mxu0 %v273
  %343 = vmatpush.bf16.msra.mxu0 %v272
  %344 = vmatpush.bf16.msra.mxu0 %v271
  %345 = vmatpush.bf16.msra.mxu0 %v270
  %346 = vmatpush.bf16.msra.mxu0 %v269
  %347 = vmatpush.bf16.msra.mxu0 %v268
  %348 = vmatpush.bf16.msra.mxu0 %v267
  %349 = vmatmul.bf16.gmra.mxu0 %v116
  %v350 = vpop.f32.mrf.mxu0
  %v351 = vadd.f32 %v333, %v350
  %v352 = vpop.f32.mrf.mxu0
  %v353 = vadd.f32 %v335, %v352
  %354 = vmatmul.bf16.gmra.mxu0 %v120
  %v355 = vpop.f32.mrf.mxu0
  %v356 = vadd.f32 %v338, %v355
  %v357 = vpop.f32.mrf.mxu0
  %358 = vdwg.mxu0
  %359 = vmatpush.bf16.msra.mxu0 %v282
  %360 = vmatpush.bf16.msra.mxu0 %v281
  %361 = vmatpush.bf16.msra.mxu0 %v280
  %362 = vmatpush.bf16.msra.mxu0 %v279
  %363 = vmatpush.bf16.msra.mxu0 %v278
  %364 = vmatpush.bf16.msra.mxu0 %v277
  %365 = vmatpush.bf16.msra.mxu0 %v276
  %366 = vmatpush.bf16.msra.mxu0 %v275
  %367 = vmatmul.bf16.gmra.mxu0 %v117
  %v368 = vpop.f32.mrf.mxu0
  %v369 = vadd.f32 %v351, %v368
  %v370 = vpop.f32.mrf.mxu0
  %v371 = vadd.f32 %v353, %v370
  %372 = vmatmul.bf16.gmra.mxu0 %v121
  %v373 = vpop.f32.mrf.mxu0
  %v374 = vadd.f32 %v356, %v373
  %v375 = vpop.f32.mrf.mxu0
  %376 = vdwg.mxu0
  %377 = vmatpush.bf16.msra.mxu0 %v290
  %378 = vmatpush.bf16.msra.mxu0 %v289
  %379 = vmatpush.bf16.msra.mxu0 %v288
  %380 = vmatpush.bf16.msra.mxu0 %v287
  %381 = vmatpush.bf16.msra.mxu0 %v286
  %382 = vmatpush.bf16.msra.mxu0 %v285
  %383 = vmatpush.bf16.msra.mxu0 %v284
  %384 = vmatpush.bf16.msra.mxu0 %v283
  %385 = vmatmul.bf16.gmra.mxu0 %v118
  %v386 = vpop.f32.mrf.mxu0
  %v387 = vadd.f32 %v369, %v386
  %v388 = vpop.f32.mrf.mxu0
  %v389 = vadd.f32 %v371, %v388
  %390 = vmatmul.bf16.gmra.mxu0 %v122
  %v391 = vpop.f32.mrf.mxu0
  %v392 = vadd.f32 %v374, %v391
  %v393 = vpop.f32.mrf.mxu0
  %394 = vdwg.mxu0
  %v395 = vadd.f32 %v30, %v387
  %v396 = vadd.f32 %v31, %v389
  %v397 = vadd.f32 %v32, %v392
  %398 = vst [vmem:[#allocation2] sm:$0xff] %v395
  %399 = vst [vmem:[#allocation2 + $0x8] sm:$0xff] %v396
  %400 = vst [vmem:[#allocation2 + $0x10] sm:$0xff] %v397
  // Predicated region
  $region22: #{forward.18} parent=0 // pred_check
    %p401 = pneg %p17
  $region23: #{forward.18} parent=0 // pred_check_branch
    %403 = sbr.rel (%p401) target = $region25
  $region24: #{forward.18} parent=0 // pred_region
    %v404 = vld [vmem:[#allocation2] sm:$0xff]
    %v405 = vld [vmem:[#allocation2 + $0x8] sm:$0xff]
    %v406 = vld [vmem:[#allocation2 + $0x10] sm:$0xff]
    %v407 = vld [vmem:[%s2] sm:$0x1]
    %v408 = vunpack.c.l.bf16 %v407
    %v409 = vperm.slane %v408, 0
    %v410 = vadd.f32 %v404, %v409
    %v411 = vadd.f32 %v405, %v409
    %v412 = vadd.f32 %v406, %v409
    %v413 = vld [vmem:[%s3] sm:$0xf]
    %v414 = vld [vmem:[%s3 + $0x4] sm:$0xf]
    %v415 = vld [vmem:[%s3 + $0x8] sm:$0xf]
    %v416 = vunpack.c.l.bf16 %v413
    %v417 = vunpack.c.l.bf16 %v414
    %v418 = vunpack.c.l.bf16 %v415
    %v419 = vadd.f32 %v410, %v416
    %v420 = vadd.f32 %v411, %v417
    %v421 = vadd.f32 %v412, %v418
    %v422 = vpack.c.bf16 %v419, %v419
    %v423 = vpack.c.bf16 %v420, %v420
    %v424 = vpack.c.bf16 %v421, %v421
    %425 = vst [vmem:[%s4] sm:$0xf] %v422
    %426 = vst [vmem:[%s4 + $0x4] sm:$0xf] %v423
    %427 = vst [vmem:[%s4 + $0x8] sm:$0xf] %v424
  $region25: #{forward.18} parent=0 // pred_fallthru
    _
  // Predicated region
  $region26: #{forward.18} parent=0 // pred_check
    _
  $region27: #{forward.18} parent=0 // pred_check_branch
    %429 = sbr.rel (0) target = $region29
  $region28: #{forward.18} parent=0 // pred_region
    _
  $region29: #{forward.18} parent=0 // pred_fallthru
    _
  // Predicated region
  $region30: #{forward.18} parent=0 // pred_check
    _
  $region31: #{forward.18} parent=0 // pred_check_branch
    %431 = sbr.rel (0) target = $region33
  $region32: #{forward.18} parent=0 // pred_region
    _
  $region33: #{forward.18} parent=0 // pred_fallthru
    _

// kernel: forward.25
$region0: #{forward.25}
  #allocation0 [shape = 'u32[]', space=smem, size = 0x4, offset = 0x4, fixed_abs, tag = 'smem constant byte address 0x4 - core index']
  #allocation1 [shape = 'u32[72,128]{1,0:T(1,128)}', space=vmem, size = 0x9000, scoped, tag = 'internal scratch']
  #allocation2 [shape = 'f32[8,128]{1,0:T(8,128)}', space=vmem, size = 0x1000, scoped, tag = 'scratch operand']
  %s0 = inlined_call_operand.vmem [shape: bf16[8,128], index: 0, kind: input, shape index: {}]
  %s1 = inlined_call_operand.vmem [shape: bf16[128,128], index: 1, kind: input, shape index: {}]
  %s2 = inlined_call_operand.vmem [shape: bf16[1,128], index: 2, kind: input, shape index: {}]
  %s3 = inlined_call_operand.vmem [shape: f32[8,128], index: 3, kind: output, shape index: {}]
  %s4 = sld [smem:[#allocation0]]
  $region30: #{forward.25} parent=0
    _
  %s6 = ssub.s32 1, %s4
  %s7 = scalar_select 0, %s6, %s4
  // Predicated region
  $region2: #{forward.25} parent=0 // pred_check
    _
  $region3: #{forward.25} parent=0 // pred_check_branch
    %9 = sbr.rel (0) target = $region5
  $region4: #{forward.25} parent=0 // pred_region
    _
  $region5: #{forward.25} parent=0 // pred_fallthru
    _
  // Predicated region
  $region6: #{forward.25} parent=0 // pred_check
    _
  $region7: #{forward.25} parent=0 // pred_check_branch
    %11 = sbr.rel (0) target = $region9
  $region8: #{forward.25} parent=0 // pred_region
    _
  $region9: #{forward.25} parent=0 // pred_fallthru
    _
  // Predicated region
  $region10: #{forward.25} parent=0 // pred_check
    _
  $region11: #{forward.25} parent=0 // pred_check_branch
    %13 = sbr.rel (0) target = $region13
  $region12: #{forward.25} parent=0 // pred_region
    _
  $region13: #{forward.25} parent=0 // pred_fallthru
    _
  %p14 = scmp.eq.s32.totalorder 0, 0
  // Predicated region
  $region14: #{forward.25} parent=0 // pred_check
    %p15 = pneg %p14
  $region15: #{forward.25} parent=0 // pred_check_branch
    %17 = sbr.rel (%p15) target = $region17
  $region16: #{forward.25} parent=0 // pred_region
    %18 = vst [vmem:[#allocation2] sm:$0xff] 0.0
  $region17: #{forward.25} parent=0 // pred_fallthru
    _
  %v19 = vld [vmem:[%s0] sm:$0xf]
  %v20 = vld [vmem:[#allocation2] sm:$0xff]
  %v21 = vld [vmem:[%s1] sm:$0xf]
  %v22 = vld [vmem:[%s1 + $0x4] sm:$0xf]
  %v23 = vld [vmem:[%s1 + $0x8] sm:$0xf]
  %v24 = vld [vmem:[%s1 + $0xc] sm:$0xf]
  %v25 = vld [vmem:[%s1 + $0x10] sm:$0xf]
  %v26 = vld [vmem:[%s1 + $0x14] sm:$0xf]
  %v27 = vld [vmem:[%s1 + $0x18] sm:$0xf]
  %v28 = vld [vmem:[%s1 + $0x1c] sm:$0xf]
  %v29 = vld [vmem:[%s1 + $0x20] sm:$0xf]
  %v30 = vld [vmem:[%s1 + $0x24] sm:$0xf]
  %v31 = vld [vmem:[%s1 + $0x28] sm:$0xf]
  %v32 = vld [vmem:[%s1 + $0x2c] sm:$0xf]
  %v33 = vld [vmem:[%s1 + $0x30] sm:$0xf]
  %v34 = vld [vmem:[%s1 + $0x34] sm:$0xf]
  %v35 = vld [vmem:[%s1 + $0x38] sm:$0xf]
  %v36 = vld [vmem:[%s1 + $0x3c] sm:$0xf]
  %v53 = vunpack.c.l.b16 %v21
  %v54 = vunpack.c.l.b16 %v22
  %v55 = vunpack.c.l.b16 %v23
  %v56 = vunpack.c.l.b16 %v24
  %v57 = vunpack.c.l.b16 %v25
  %v58 = vunpack.c.l.b16 %v26
  %v59 = vunpack.c.l.b16 %v27
  %v60 = vunpack.c.l.b16 %v28
  %v61 = vunpack.c.l.b16 %v29
  %v62 = vunpack.c.l.b16 %v30
  %v63 = vunpack.c.l.b16 %v31
  %v64 = vunpack.c.l.b16 %v32
  %v65 = vunpack.c.l.b16 %v33
  %v66 = vunpack.c.l.b16 %v34
  %v67 = vunpack.c.l.b16 %v35
  %v68 = vunpack.c.l.b16 %v36
  %v69 = vpack.c.b16 %v54, %v53
  %v70 = vpack.c.b16 %v56, %v55
  %v71 = vpack.c.b16 %v58, %v57
  %v72 = vpack.c.b16 %v60, %v59
  %v73 = vpack.c.b16 %v62, %v61
  %v74 = vpack.c.b16 %v64, %v63
  %v75 = vpack.c.b16 %v66, %v65
  %v76 = vpack.c.b16 %v68, %v67
  %85 = vmatpush.bf16.msra.mxu0 %v76
  %86 = vmatpush.bf16.msra.mxu0 %v75
  %87 = vmatpush.bf16.msra.mxu0 %v74
  %88 = vmatpush.bf16.msra.mxu0 %v73
  %89 = vmatpush.bf16.msra.mxu0 %v72
  %90 = vmatpush.bf16.msra.mxu0 %v71
  %91 = vmatpush.bf16.msra.mxu0 %v70
  %92 = vmatpush.bf16.msra.mxu0 %v69
  %93 = vmatmul.bf16.gmra.mxu0 %v19
  %v94 = vpop.f32.mrf.mxu0
  %v95 = vadd.f32 0.0, %v94
  %v96 = vpop.f32.mrf.mxu0
  %97 = vdwg.mxu0
  %v98 = vadd.f32 %v20, %v95
  %99 = vst [vmem:[#allocation2] sm:$0xff] %v98
  // Predicated region
  $region18: #{forward.25} parent=0 // pred_check
    %p100 = pneg %p14
  $region19: #{forward.25} parent=0 // pred_check_branch
    %102 = sbr.rel (%p100) target = $region21
  $region20: #{forward.25} parent=0 // pred_region
    %v103 = vld [vmem:[#allocation2] sm:$0xff]
    %v104 = vld [vmem:[%s2] sm:$0x1]
    %v105 = vunpack.c.l.bf16 %v104
    %v106 = vperm.slane %v105, 0
    %v107 = vadd.f32 %v103, %v106
    %108 = vst [vmem:[%s3] sm:$0xff] %v107
  $region21: #{forward.25} parent=0 // pred_fallthru
    _
  // Predicated region
  $region22: #{forward.25} parent=0 // pred_check
    _
  $region23: #{forward.25} parent=0 // pred_check_branch
    %110 = sbr.rel (0) target = $region25
  $region24: #{forward.25} parent=0 // pred_region
    _
  $region25: #{forward.25} parent=0 // pred_fallthru
    _
  // Predicated region
  $region26: #{forward.25} parent=0 // pred_check
    _
  $region27: #{forward.25} parent=0 // pred_check_branch
    %112 = sbr.rel (0) target = $region29
  $region28: #{forward.25} parent=0 // pred_region
    _
  $region29: #{forward.25} parent=0 // pred_fallthru
    _

// kernel: forward.17
$region0: #{forward.17}
  #allocation0 [shape = 'u32[]', space=smem, size = 0x4, offset = 0x4, fixed_abs, tag = 'smem constant byte address 0x4 - core index']
  #allocation1 [shape = 'u32[72,128]{1,0:T(1,128)}', space=vmem, size = 0x9000, scoped, tag = 'internal scratch']
  #allocation2 [shape = 'f32[24,512]{1,0:T(8,128)}', space=vmem, size = 0xc000, scoped, tag = 'scratch operand']
  #allocation3 [shape = 'bf16[24,128]{1,0:T(8,128)(2,1)}', space=vmem, size = 0x1800, scoped, tag = 'scratch operand']
  %s0 = inlined_call_operand.vmem [shape: bf16[24,128], index: 0, kind: input, shape index: {}]
  %s1 = inlined_call_operand.vmem [shape: bf16[128,512], index: 1, kind: input, shape index: {}]
  %s2 = inlined_call_operand.vmem [shape: bf16[1,512], index: 2, kind: input, shape index: {}]
  %s3 = inlined_call_operand.vmem [shape: bf16[1,128], index: 3, kind: input, shape index: {}]
  %s4 = inlined_call_operand.vmem [shape: bf16[1,128], index: 4, kind: input, shape index: {}]
  %s5 = inlined_call_operand.vmem [shape: bf16[24,512], index: 5, kind: output, shape index: {}]
  %s6 = sld [smem:[#allocation0]]
  $region42: #{forward.17} parent=0
    _
  %s8 = ssub.s32 1, %s6
  %s9 = scalar_select 0, %s8, %s6
  // Predicated region
  $region2: #{forward.17} parent=0 // pred_check
    _
  $region3: #{forward.17} parent=0 // pred_check_branch
    %11 = sbr.rel (0) target = $region5
  $region4: #{forward.17} parent=0 // pred_region
    _
  $region5: #{forward.17} parent=0 // pred_fallthru
    _
  // Predicated region
  $region6: #{forward.17} parent=0 // pred_check
    _
  $region7: #{forward.17} parent=0 // pred_check_branch
    %13 = sbr.rel (0) target = $region9
  $region8: #{forward.17} parent=0 // pred_region
    _
  $region9: #{forward.17} parent=0 // pred_fallthru
    _
  // Predicated region
  $region10: #{forward.17} parent=0 // pred_check
    _
  $region11: #{forward.17} parent=0 // pred_check_branch
    %15 = sbr.rel (0) target = $region13
  $region12: #{forward.17} parent=0 // pred_region
    _
  $region13: #{forward.17} parent=0 // pred_fallthru
    _
  // Predicated region
  $region14: #{forward.17} parent=0 // pred_check
    _
  $region15: #{forward.17} parent=0 // pred_check_branch
    %17 = sbr.rel (0) target = $region17
  $region16: #{forward.17} parent=0 // pred_region
    _
  $region17: #{forward.17} parent=0 // pred_fallthru
    _
  // Predicated region
  $region18: #{forward.17} parent=0 // pred_check
    _
  $region19: #{forward.17} parent=0 // pred_check_branch
    %19 = sbr.rel (0) target = $region21
  $region20: #{forward.17} parent=0 // pred_region
    _
  $region21: #{forward.17} parent=0 // pred_fallthru
    _
  %p20 = scmp.eq.s32.totalorder 0, 0
  // Predicated region
  $region22: #{forward.17} parent=0 // pred_check
    %p21 = pneg %p20
  $region23: #{forward.17} parent=0 // pred_check_branch
    %23 = sbr.rel (%p21) target = $region25
  $region24: #{forward.17} parent=0 // pred_region
    %24 = vst [vmem:[#allocation2] sm:$0xff] 0.0
    %25 = vst [vmem:[#allocation2 + $0x8] sm:$0xff] 0.0
    %26 = vst [vmem:[#allocation2 + $0x10] sm:$0xff] 0.0
    %27 = vst [vmem:[#allocation2 + $0x18] sm:$0xff] 0.0
    %28 = vst [vmem:[#allocation2 + $0x20] sm:$0xff] 0.0
    %29 = vst [vmem:[#allocation2 + $0x28] sm:$0xff] 0.0
    %30 = vst [vmem:[#allocation2 + $0x30] sm:$0xff] 0.0
    %31 = vst [vmem:[#allocation2 + $0x38] sm:$0xff] 0.0
    %32 = vst [vmem:[#allocation2 + $0x40] sm:$0xff] 0.0
    %33 = vst [vmem:[#allocation2 + $0x48] sm:$0xff] 0.0
    %34 = vst [vmem:[#allocation2 + $0x50] sm:$0xff] 0.0
    %35 = vst [vmem:[#allocation2 + $0x58] sm:$0xff] 0.0
  $region25: #{forward.17} parent=0 // pred_fallthru
    _
  %p36 = scmp.eq.s32.totalorder 0, 0
  // Predicated region
  $region26: #{forward.17} parent=0 // pred_check
    %p37 = pneg %p36
  $region27: #{forward.17} parent=0 // pred_check_branch
    %39 = sbr.rel (%p37) target = $region29
  $region28: #{forward.17} parent=0 // pred_region
    %v40 = vld [vmem:[%s0] sm:$0xf]
    %v41 = vld [vmem:[%s0 + $0x4] sm:$0xf]
    %v42 = vld [vmem:[%s0 + $0x8] sm:$0xf]
    %v43 = vunpack.c.l.bf16 %v40
    %v44 = vunpack.c.l.bf16 %v41
    %v45 = vunpack.c.l.bf16 %v42
    %46 = vadd.xlane.f32.xlu0 %v43
    %v47 = vpop.xlane.xlu0 %46
    %48 = vadd.xlane.f32.xlu0 %v44
    %v49 = vpop.xlane.xlu0 %48
    %50 = vadd.xlane.f32.xlu0 %v45
    %v51 = vpop.xlane.xlu0 %50
    %v52 = vrcp.pop 128.0
    %v53 = vmul.f32 128.0, %v52
    %v54 = vsub.f32 1.0, %v53
    %v55 = vmul.f32 %v52, %v54
    %v56 = vadd.f32 %v52, %v55
    %vm57 = vweird.f32 %v52
    %v58 = vsel %vm57, %v52, %v56
    %v59 = vmul.f32 %v47, %v58
    %v60 = vmul.f32 %v49, %v58
    %v61 = vmul.f32 %v51, %v58
    %v62 = vsub.f32 %v43, %v59
    %v63 = vsub.f32 %v44, %v60
    %v64 = vsub.f32 %v45, %v61
    %v65 = vmul.f32 %v62, %v62
    %v66 = vmul.f32 %v63, %v63
    %v67 = vmul.f32 %v64, %v64
    %68 = vadd.xlane.f32.xlu0 %v65
    %v69 = vpop.xlane.xlu0 %68
    %70 = vadd.xlane.f32.xlu0 %v66
    %v71 = vpop.xlane.xlu0 %70
    %72 = vadd.xlane.f32.xlu0 %v67
    %v73 = vpop.xlane.xlu0 %72
    %v74 = vmul.f32 %v69, %v58
    %v75 = vmul.f32 %v71, %v58
    %v76 = vmul.f32 %v73, %v58
    %v77 = vadd.f32 %v74, 1e-06
    %v78 = vadd.f32 %v75, 1e-06
    %v79 = vadd.f32 %v76, 1e-06
    %v80 = vrsqrt.pop %v77
    %v81 = vmul.f32 %v80, %v77
    %v82 = vmul.f32 %v81, %v80
    %v83 = vmul.f32 0.5, %v82
    %v84 = vsub.f32 1.5, %v83
    %v85 = vmul.f32 %v80, %v84
    %vm86 = vweird.f32 %v77
    %vm87 = vweird.f32 %v80
    %vm88 = vmor %vm86, %vm87
    %v89 = vsel %vm88, %v80, %v85
    %v90 = vrsqrt.pop %v78
    %v91 = vmul.f32 %v90, %v78
    %v92 = vmul.f32 %v91, %v90
    %v93 = vmul.f32 0.5, %v92
    %v94 = vsub.f32 1.5, %v93
    %v95 = vmul.f32 %v90, %v94
    %vm96 = vweird.f32 %v78
    %vm97 = vweird.f32 %v90
    %vm98 = vmor %vm96, %vm97
    %v99 = vsel %vm98, %v90, %v95
    %v100 = vrsqrt.pop %v79
    %v101 = vmul.f32 %v100, %v79
    %v102 = vmul.f32 %v101, %v100
    %v103 = vmul.f32 0.5, %v102
    %v104 = vsub.f32 1.5, %v103
    %v105 = vmul.f32 %v100, %v104
    %vm106 = vweird.f32 %v79
    %vm107 = vweird.f32 %v100
    %vm108 = vmor %vm106, %vm107
    %v109 = vsel %vm108, %v100, %v105
    %v110 = vmul.f32 %v62, %v89
    %v111 = vmul.f32 %v63, %v99
    %v112 = vmul.f32 %v64, %v109
    %v113 = vld [vmem:[%s3] sm:$0x1]
    %v114 = vunpack.c.l.bf16 %v113
    %v115 = vperm.slane %v114, 0
    %v116 = vmul.f32 %v110, %v115
    %v117 = vmul.f32 %v111, %v115
    %v118 = vmul.f32 %v112, %v115
    %v119 = vld [vmem:[%s4] sm:$0x1]
    %v120 = vunpack.c.l.bf16 %v119
    %v121 = vperm.slane %v120, 0
    %v122 = vadd.f32 %v116, %v121
    %v123 = vadd.f32 %v117, %v121
    %v124 = vadd.f32 %v118, %v121
    %v125 = vpack.c.bf16 %v122, %v122
    %v126 = vpack.c.bf16 %v123, %v123
    %v127 = vpack.c.bf16 %v124, %v124
    %128 = vst [vmem:[#allocation3] sm:$0xf] %v125
    %129 = vst [vmem:[#allocation3 + $0x4] sm:$0xf] %v126
    %130 = vst [vmem:[#allocation3 + $0x8] sm:$0xf] %v127
  $region29: #{forward.17} parent=0 // pred_fallthru
    _
  %v131 = vld [vmem:[#allocation3] sm:$0xf]
  %v132 = vld [vmem:[#allocation3 + $0x4] sm:$0xf]
  %v133 = vld [vmem:[#allocation3 + $0x8] sm:$0xf]
  %v134 = vld [vmem:[#allocation2] sm:$0xff]
  %v135 = vld [vmem:[#allocation2 + $0x8] sm:$0xff]
  %v136 = vld [vmem:[#allocation2 + $0x10] sm:$0xff]
  %v137 = vld [vmem:[#allocation2 + $0x18] sm:$0xff]
  %v138 = vld [vmem:[#allocation2 + $0x20] sm:$0xff]
  %v139 = vld [vmem:[#allocation2 + $0x28] sm:$0xff]
  %v140 = vld [vmem:[#allocation2 + $0x30] sm:$0xff]
  %v141 = vld [vmem:[#allocation2 + $0x38] sm:$0xff]
  %v142 = vld [vmem:[#allocation2 + $0x40] sm:$0xff]
  %v143 = vld [vmem:[#allocation2 + $0x48] sm:$0xff]
  %v144 = vld [vmem:[#allocation2 + $0x50] sm:$0xff]
  %v145 = vld [vmem:[#allocation2 + $0x58] sm:$0xff]
  %v146 = vld [vmem:[%s1] sm:$0xff]
  %v147 = vld [vmem:[%s1 + $0x8] sm:$0xff]
  %v148 = vld [vmem:[%s1 + $0x10] sm:$0xff]
  %v149 = vld [vmem:[%s1 + $0x18] sm:$0xff]
  %v150 = vld [vmem:[%s1 + $0x20] sm:$0xff]
  %v151 = vld [vmem:[%s1 + $0x28] sm:$0xff]
  %v152 = vld [vmem:[%s1 + $0x30] sm:$0xff]
  %v153 = vld [vmem:[%s1 + $0x38] sm:$0xff]
  %v154 = vld [vmem:[%s1 + $0x40] sm:$0xff]
  %v155 = vld [vmem:[%s1 + $0x48] sm:$0xff]
  %v156 = vld [vmem:[%s1 + $0x50] sm:$0xff]
  %v157 = vld [vmem:[%s1 + $0x58] sm:$0xff]
  %v158 = vld [vmem:[%s1 + $0x60] sm:$0xff]
  %v159 = vld [vmem:[%s1 + $0x68] sm:$0xff]
  %v160 = vld [vmem:[%s1 + $0x70] sm:$0xff]
  %v161 = vld [vmem:[%s1 + $0x78] sm:$0xff]
  %v162 = vld [vmem:[%s1 + $0x80] sm:$0xff]
  %v163 = vld [vmem:[%s1 + $0x88] sm:$0xff]
  %v164 = vld [vmem:[%s1 + $0x90] sm:$0xff]
  %v165 = vld [vmem:[%s1 + $0x98] sm:$0xff]
  %v166 = vld [vmem:[%s1 + $0xa0] sm:$0xff]
  %v167 = vld [vmem:[%s1 + $0xa8] sm:$0xff]
  %v168 = vld [vmem:[%s1 + $0xb0] sm:$0xff]
  %v169 = vld [vmem:[%s1 + $0xb8] sm:$0xff]
  %v170 = vld [vmem:[%s1 + $0xc0] sm:$0xff]
  %v171 = vld [vmem:[%s1 + $0xc8] sm:$0xff]
  %v172 = vld [vmem:[%s1 + $0xd0] sm:$0xff]
  %v173 = vld [vmem:[%s1 + $0xd8] sm:$0xff]
  %v174 = vld [vmem:[%s1 + $0xe0] sm:$0xff]
  %v175 = vld [vmem:[%s1 + $0xe8] sm:$0xff]
  %v176 = vld [vmem:[%s1 + $0xf0] sm:$0xff]
  %v177 = vld [vmem:[%s1 + $0xf8] sm:$0xff]
  %v181 = vunpack.c.l.b16 %v131
  %v182 = vunpack.c.l.b16 %v132
  %v183 = vunpack.c.l.b16 %v133
  %v184 = vpack.c.b16 %v182, %v181
  %v185 = vpack.c.b16 %v183, %v183
  %v220 = vunpack.c.l.b16 %v146
  %v221 = vunpack.c.h.b16 %v146
  %v222 = vunpack.c.l.b16 %v147
  %v223 = vunpack.c.h.b16 %v147
  %v224 = vunpack.c.l.b16 %v148
  %v225 = vunpack.c.h.b16 %v148
  %v226 = vunpack.c.l.b16 %v149
  %v227 = vunpack.c.h.b16 %v149
  %v228 = vunpack.c.l.b16 %v150
  %v229 = vunpack.c.h.b16 %v150
  %v230 = vunpack.c.l.b16 %v151
  %v231 = vunpack.c.h.b16 %v151
  %v232 = vunpack.c.l.b16 %v152
  %v233 = vunpack.c.h.b16 %v152
  %v234 = vunpack.c.l.b16 %v153
  %v235 = vunpack.c.h.b16 %v153
  %v236 = vunpack.c.l.b16 %v154
  %v237 = vunpack.c.h.b16 %v154
  %v238 = vunpack.c.l.b16 %v155
  %v239 = vunpack.c.h.b16 %v155
  %v240 = vunpack.c.l.b16 %v156
  %v241 = vunpack.c.h.b16 %v156
  %v242 = vunpack.c.l.b16 %v157
  %v243 = vunpack.c.h.b16 %v157
  %v244 = vunpack.c.l.b16 %v158
  %v245 = vunpack.c.h.b16 %v158
  %v246 = vunpack.c.l.b16 %v159
  %v247 = vunpack.c.h.b16 %v159
  %v248 = vunpack.c.l.b16 %v160
  %v249 = vunpack.c.h.b16 %v160
  %v250 = vunpack.c.l.b16 %v161
  %v251 = vunpack.c.h.b16 %v161
  %v252 = vunpack.c.l.b16 %v162
  %v253 = vunpack.c.h.b16 %v162
  %v254 = vunpack.c.l.b16 %v163
  %v255 = vunpack.c.h.b16 %v163
  %v256 = vunpack.c.l.b16 %v164
  %v257 = vunpack.c.h.b16 %v164
  %v258 = vunpack.c.l.b16 %v165
  %v259 = vunpack.c.h.b16 %v165
  %v260 = vunpack.c.l.b16 %v166
  %v261 = vunpack.c.h.b16 %v166
  %v262 = vunpack.c.l.b16 %v167
  %v263 = vunpack.c.h.b16 %v167
  %v264 = vunpack.c.l.b16 %v168
  %v265 = vunpack.c.h.b16 %v168
  %v266 = vunpack.c.l.b16 %v169
  %v267 = vunpack.c.h.b16 %v169
  %v268 = vunpack.c.l.b16 %v170
  %v269 = vunpack.c.h.b16 %v170
  %v270 = vunpack.c.l.b16 %v171
  %v271 = vunpack.c.h.b16 %v171
  %v272 = vunpack.c.l.b16 %v172
  %v273 = vunpack.c.h.b16 %v172
  %v274 = vunpack.c.l.b16 %v173
  %v275 = vunpack.c.h.b16 %v173
  %v276 = vunpack.c.l.b16 %v174
  %v277 = vunpack.c.h.b16 %v174
  %v278 = vunpack.c.l.b16 %v175
  %v279 = vunpack.c.h.b16 %v175
  %v280 = vunpack.c.l.b16 %v176
  %v281 = vunpack.c.h.b16 %v176
  %v282 = vunpack.c.l.b16 %v177
  %v283 = vunpack.c.h.b16 %v177
  %v284 = vpack.c.b16 %v224, %v220
  %v285 = vpack.c.b16 %v225, %v221
  %v286 = vpack.c.b16 %v226, %v222
  %v287 = vpack.c.b16 %v227, %v223
  %v288 = vpack.c.b16 %v232, %v228
  %v289 = vpack.c.b16 %v233, %v229
  %v290 = vpack.c.b16 %v234, %v230
  %v291 = vpack.c.b16 %v235, %v231
  %v292 = vpack.c.b16 %v240, %v236
  %v293 = vpack.c.b16 %v241, %v237
  %v294 = vpack.c.b16 %v242, %v238
  %v295 = vpack.c.b16 %v243, %v239
  %v296 = vpack.c.b16 %v248, %v244
  %v297 = vpack.c.b16 %v249, %v245
  %v298 = vpack.c.b16 %v250, %v246
  %v299 = vpack.c.b16 %v251, %v247
  %v300 = vpack.c.b16 %v256, %v252
  %v301 = vpack.c.b16 %v257, %v253
  %v302 = vpack.c.b16 %v258, %v254
  %v303 = vpack.c.b16 %v259, %v255
  %v304 = vpack.c.b16 %v264, %v260
  %v305 = vpack.c.b16 %v265, %v261
  %v306 = vpack.c.b16 %v266, %v262
  %v307 = vpack.c.b16 %v267, %v263
  %v308 = vpack.c.b16 %v272, %v268
  %v309 = vpack.c.b16 %v273, %v269
  %v310 = vpack.c.b16 %v274, %v270
  %v311 = vpack.c.b16 %v275, %v271
  %v312 = vpack.c.b16 %v280, %v276
  %v313 = vpack.c.b16 %v281, %v277
  %v314 = vpack.c.b16 %v282, %v278
  %v315 = vpack.c.b16 %v283, %v279
  %348 = vmatpush.bf16.msra.mxu0 %v312
  %349 = vmatpush.bf16.msra.mxu0 %v308
  %350 = vmatpush.bf16.msra.mxu0 %v304
  %351 = vmatpush.bf16.msra.mxu0 %v300
  %352 = vmatpush.bf16.msra.mxu0 %v296
  %353 = vmatpush.bf16.msra.mxu0 %v292
  %354 = vmatpush.bf16.msra.mxu0 %v288
  %355 = vmatpush.bf16.msra.mxu0 %v284
  %356 = vmatmul.bf16.gmra.mxu0 %v184
  %v357 = vpop.f32.mrf.mxu0
  %v358 = vadd.f32 0.0, %v357
  %v359 = vpop.f32.mrf.mxu0
  %v360 = vadd.f32 0.0, %v359
  %361 = vmatmul.bf16.gmra.mxu0 %v185
  %v362 = vpop.f32.mrf.mxu0
  %v363 = vadd.f32 0.0, %v362
  %v364 = vpop.f32.mrf.mxu0
  %365 = vdwg.mxu0
  %366 = vmatpush.bf16.msra.mxu0 %v313
  %367 = vmatpush.bf16.msra.mxu0 %v309
  %368 = vmatpush.bf16.msra.mxu0 %v305
  %369 = vmatpush.bf16.msra.mxu0 %v301
  %370 = vmatpush.bf16.msra.mxu0 %v297
  %371 = vmatpush.bf16.msra.mxu0 %v293
  %372 = vmatpush.bf16.msra.mxu0 %v289
  %373 = vmatpush.bf16.msra.mxu0 %v285
  %374 = vmatmul.bf16.gmra.mxu0 %v184
  %v375 = vpop.f32.mrf.mxu0
  %v376 = vadd.f32 0.0, %v375
  %v377 = vpop.f32.mrf.mxu0
  %v378 = vadd.f32 0.0, %v377
  %379 = vmatmul.bf16.gmra.mxu0 %v185
  %v380 = vpop.f32.mrf.mxu0
  %v381 = vadd.f32 0.0, %v380
  %v382 = vpop.f32.mrf.mxu0
  %383 = vdwg.mxu0
  %384 = vmatpush.bf16.msra.mxu0 %v314
  %385 = vmatpush.bf16.msra.mxu0 %v310
  %386 = vmatpush.bf16.msra.mxu0 %v306
  %387 = vmatpush.bf16.msra.mxu0 %v302
  %388 = vmatpush.bf16.msra.mxu0 %v298
  %389 = vmatpush.bf16.msra.mxu0 %v294
  %390 = vmatpush.bf16.msra.mxu0 %v290
  %391 = vmatpush.bf16.msra.mxu0 %v286
  %392 = vmatmul.bf16.gmra.mxu0 %v184
  %v393 = vpop.f32.mrf.mxu0
  %v394 = vadd.f32 0.0, %v393
  %v395 = vpop.f32.mrf.mxu0
  %v396 = vadd.f32 0.0, %v395
  %397 = vmatmul.bf16.gmra.mxu0 %v185
  %v398 = vpop.f32.mrf.mxu0
  %v399 = vadd.f32 0.0, %v398
  %v400 = vpop.f32.mrf.mxu0
  %401 = vdwg.mxu0
  %402 = vmatpush.bf16.msra.mxu0 %v315
  %403 = vmatpush.bf16.msra.mxu0 %v311
  %404 = vmatpush.bf16.msra.mxu0 %v307
  %405 = vmatpush.bf16.msra.mxu0 %v303
  %406 = vmatpush.bf16.msra.mxu0 %v299
  %407 = vmatpush.bf16.msra.mxu0 %v295
  %408 = vmatpush.bf16.msra.mxu0 %v291
  %409 = vmatpush.bf16.msra.mxu0 %v287
  %410 = vmatmul.bf16.gmra.mxu0 %v184
  %v411 = vpop.f32.mrf.mxu0
  %v412 = vadd.f32 0.0, %v411
  %v413 = vpop.f32.mrf.mxu0
  %v414 = vadd.f32 0.0, %v413
  %415 = vmatmul.bf16.gmra.mxu0 %v185
  %v416 = vpop.f32.mrf.mxu0
  %v417 = vadd.f32 0.0, %v416
  %v418 = vpop.f32.mrf.mxu0
  %419 = vdwg.mxu0
  %v420 = vadd.f32 %v134, %v358
  %v421 = vadd.f32 %v135, %v376
  %v422 = vadd.f32 %v136, %v394
  %v423 = vadd.f32 %v137, %v412
  %v424 = vadd.f32 %v138, %v360
  %v425 = vadd.f32 %v139, %v378
  %v426 = vadd.f32 %v140, %v396
  %v427 = vadd.f32 %v141, %v414
  %v428 = vadd.f32 %v142, %v363
  %v429 = vadd.f32 %v143, %v381
  %v430 = vadd.f32 %v144, %v399
  %v431 = vadd.f32 %v145, %v417
  %432 = vst [vmem:[#allocation2] sm:$0xff] %v420
  %433 = vst [vmem:[#allocation2 + $0x8] sm:$0xff] %v421
  %434 = vst [vmem:[#allocation2 + $0x10] sm:$0xff] %v422
  %435 = vst [vmem:[#allocation2 + $0x18] sm:$0xff] %v423
  %436 = vst [vmem:[#allocation2 + $0x20] sm:$0xff] %v424
  %437 = vst [vmem:[#allocation2 + $0x28] sm:$0xff] %v425
  %438 = vst [vmem:[#allocation2 + $0x30] sm:$0xff] %v426
  %439 = vst [vmem:[#allocation2 + $0x38] sm:$0xff] %v427
  %440 = vst [vmem:[#allocation2 + $0x40] sm:$0xff] %v428
  %441 = vst [vmem:[#allocation2 + $0x48] sm:$0xff] %v429
  %442 = vst [vmem:[#allocation2 + $0x50] sm:$0xff] %v430
  %443 = vst [vmem:[#allocation2 + $0x58] sm:$0xff] %v431
  // Predicated region
  $region30: #{forward.17} parent=0 // pred_check
    %p444 = pneg %p20
  $region31: #{forward.17} parent=0 // pred_check_branch
    %446 = sbr.rel (%p444) target = $region33
  $region32: #{forward.17} parent=0 // pred_region
    %v447 = vld [vmem:[#allocation2] sm:$0xff]
    %v448 = vld [vmem:[#allocation2 + $0x8] sm:$0xff]
    %v449 = vld [vmem:[#allocation2 + $0x10] sm:$0xff]
    %v450 = vld [vmem:[#allocation2 + $0x18] sm:$0xff]
    %v451 = vld [vmem:[#allocation2 + $0x20] sm:$0xff]
    %v452 = vld [vmem:[#allocation2 + $0x28] sm:$0xff]
    %v453 = vld [vmem:[#allocation2 + $0x30] sm:$0xff]
    %v454 = vld [vmem:[#allocation2 + $0x38] sm:$0xff]
    %v455 = vld [vmem:[#allocation2 + $0x40] sm:$0xff]
    %v456 = vld [vmem:[#allocation2 + $0x48] sm:$0xff]
    %v457 = vld [vmem:[#allocation2 + $0x50] sm:$0xff]
    %v458 = vld [vmem:[#allocation2 + $0x58] sm:$0xff]
    %v459 = vld [vmem:[%s2] sm:$0xf]
    %v460 = vunpack.c.l.bf16 %v459
    %v462 = vperm.slane %v460, 0
    %v463 = vperm.slane %v460, 2
    %v464 = vperm.slane %v460, 4
    %v465 = vperm.slane %v460, 6
    %v470 = vperm.slane %v462, 0
    %v471 = vperm.slane %v463, 0
    %v472 = vperm.slane %v464, 0
    %v473 = vperm.slane %v465, 0
    %v474 = vadd.f32 %v447, %v470
    %v475 = vadd.f32 %v448, %v471
    %v476 = vadd.f32 %v449, %v472
    %v477 = vadd.f32 %v450, %v473
    %v478 = vadd.f32 %v451, %v470
    %v479 = vadd.f32 %v452, %v471
    %v480 = vadd.f32 %v453, %v472
    %v481 = vadd.f32 %v454, %v473
    %v482 = vadd.f32 %v455, %v470
    %v483 = vadd.f32 %v456, %v471
    %v484 = vadd.f32 %v457, %v472
    %v485 = vadd.f32 %v458, %v473
    %v486 = vmul.f32 %v474, %v474
    %v487 = vmul.f32 %v475, %v475
    %v488 = vmul.f32 %v476, %v476
    %v489 = vmul.f32 %v477, %v477
    %v490 = vmul.f32 %v478, %v478
    %v491 = vmul.f32 %v479, %v479
    %v492 = vmul.f32 %v480, %v480
    %v493 = vmul.f32 %v481, %v481
    %v494 = vmul.f32 %v482, %v482
    %v495 = vmul.f32 %v483, %v483
    %v496 = vmul.f32 %v484, %v484
    %v497 = vmul.f32 %v485, %v485
    %v498 = vmul.f32 %v474, %v486
    %v499 = vmul.f32 %v475, %v487
    %v500 = vmul.f32 %v476, %v488
    %v501 = vmul.f32 %v477, %v489
    %v502 = vmul.f32 %v478, %v490
    %v503 = vmul.f32 %v479, %v491
    %v504 = vmul.f32 %v480, %v492
    %v505 = vmul.f32 %v481, %v493
    %v506 = vmul.f32 %v482, %v494
    %v507 = vmul.f32 %v483, %v495
    %v508 = vmul.f32 %v484, %v496
    %v509 = vmul.f32 %v485, %v497
    %v510 = vmul.f32 %v498, 0.044715
    %v511 = vmul.f32 %v499, 0.044715
    %v512 = vmul.f32 %v500, 0.044715
    %v513 = vmul.f32 %v501, 0.044715
    %v514 = vmul.f32 %v502, 0.044715
    %v515 = vmul.f32 %v503, 0.044715
    %v516 = vmul.f32 %v504, 0.044715
    %v517 = vmul.f32 %v505, 0.044715
    %v518 = vmul.f32 %v506, 0.044715
    %v519 = vmul.f32 %v507, 0.044715
    %v520 = vmul.f32 %v508, 0.044715
    %v521 = vmul.f32 %v509, 0.044715
    %v522 = vadd.f32 %v474, %v510
    %v523 = vadd.f32 %v475, %v511
    %v524 = vadd.f32 %v476, %v512
    %v525 = vadd.f32 %v477, %v513
    %v526 = vadd.f32 %v478, %v514
    %v527 = vadd.f32 %v479, %v515
    %v528 = vadd.f32 %v480, %v516
    %v529 = vadd.f32 %v481, %v517
    %v530 = vadd.f32 %v482, %v518
    %v531 = vadd.f32 %v483, %v519
    %v532 = vadd.f32 %v484, %v520
    %v533 = vadd.f32 %v485, %v521
    %v534 = vmul.f32 %v522, 0.7978846
    %v535 = vmul.f32 %v523, 0.7978846
    %v536 = vmul.f32 %v524, 0.7978846
    %v537 = vmul.f32 %v525, 0.7978846
    %v538 = vmul.f32 %v526, 0.7978846
    %v539 = vmul.f32 %v527, 0.7978846
    %v540 = vmul.f32 %v528, 0.7978846
    %v541 = vmul.f32 %v529, 0.7978846
    %v542 = vmul.f32 %v530, 0.7978846
    %v543 = vmul.f32 %v531, 0.7978846
    %v544 = vmul.f32 %v532, 0.7978846
    %v545 = vmul.f32 %v533, 0.7978846
    %v546 = vtanh.pop %v534
    %v547 = vtanh.pop %v535
    %v548 = vtanh.pop %v536
    %v549 = vtanh.pop %v537
    %v550 = vtanh.pop %v538
    %v551 = vtanh.pop %v539
    %v552 = vtanh.pop %v540
    %v553 = vtanh.pop %v541
    %v554 = vtanh.pop %v542
    %v555 = vtanh.pop %v543
    %v556 = vtanh.pop %v544
    %v557 = vtanh.pop %v545
    %v558 = vadd.f32 %v546, 1.0
    %v559 = vadd.f32 %v547, 1.0
    %v560 = vadd.f32 %v548, 1.0
    %v561 = vadd.f32 %v549, 1.0
    %v562 = vadd.f32 %v550, 1.0
    %v563 = vadd.f32 %v551, 1.0
    %v564 = vadd.f32 %v552, 1.0
    %v565 = vadd.f32 %v553, 1.0
    %v566 = vadd.f32 %v554, 1.0
    %v567 = vadd.f32 %v555, 1.0
    %v568 = vadd.f32 %v556, 1.0
    %v569 = vadd.f32 %v557, 1.0
    %v570 = vmul.f32 %v558, 0.5
    %v571 = vmul.f32 %v559, 0.5
    %v572 = vmul.f32 %v560, 0.5
    %v573 = vmul.f32 %v561, 0.5
    %v574 = vmul.f32 %v562, 0.5
    %v575 = vmul.f32 %v563, 0.5
    %v576 = vmul.f32 %v564, 0.5
    %v577 = vmul.f32 %v565, 0.5
    %v578 = vmul.f32 %v566, 0.5
    %v579 = vmul.f32 %v567, 0.5
    %v580 = vmul.f32 %v568, 0.5
    %v581 = vmul.f32 %v569, 0.5
    %v582 = vmul.f32 %v474, %v570
    %v583 = vmul.f32 %v475, %v571
    %v584 = vmul.f32 %v476, %v572
    %v585 = vmul.f32 %v477, %v573
    %v586 = vmul.f32 %v478, %v574
    %v587 = vmul.f32 %v479, %v575
    %v588 = vmul.f32 %v480, %v576
    %v589 = vmul.f32 %v481, %v577
    %v590 = vmul.f32 %v482, %v578
    %v591 = vmul.f32 %v483, %v579
    %v592 = vmul.f32 %v484, %v580
    %v593 = vmul.f32 %v485, %v581
    %v594 = vpack.c.bf16 %v583, %v582
    %v595 = vpack.c.bf16 %v585, %v584
    %v596 = vpack.c.bf16 %v587, %v586
    %v597 = vpack.c.bf16 %v589, %v588
    %v598 = vpack.c.bf16 %v591, %v590
    %v599 = vpack.c.bf16 %v593, %v592
    %600 = vst [vmem:[%s5] sm:$0xff] %v594
    %601 = vst [vmem:[%s5 + $0x8] sm:$0xff] %v595
    %602 = vst [vmem:[%s5 + $0x10] sm:$0xff] %v596
    %603 = vst [vmem:[%s5 + $0x18] sm:$0xff] %v597
    %604 = vst [vmem:[%s5 + $0x20] sm:$0xff] %v598
    %605 = vst [vmem:[%s5 + $0x28] sm:$0xff] %v599
  $region33: #{forward.17} parent=0 // pred_fallthru
    _
  // Predicated region
  $region34: #{forward.17} parent=0 // pred_check
    _
  $region35: #{forward.17} parent=0 // pred_check_branch
    %607 = sbr.rel (0) target = $region37
  $region36: #{forward.17} parent=0 // pred_region
    _
  $region37: #{forward.17} parent=0 // pred_fallthru
    _
  // Predicated region
  $region38: #{forward.17} parent=0 // pred_check
    _
  $region39: #{forward.17} parent=0 // pred_check_branch
    %609 = sbr.rel (0) target = $region41
  $region40: #{forward.17} parent=0 // pred_region
    _
  $region41: #{forward.17} parent=0 // pred_fallthru
    _

</llo_original>
